<compile_context>
chip_gen: v7x
topology: tpu7x:2x2x1
jax: 0.10.0
libtpu: 0.0.40
codegen_flags: <defaults>
</compile_context>

<pallas_src>
import math

import jax
import jax.numpy as jnp
from jax.experimental import pallas as pl
from jax.experimental.pallas import tpu as pltpu

LANE = 128          # lane width / minimum padded feature dim
BASE_TILE_K = 512   # the flattened input dim is padded to a multiple of this


def _round_up(x, m):
    return (x + m - 1) // m * m


def _layer_dims(n_channels, sample_length):
    flat = int(n_channels * sample_length)
    return [flat,
            int(flat / 4), int(flat / 16), int(flat / 32),
            int(flat / 64), int(flat / 128), int(flat / 256),
            1]


def init_params(key, n_channels, sample_length):
    """torch.nn.Linear-style init; weights stored (in, out), biases (1, out), f32."""
    dims = _layer_dims(n_channels, sample_length)
    params = []
    for i in range(len(dims) - 1):
        fan_in, fan_out = dims[i], dims[i + 1]
        key, kw, kb = jax.random.split(key, 3)
        bound = 1.0 / math.sqrt(fan_in)
        w = jax.random.uniform(kw, (fan_in, fan_out), jnp.float32, -bound, bound)
        b = jax.random.uniform(kb, (1, fan_out), jnp.float32, -bound, bound)
        params.append((w, b))
    return params


def pad_params(params):
    """Zero-pad each layer's in/out dims to lane multiples and cast weights to bf16.

    Padded columns stay exactly 0 through bias-add (zero bias pad) and ReLU, and
    padded rows of the next weight are 0, so the real output column is unchanged.
    """
    flat = params[0][0].shape[0]
    pdims = [_round_up(flat, BASE_TILE_K)]
    for w, _ in params:
        pdims.append(_round_up(max(w.shape[1], LANE), LANE))

    padded = []
    for i, (w, b) in enumerate(params):
        fi_p, fo_p = pdims[i], pdims[i + 1]
        w_p = jnp.zeros((fi_p, fo_p), jnp.bfloat16)
        w_p = w_p.at[: w.shape[0], : w.shape[1]].set(w.astype(jnp.bfloat16))
        b_p = jnp.zeros((1, fo_p), jnp.float32)
        b_p = b_p.at[:, : b.shape[1]].set(b)
        padded.append((w_p, b_p))
    return padded


# ----------------------------------------------------------------------------
# Kernel
# ----------------------------------------------------------------------------
def mlp_kernel(x_ref,
               w1, b1, w2, b2, w3, b3, w4, b4, w5, b5, w6, b6, w7, b7,
               o_ref, acc_ref):
    """Layer 1 split over K (f32 accumulator); layers 2..7 fused on the last K step."""
    k = pl.program_id(1)
    nk = pl.num_programs(1)

    @pl.when(k == 0)
    def _():
        # Fold the layer-1 bias into the accumulator init (saves a full-width
        # f32 add in the epilogue; b1 is VMEM-resident anyway).
        acc_ref[...] = jnp.broadcast_to(b1[...], acc_ref.shape)

    # Layer 1 partial product.  x may arrive as f32 (aligned, no wrapper repack)
    # or bf16 (padded); cast here so the MXU always runs bf16 x bf16 -> f32.
    x = x_ref[...].astype(jnp.bfloat16)
    acc_ref[...] += jnp.dot(x, w1[...], preferred_element_type=jnp.float32)

    @pl.when(k == nk - 1)
    def _():
        h = jnp.maximum(acc_ref[...], 0.0)

        def layer(h, w_ref, b_ref, relu):
            y = jnp.dot(h.astype(w_ref.dtype), w_ref[...],
                        preferred_element_type=jnp.float32) + b_ref[...]
            return jnp.maximum(y, 0.0) if relu else y

        h = layer(h, w2, b2, True)
        h = layer(h, w3, b3, True)
        h = layer(h, w4, b4, True)
        h = layer(h, w5, b5, True)
        h = layer(h, w6, b6, True)
        o_ref[...] = layer(h, w7, b7, False).astype(o_ref.dtype)


# ----------------------------------------------------------------------------
# Static policy (tile sizes, VMEM budget, resident buffering) — resolved once,
# outside jit, from the actual device.
# ----------------------------------------------------------------------------
def _device_kind():
    try:
        return jax.devices()[0].device_kind.lower()
    except Exception:
        return ""


def _vmem_budget_bytes():
    cap = 0
    try:
        info = pltpu.get_tpu_info()
        cap = int(getattr(info, "vmem_capacity_bytes", 0) or 0)
    except Exception:
        cap = 0
    if cap <= 0:
        cap = 64 * 1024 * 1024      # conservative default: v7x-sized VMEM
    return int(cap * 0.85)          # leave Mosaic / scoped-VMEM headroom


_RESIDENT_BUFFER_COUNT = None


def _resident_buffer_count():
    """1 if pipeline_mode=pl.Buffered(1) works end-to-end on this jax/TPU, else 2."""
    global _RESIDENT_BUFFER_COUNT
    if _RESIDENT_BUFFER_COUNT is not None:
        return _RESIDENT_BUFFER_COUNT
    try:
        def _probe_kernel(x_ref, o_ref):
            o_ref[...] = x_ref[...] + 1.0

        spec = pl.BlockSpec((8, 128), lambda i: (0, 0), pipeline_mode=pl.Buffered(1))
        f = pl.pallas_call(
            _probe_kernel,
            out_shape=jax.ShapeDtypeStruct((16, 128), jnp.float32),
            grid=(2,),
            in_specs=[spec],
            out_specs=pl.BlockSpec((8, 128), lambda i: (i, 0)),
        )
        jax.block_until_ready(f(jnp.ones((8, 128), jnp.float32)))
        _RESIDENT_BUFFER_COUNT = 1
    except Exception:
        _RESIDENT_BUFFER_COUNT = 2
    return _RESIDENT_BUFFER_COUNT


def _resolve_policy(batch, flat, padded_params):
    w1_p, b1_p = padded_params[0]
    flat_p, d1_p = int(w1_p.shape[0]), int(w1_p.shape[1])
    out_p = int(padded_params[-1][0].shape[1])

    budget = _vmem_budget_bytes()
    kind = _device_kind()
    resident_bufs = _resident_buffer_count()

    resident_bytes = resident_bufs * (
        sum(int(w.size) * 2 + int(b.size) * 4 for w, b in padded_params[1:])
        + int(b1_p.size) * 4)

    # Generation-tuned batch tile (MXU M dim).  Layer-1 arithmetic intensity is
    # exactly tile_b FLOP per W1 byte, so a bigger tile_b cuts W1 HBM re-streams.
    if batch <= 64:
        pref_b = 64
    elif batch <= 128:
        pref_b = 64 if "v7" in kind else 128     # engage both v7x TensorCores
    elif "v6" in kind:
        pref_b = 512                             # v6e: highest ridge, 128 MiB VMEM
    else:
        pref_b = 256                             # v5e / v7x / unknown

    tile_b_cands = [t for t in (512, 256, 128, 64) if t <= pref_b]
    tile_k_cands = [c for c in (2048, 1024, 512, 256, 128) if flat_p % c == 0]
    if not tile_k_cands:
        tile_k_cands = [flat_p]

    def need(tb, tk, x_item):
        return (2 * tb * tk * x_item           # x tiles (double-buffered)
                + 2 * tk * d1_p * 2            # W1 K-slices (bf16, double-buffered)
                + resident_bytes               # layers 2..7 weights / biases (+ b1)
                + 2 * tb * out_p * 4           # output tiles (f32)
                + tb * d1_p * 4)               # f32 layer-1 accumulator scratch

    chosen = None
    for tb in tile_b_cands:                    # prefer large tile_b (HBM traffic)
        batch_p = _round_up(max(batch, tb), tb)
        aligned = (batch_p == batch) and (flat == flat_p)
        x_item = 4 if aligned else 2
        for tk in tile_k_cands:                # then the largest tile_k that fits
            n = need(tb, tk, x_item)
            if n <= budget:
                chosen = (tb, tk, n)
                break
        if chosen is not None:
            break
    if chosen is None:
        # TODO(synk): for very large `flat`, layers 2..7 (esp. W2 = flat^2/32 bytes)
        # no longer fit VMEM-resident; a K-tiled layer-2 (extra grid axis or
        # emit_pipeline in the epilogue) would be needed.  Fall back to the
        # smallest tiles and let the compiler decide.
        tb, tk = tile_b_cands[-1], tile_k_cands[-1]
        chosen = (tb, tk, need(tb, tk, 2))

    tile_b, tile_k, vmem_need = chosen
    vmem_limit = int(min(budget, max(vmem_need * 5 // 4, 32 * 1024 * 1024)))
    return (int(tile_b), int(tile_k), int(resident_bufs), int(vmem_limit))


# ----------------------------------------------------------------------------
# Forward pass
# ----------------------------------------------------------------------------
def _mlp_forward(x, padded_params, policy):
    tile_b, tile_k, resident_bufs, vmem_limit = policy

    batch = x.shape[0]
    x_flat = x.reshape(batch, -1)              # == nn.Flatten (row-major)
    flat = x_flat.shape[1]

    w1_p, b1_p = padded_params[0]
    flat_p, d1_p = w1_p.shape
    out_p = padded_params[-1][0].shape[1]      # padded final width (>=128, lane-dense)

    batch_p = _round_up(max(batch, tile_b), tile_b)
    nb = batch_p // tile_b
    nk = flat_p // tile_k

    aligned = (batch_p == batch) and (flat == flat_p)
    if aligned:
        x_in = x_flat                          # f32 straight from HBM; cast in-kernel
    else:
        x_in = jnp.zeros((batch_p, flat_p), jnp.bfloat16)
        x_in = x_in.at[:batch, :flat].set(x_flat.astype(jnp.bfloat16))

    resident_idx = lambda i, k: (0, 0)
    if resident_bufs == 1:
        def resident_spec(shape):
            return pl.BlockSpec(shape, resident_idx, pipeline_mode=pl.Buffered(1))
    else:
        def resident_spec(shape):
            return pl.BlockSpec(shape, resident_idx)

    flat_args = [x_in, w1_p, b1_p]
    in_specs = [
        pl.BlockSpec((tile_b, tile_k), lambda i, k: (i, k)),   # x tile
        pl.BlockSpec((tile_k, d1_p), lambda i, k: (k, 0)),     # W1 K-slice
        resident_spec(b1_p.shape),                             # b1 (resident)
    ]
    for (w, b) in padded_params[1:]:
        flat_args += [w, b]
        in_specs += [resident_spec(w.shape), resident_spec(b.shape)]

    out_spec = pl.BlockSpec((tile_b, out_p), lambda i, k: (i, 0))

    # Advisory cost estimate (real HBM footprint: W1 re-streamed once per batch tile).
    flops = 2 * batch_p * sum(int(w.shape[0]) * int(w.shape[1])
                              for w, _ in padded_params)
    bytes_accessed = (int(x_in.size) * int(x_in.dtype.itemsize)
                      + nb * int(w1_p.size) * 2
                      + int(b1_p.size) * 4
                      + sum(int(w.size) * 2 + int(b.size) * 4
                            for w, b in padded_params[1:])
                      + batch_p * int(out_p) * 4)

    out_padded = pl.pallas_call(
        mlp_kernel,
        out_shape=jax.ShapeDtypeStruct((batch_p, out_p), jnp.float32),
        grid_spec=pltpu.PrefetchScalarGridSpec(
            num_scalar_prefetch=0,
            grid=(nb, nk),
            in_specs=in_specs,
            out_specs=out_spec,
            scratch_shapes=[pltpu.VMEM((tile_b, d1_p), jnp.float32)],
        ),
        compiler_params=pltpu.CompilerParams(
            dimension_semantics=("parallel", "arbitrary"),
            vmem_limit_bytes=vmem_limit,
        ),
        cost_estimate=pl.CostEstimate(flops=flops, transcendentals=0,
                                      bytes_accessed=bytes_accessed),
    )(*flat_args)

    return out_padded[:batch, :1]


_mlp_forward_jit = jax.jit(_mlp_forward, static_argnums=2)


def mlp_regressor_forward(x, padded_params):
    """x: (batch, n_channels, sample_length) f32 -> (batch, 1) f32."""
    batch = int(x.shape[0])
    flat = int(math.prod(x.shape[1:]))
    policy = _resolve_policy(batch, flat, padded_params)
    return _mlp_forward_jit(x, padded_params, policy)


def reference_forward(x, params):
    """Pure-JAX reference matching the kernel's precision (bf16 ops, f32 accum)."""
    h = x.reshape(x.shape[0], -1).astype(jnp.bfloat16)
    for i, (w, b) in enumerate(params):
        h = jnp.dot(h, w.astype(jnp.bfloat16),
                    preferred_element_type=jnp.float32) + b
        if i < len(params) - 1:
            h = jnp.maximum(h, 0.0).astype(jnp.bfloat16)
    return h


if __name__ == "__main__":
    # Small but valid config: flattened_length must be divisible by 256.
    n_channels = 8
    sample_length = 256
    batch = 2

    key = jax.random.PRNGKey(0)
    key, kx = jax.random.split(key)
    x = jax.random.normal(kx, (batch, n_channels, sample_length), dtype=jnp.float32)

    params = init_params(key, n_channels, sample_length)
    padded_params = pad_params(params)

    out = mlp_regressor_forward(x, padded_params)
    out = jax.block_until_ready(out)

    ref = reference_forward(x, params)
    assert out.shape == (batch, 1), out.shape
    assert jnp.allclose(out, ref, atol=2e-2, rtol=2e-2), (out, ref)

    print("KERNEL_OK")
</pallas_src>

<mosaic_0001>
module attributes {stable_mosaic.version = 11 : i64} {
  func.func @_probe_kernel(%arg0: i32, %arg1: memref<8x128xf32, #tpu.memory_space<vmem>>, %arg2: memref<8x128xf32, #tpu.memory_space<vmem>>) attributes {dimension_semantics = [#tpu.dimension_semantics<arbitrary>], iteration_bounds = array<i64: 2>, scalar_prefetch = 0 : i64, scratch_operands = 0 : i64, tpu.core_type = #tpu.core_type<tc>, window_params = [{pipeline_mode = #tpu.pipeline_mode<synchronous>, transform_indices = @transform_0, window_bounds = array<i64: 8, 128>}, {transform_indices = @transform_1, window_bounds = array<i64: 8, 128>}]} {
    %c0 = arith.constant 0 : index
    %c0_0 = arith.constant 0 : index
    %0 = vector.load %arg1[%c0, %c0_0] : memref<8x128xf32, #tpu.memory_space<vmem>>, vector<8x128xf32>
    %cst = arith.constant 1.000000e+00 : f32
    %1 = vector.broadcast %cst : f32 to vector<8x128xf32>
    %2 = arith.addf %0, %1 : vector<8x128xf32>
    %c0_1 = arith.constant 0 : index
    %c0_2 = arith.constant 0 : index
    %3 = vector.load %arg2[%c0_1, %c0_2] : memref<8x128xf32, #tpu.memory_space<vmem>>, vector<8x128xf32>
    tpu.vector_store %arg2[%c0_1, %c0_2], %2 {strides = array<i32>} : memref<8x128xf32, #tpu.memory_space<vmem>>, vector<8x128xf32>,
    return
  }
  func.func @transform_0(%arg0: i32) -> (i32, i32) {
    %c0_i32 = arith.constant 0 : i32
    %c0_i32_0 = arith.constant 0 : i32
    %c0_i32_1 = arith.constant 0 : i32
    return %c0_i32, %c0_i32_0 : i32, i32
  }
  func.func @transform_1(%arg0: i32) -> (i32, i32) {
    %c0_i32 = arith.constant 0 : i32
    %c0_i32_0 = arith.constant 0 : i32
    return %arg0, %c0_i32 : i32, i32
  }
}

module attributes {stable_mosaic.version = 11 : i64} {
  func.func @mlp_kernel(%arg0: i32, %arg1: i32, %arg2: memref<64x2048xbf16, #tpu.memory_space<vmem>>, %arg3: memref<2048x512xbf16, #tpu.memory_space<vmem>>, %arg4: memref<1x512xf32, #tpu.memory_space<vmem>>, %arg5: memref<512x128xbf16, #tpu.memory_space<vmem>>, %arg6: memref<1x128xf32, #tpu.memory_space<vmem>>, %arg7: memref<128x128xbf16, #tpu.memory_space<vmem>>, %arg8: memref<1x128xf32, #tpu.memory_space<vmem>>, %arg9: memref<128x128xbf16, #tpu.memory_space<vmem>>, %arg10: memref<1x128xf32, #tpu.memory_space<vmem>>, %arg11: memref<128x128xbf16, #tpu.memory_space<vmem>>, %arg12: memref<1x128xf32, #tpu.memory_space<vmem>>, %arg13: memref<128x128xbf16, #tpu.memory_space<vmem>>, %arg14: memref<1x128xf32, #tpu.memory_space<vmem>>, %arg15: memref<128x128xbf16, #tpu.memory_space<vmem>>, %arg16: memref<1x128xf32, #tpu.memory_space<vmem>>, %arg17: memref<64x128xf32, #tpu.memory_space<vmem>>, %arg18: memref<64x512xf32, #tpu.memory_space<vmem>>) attributes {dimension_semantics = [#tpu.dimension_semantics<parallel>, #tpu.dimension_semantics<arbitrary>], iteration_bounds = array<i64: 1, 1>, scalar_prefetch = 0 : i64, scratch_operands = 1 : i64, tpu.core_type = #tpu.core_type<tc>, window_params = [{transform_indices = @transform_0, window_bounds = array<i64: 64, 2048>}, {transform_indices = @transform_1, window_bounds = array<i64: 2048, 512>}, {pipeline_mode = #tpu.pipeline_mode<synchronous>, transform_indices = @transform_2, window_bounds = array<i64: 1, 512>}, {pipeline_mode = #tpu.pipeline_mode<synchronous>, transform_indices = @transform_3, window_bounds = array<i64: 512, 128>}, {pipeline_mode = #tpu.pipeline_mode<synchronous>, transform_indices = @transform_4, window_bounds = array<i64: 1, 128>}, {pipeline_mode = #tpu.pipeline_mode<synchronous>, transform_indices = @transform_5, window_bounds = array<i64: 128, 128>}, {pipeline_mode = #tpu.pipeline_mode<synchronous>, transform_indices = @transform_6, window_bounds = array<i64: 1, 128>}, {pipeline_mode = #tpu.pipeline_mode<synchronous>, transform_indices = @transform_7, window_bounds = array<i64: 128, 128>}, {pipeline_mode = #tpu.pipeline_mode<synchronous>, transform_indices = @transform_8, window_bounds = array<i64: 1, 128>}, {pipeline_mode = #tpu.pipeline_mode<synchronous>, transform_indices = @transform_9, window_bounds = array<i64: 128, 128>}, {pipeline_mode = #tpu.pipeline_mode<synchronous>, transform_indices = @transform_10, window_bounds = array<i64: 1, 128>}, {pipeline_mode = #tpu.pipeline_mode<synchronous>, transform_indices = @transform_11, window_bounds = array<i64: 128, 128>}, {pipeline_mode = #tpu.pipeline_mode<synchronous>, transform_indices = @transform_12, window_bounds = array<i64: 1, 128>}, {pipeline_mode = #tpu.pipeline_mode<synchronous>, transform_indices = @transform_13, window_bounds = array<i64: 128, 128>}, {pipeline_mode = #tpu.pipeline_mode<synchronous>, transform_indices = @transform_14, window_bounds = array<i64: 1, 128>}, {transform_indices = @transform_15, window_bounds = array<i64: 64, 128>}]} {
    %c0_i32 = arith.constant 0 : i32
    %0 = arith.cmpi eq, %arg1, %c0_i32 : i32
    %1 = arith.extui %0 : i1 to i32
    %c0_i32_0 = arith.constant 0 : i32
    %2 = arith.cmpi ne, %1, %c0_i32_0 : i32
    scf.if %2 {
      %c0_10 = arith.constant 0 : index
      %c0_11 = arith.constant 0 : index
      %12 = vector.load %arg4[%c0_10, %c0_11] : memref<1x512xf32, #tpu.memory_space<vmem>>, vector<1x512xf32>
      %13 = vector.shape_cast %12 : vector<1x512xf32> to vector<1x512xf32>
      %14 = vector.broadcast %13 : vector<1x512xf32> to vector<64x512xf32>
      %c0_12 = arith.constant 0 : index
      %c0_13 = arith.constant 0 : index
      %15 = vector.load %arg18[%c0_12, %c0_13] : memref<64x512xf32, #tpu.memory_space<vmem>>, vector<64x512xf32>
      tpu.vector_store %arg18[%c0_12, %c0_13], %14 {strides = array<i32>} : memref<64x512xf32, #tpu.memory_space<vmem>>, vector<64x512xf32>,
    } else {
    }
    %c0 = arith.constant 0 : index
    %c0_1 = arith.constant 0 : index
    %3 = vector.load %arg2[%c0, %c0_1] : memref<64x2048xbf16, #tpu.memory_space<vmem>>, vector<64x2048xbf16>
    %c0_2 = arith.constant 0 : index
    %c0_3 = arith.constant 0 : index
    %4 = vector.load %arg18[%c0_2, %c0_3] : memref<64x512xf32, #tpu.memory_space<vmem>>, vector<64x512xf32>
    %c0_4 = arith.constant 0 : index
    %c0_5 = arith.constant 0 : index
    %5 = vector.load %arg3[%c0_4, %c0_5] : memref<2048x512xbf16, #tpu.memory_space<vmem>>, vector<2048x512xbf16>
    %cst = arith.constant dense<0.000000e+00> : vector<64x512xf32>
    %6 = tpu.matmul %3, %5, %cst {dimension_numbers = #tpu.dot_dimension_numbers<[1], [0], [0], [1], [0, 0, 1, 1], [], []>} : vector<64x2048xbf16>, vector<2048x512xbf16>, vector<64x512xf32> -> vector<64x512xf32>
    %7 = arith.addf %4, %6 : vector<64x512xf32>
    %c0_6 = arith.constant 0 : index
    %c0_7 = arith.constant 0 : index
    %8 = vector.load %arg18[%c0_6, %c0_7] : memref<64x512xf32, #tpu.memory_space<vmem>>, vector<64x512xf32>
    tpu.vector_store %arg18[%c0_6, %c0_7], %7 {strides = array<i32>} : memref<64x512xf32, #tpu.memory_space<vmem>>, vector<64x512xf32>,
    %c0_i32_8 = arith.constant 0 : i32
    %9 = arith.cmpi eq, %arg1, %c0_i32_8 : i32
    %10 = arith.extui %9 : i1 to i32
    %c0_i32_9 = arith.constant 0 : i32
    %11 = arith.cmpi ne, %10, %c0_i32_9 : i32
    scf.if %11 {
      %c0_10 = arith.constant 0 : index
      %c0_11 = arith.constant 0 : index
      %12 = vector.load %arg18[%c0_10, %c0_11] : memref<64x512xf32, #tpu.memory_space<vmem>>, vector<64x512xf32>
      %cst_12 = arith.constant 0.000000e+00 : f32
      %13 = vector.broadcast %cst_12 : f32 to vector<64x512xf32>
      %14 = arith.maximumf %12, %13 : vector<64x512xf32>
      %15 = arith.truncf %14 : vector<64x512xf32> to vector<64x512xbf16>
      %c0_13 = arith.constant 0 : index
      %c0_14 = arith.constant 0 : index
      %16 = vector.load %arg5[%c0_13, %c0_14] : memref<512x128xbf16, #tpu.memory_space<vmem>>, vector<512x128xbf16>
      %cst_15 = arith.constant dense<0.000000e+00> : vector<64x128xf32>
      %17 = tpu.matmul %15, %16, %cst_15 {dimension_numbers = #tpu.dot_dimension_numbers<[1], [0], [0], [1], [0, 0, 1, 1], [], []>} : vector<64x512xbf16>, vector<512x128xbf16>, vector<64x128xf32> -> vector<64x128xf32>
      %c0_16 = arith.constant 0 : index
      %c0_17 = arith.constant 0 : index
      %18 = vector.load %arg6[%c0_16, %c0_17] : memref<1x128xf32, #tpu.memory_space<vmem>>, vector<1x128xf32>
      %19 = vector.broadcast %18 : vector<1x128xf32> to vector<64x128xf32>
      %20 = arith.addf %17, %19 : vector<64x128xf32>
      %cst_18 = arith.constant 0.000000e+00 : f32
      %21 = vector.broadcast %cst_18 : f32 to vector<64x128xf32>
      %22 = arith.maximumf %20, %21 : vector<64x128xf32>
      %23 = arith.truncf %22 : vector<64x128xf32> to vector<64x128xbf16>
      %c0_19 = arith.constant 0 : index
      %c0_20 = arith.constant 0 : index
      %24 = vector.load %arg7[%c0_19, %c0_20] : memref<128x128xbf16, #tpu.memory_space<vmem>>, vector<128x128xbf16>
      %cst_21 = arith.constant dense<0.000000e+00> : vector<64x128xf32>
      %25 = tpu.matmul %23, %24, %cst_21 {dimension_numbers = #tpu.dot_dimension_numbers<[1], [0], [0], [1], [0, 0, 1, 1], [], []>} : vector<64x128xbf16>, vector<128x128xbf16>, vector<64x128xf32> -> vector<64x128xf32>
      %c0_22 = arith.constant 0 : index
      %c0_23 = arith.constant 0 : index
      %26 = vector.load %arg8[%c0_22, %c0_23] : memref<1x128xf32, #tpu.memory_space<vmem>>, vector<1x128xf32>
      %27 = vector.broadcast %26 : vector<1x128xf32> to vector<64x128xf32>
      %28 = arith.addf %25, %27 : vector<64x128xf32>
      %cst_24 = arith.constant 0.000000e+00 : f32
      %29 = vector.broadcast %cst_24 : f32 to vector<64x128xf32>
      %30 = arith.maximumf %28, %29 : vector<64x128xf32>
      %31 = arith.truncf %30 : vector<64x128xf32> to vector<64x128xbf16>
      %c0_25 = arith.constant 0 : index
      %c0_26 = arith.constant 0 : index
      %32 = vector.load %arg9[%c0_25, %c0_26] : memref<128x128xbf16, #tpu.memory_space<vmem>>, vector<128x128xbf16>
      %cst_27 = arith.constant dense<0.000000e+00> : vector<64x128xf32>
      %33 = tpu.matmul %31, %32, %cst_27 {dimension_numbers = #tpu.dot_dimension_numbers<[1], [0], [0], [1], [0, 0, 1, 1], [], []>} : vector<64x128xbf16>, vector<128x128xbf16>, vector<64x128xf32> -> vector<64x128xf32>
      %c0_28 = arith.constant 0 : index
      %c0_29 = arith.constant 0 : index
      %34 = vector.load %arg10[%c0_28, %c0_29] : memref<1x128xf32, #tpu.memory_space<vmem>>, vector<1x128xf32>
      %35 = vector.broadcast %34 : vector<1x128xf32> to vector<64x128xf32>
      %36 = arith.addf %33, %35 : vector<64x128xf32>
      %cst_30 = arith.constant 0.000000e+00 : f32
      %37 = vector.broadcast %cst_30 : f32 to vector<64x128xf32>
      %38 = arith.maximumf %36, %37 : vector<64x128xf32>
      %39 = arith.truncf %38 : vector<64x128xf32> to vector<64x128xbf16>
      %c0_31 = arith.constant 0 : index
      %c0_32 = arith.constant 0 : index
      %40 = vector.load %arg11[%c0_31, %c0_32] : memref<128x128xbf16, #tpu.memory_space<vmem>>, vector<128x128xbf16>
      %cst_33 = arith.constant dense<0.000000e+00> : vector<64x128xf32>
      %41 = tpu.matmul %39, %40, %cst_33 {dimension_numbers = #tpu.dot_dimension_numbers<[1], [0], [0], [1], [0, 0, 1, 1], [], []>} : vector<64x128xbf16>, vector<128x128xbf16>, vector<64x128xf32> -> vector<64x128xf32>
      %c0_34 = arith.constant 0 : index
      %c0_35 = arith.constant 0 : index
      %42 = vector.load %arg12[%c0_34, %c0_35] : memref<1x128xf32, #tpu.memory_space<vmem>>, vector<1x128xf32>
      %43 = vector.broadcast %42 : vector<1x128xf32> to vector<64x128xf32>
      %44 = arith.addf %41, %43 : vector<64x128xf32>
      %cst_36 = arith.constant 0.000000e+00 : f32
      %45 = vector.broadcast %cst_36 : f32 to vector<64x128xf32>
      %46 = arith.maximumf %44, %45 : vector<64x128xf32>
      %47 = arith.truncf %46 : vector<64x128xf32> to vector<64x128xbf16>
      %c0_37 = arith.constant 0 : index
      %c0_38 = arith.constant 0 : index
      %48 = vector.load %arg13[%c0_37, %c0_38] : memref<128x128xbf16, #tpu.memory_space<vmem>>, vector<128x128xbf16>
      %cst_39 = arith.constant dense<0.000000e+00> : vector<64x128xf32>
      %49 = tpu.matmul %47, %48, %cst_39 {dimension_numbers = #tpu.dot_dimension_numbers<[1], [0], [0], [1], [0, 0, 1, 1], [], []>} : vector<64x128xbf16>, vector<128x128xbf16>, vector<64x128xf32> -> vector<64x128xf32>
      %c0_40 = arith.constant 0 : index
      %c0_41 = arith.constant 0 : index
      %50 = vector.load %arg14[%c0_40, %c0_41] : memref<1x128xf32, #tpu.memory_space<vmem>>, vector<1x128xf32>
      %51 = vector.broadcast %50 : vector<1x128xf32> to vector<64x128xf32>
      %52 = arith.addf %49, %51 : vector<64x128xf32>
      %cst_42 = arith.constant 0.000000e+00 : f32
      %53 = vector.broadcast %cst_42 : f32 to vector<64x128xf32>
      %54 = arith.maximumf %52, %53 : vector<64x128xf32>
      %55 = arith.truncf %54 : vector<64x128xf32> to vector<64x128xbf16>
      %c0_43 = arith.constant 0 : index
      %c0_44 = arith.constant 0 : index
      %56 = vector.load %arg15[%c0_43, %c0_44] : memref<128x128xbf16, #tpu.memory_space<vmem>>, vector<128x128xbf16>
      %cst_45 = arith.constant dense<0.000000e+00> : vector<64x128xf32>
      %57 = tpu.matmul %55, %56, %cst_45 {dimension_numbers = #tpu.dot_dimension_numbers<[1], [0], [0], [1], [0, 0, 1, 1], [], []>} : vector<64x128xbf16>, vector<128x128xbf16>, vector<64x128xf32> -> vector<64x128xf32>
      %c0_46 = arith.constant 0 : index
      %c0_47 = arith.constant 0 : index
      %58 = vector.load %arg16[%c0_46, %c0_47] : memref<1x128xf32, #tpu.memory_space<vmem>>, vector<1x128xf32>
      %59 = vector.broadcast %58 : vector<1x128xf32> to vector<64x128xf32>
      %60 = arith.addf %57, %59 : vector<64x128xf32>
      %c0_48 = arith.constant 0 : index
      %c0_49 = arith.constant 0 : index
      %61 = vector.load %arg17[%c0_48, %c0_49] : memref<64x128xf32, #tpu.memory_space<vmem>>, vector<64x128xf32>
      tpu.vector_store %arg17[%c0_48, %c0_49], %60 {strides = array<i32>} : memref<64x128xf32, #tpu.memory_space<vmem>>, vector<64x128xf32>,
    } else {
    }
    return
  }
  func.func @transform_0(%arg0: i32, %arg1: i32) -> (i32, i32) {
    %c0_i32 = arith.constant 0 : i32
    return %arg0, %arg1 : i32, i32
  }
  func.func @transform_1(%arg0: i32, %arg1: i32) -> (i32, i32) {
    %c0_i32 = arith.constant 0 : i32
    %c0_i32_0 = arith.constant 0 : i32
    return %arg1, %c0_i32 : i32, i32
  }
  func.func @transform_2(%arg0: i32, %arg1: i32) -> (i32, i32) {
    %c0_i32 = arith.constant 0 : i32
    %c0_i32_0 = arith.constant 0 : i32
    %c0_i32_1 = arith.constant 0 : i32
    return %c0_i32, %c0_i32_0 : i32, i32
  }
  func.func @transform_3(%arg0: i32, %arg1: i32) -> (i32, i32) {
    %c0_i32 = arith.constant 0 : i32
    %c0_i32_0 = arith.constant 0 : i32
    %c0_i32_1 = arith.constant 0 : i32
    return %c0_i32, %c0_i32_0 : i32, i32
  }
  func.func @transform_4(%arg0: i32, %arg1: i32) -> (i32, i32) {
    %c0_i32 = arith.constant 0 : i32
    %c0_i32_0 = arith.constant 0 : i32
    %c0_i32_1 = arith.constant 0 : i32
    return %c0_i32, %c0_i32_0 : i32, i32
  }
  func.func @transform_5(%arg0: i32, %arg1: i32) -> (i32, i32) {
    %c0_i32 = arith.constant 0 : i32
    %c0_i32_0 = arith.constant 0 : i32
    %c0_i32_1 = arith.constant 0 : i32
    return %c0_i32, %c0_i32_0 : i32, i32
  }
  func.func @transform_6(%arg0: i32, %arg1: i32) -> (i32, i32) {
    %c0_i32 = arith.constant 0 : i32
    %c0_i32_0 = arith.constant 0 : i32
    %c0_i32_1 = arith.constant 0 : i32
    return %c0_i32, %c0_i32_0 : i32, i32
  }
  func.func @transform_7(%arg0: i32, %arg1: i32) -> (i32, i32) {
    %c0_i32 = arith.constant 0 : i32
    %c0_i32_0 = arith.constant 0 : i32
    %c0_i32_1 = arith.constant 0 : i32
    return %c0_i32, %c0_i32_0 : i32, i32
  }
  func.func @transform_8(%arg0: i32, %arg1: i32) -> (i32, i32) {
    %c0_i32 = arith.constant 0 : i32
    %c0_i32_0 = arith.constant 0 : i32
    %c0_i32_1 = arith.constant 0 : i32
    return %c0_i32, %c0_i32_0 : i32, i32
  }
  func.func @transform_9(%arg0: i32, %arg1: i32) -> (i32, i32) {
    %c0_i32 = arith.constant 0 : i32
    %c0_i32_0 = arith.constant 0 : i32
    %c0_i32_1 = arith.constant 0 : i32
    return %c0_i32, %c0_i32_0 : i32, i32
  }
  func.func @transform_10(%arg0: i32, %arg1: i32) -> (i32, i32) {
    %c0_i32 = arith.constant 0 : i32
    %c0_i32_0 = arith.constant 0 : i32
    %c0_i32_1 = arith.constant 0 : i32
    return %c0_i32, %c0_i32_0 : i32, i32
  }
  func.func @transform_11(%arg0: i32, %arg1: i32) -> (i32, i32) {
    %c0_i32 = arith.constant 0 : i32
    %c0_i32_0 = arith.constant 0 : i32
    %c0_i32_1 = arith.constant 0 : i32
    return %c0_i32, %c0_i32_0 : i32, i32
  }
  func.func @transform_12(%arg0: i32, %arg1: i32) -> (i32, i32) {
    %c0_i32 = arith.constant 0 : i32
    %c0_i32_0 = arith.constant 0 : i32
    %c0_i32_1 = arith.constant 0 : i32
    return %c0_i32, %c0_i32_0 : i32, i32
  }
  func.func @transform_13(%arg0: i32, %arg1: i32) -> (i32, i32) {
    %c0_i32 = arith.constant 0 : i32
    %c0_i32_0 = arith.constant 0 : i32
    %c0_i32_1 = arith.constant 0 : i32
    return %c0_i32, %c0_i32_0 : i32, i32
  }
  func.func @transform_14(%arg0: i32, %arg1: i32) -> (i32, i32) {
    %c0_i32 = arith.constant 0 : i32
    %c0_i32_0 = arith.constant 0 : i32
    %c0_i32_1 = arith.constant 0 : i32
    return %c0_i32, %c0_i32_0 : i32, i32
  }
  func.func @transform_15(%arg0: i32, %arg1: i32) -> (i32, i32) {
    %c0_i32 = arith.constant 0 : i32
    %c0_i32_0 = arith.constant 0 : i32
    return %arg0, %c0_i32 : i32, i32
  }
}

</mosaic_0001>

<llo_original>
// kernel: tpu_custom_call.1
$region0: #{tpu_custom_call.1}
  #allocation0 [shape = 'u32[]', space=smem, size = 0x4, offset = 0x4, fixed_abs, tag = 'smem constant byte address 0x4 - core index']
  #allocation1 [shape = 'u32[144,128]{1,0:T(1,128)}', space=vmem, size = 0x12000, scoped, tag = 'internal scratch']
  %s0 = inlined_call_operand.hbm [shape: f32[8,128], index: 0, kind: input, shape index: {}]
  %s1 = inlined_call_operand.hbm [shape: f32[16,128], index: 1, kind: output, shape index: {}]
  %s2 = sld [smem:[#allocation0]]
  $region41: #{tpu_custom_call.1} parent=0
    _
  %s4 = ssub.s32 1, %s2
  %s5 = scalar_select 0, %s4, %s2
  $region1: #{tpu_custom_call.1} parent=0
    #allocation2 [shape = 'u8[4096]{0}', space=vmem, size = 0x1000, scoped, tag = 'input window, operand 0, single buffered']
    #allocation3 [shape = 's32[2]{0}', space=sflag, size = 0x8, scoped, tag = 'scoped memory for tpu_custom_call.1']
    #allocation4 [shape = 's32[2]{0}', space=sflag, size = 0x8, scoped, tag = 'scoped memory for tpu_custom_call.1']
    #allocation5 [shape = 'u8[8192]{0}', space=vmem, size = 0x2000, scoped, tag = 'output window, operand 0']
    %6 = vsyncpa [#allocation3], 0
    %7 = vsyncpa [#allocation4], 0
    %s8 = scalar_lea.sflag [#allocation4], 1
    %9 = vsyncpa %s8, 0
    loop: start=0, step=1, limit=4
    $region2: #{tpu_custom_call.1} parent=1 // loop_pre_header
      _
    $region3: #{tpu_custom_call.1} parent=1 // loop_header
      %s11 = sphi 0, %s15
      %p12 = scmp.ge.s32.totalorder %s11, 4
      %s19 = sphi 0, %s19
      %s21 = sphi 0, %s19
      %s22 = sphi 0, %s21
      %s36 = sphi 0, %s22
      %s42 = sphi 0, %s44
      %s45 = sphi 0, %s42
      %s46 = sphi 0, %s45
      %s62 = sphi 0, %s46
    $region4: #{tpu_custom_call.1} parent=1 // loop_header_branch
      %14 = sbr.rel (%p12) target = $region8
    $region5: #{tpu_custom_call.1} parent=1 // loop_body
      %s16 = ssub.s32 %s11, 1
      %s17 = ssub.s32 %s11, 2
      %s18 = sadd.s32 %s11, 1
      %s20 = sadd.s32 %s19, 1
      %p23 = scmp.eq.s32.totalorder %s11, 1
      %p24 = scmp.ne.s32.totalorder %s19, %s21
      %p25 = scmp.eq.s32.totalorder %s11, 0
      %p26 = por %p24, %p25
      %p27 = scmp.ne.s32.totalorder %s19, %s21
      %p28 = scmp.eq.s32.totalorder %s16, 1
      %p29 = por %p27, %p28
      %p30 = scmp.ne.s32.totalorder %s21, %s22
      %p31 = scmp.eq.s32.totalorder %s16, 0
      %p32 = por %p30, %p31
      %p33 = scmp.ne.s32.totalorder %s21, %s22
      %p34 = scmp.eq.s32.totalorder %s17, 1
      %p35 = por %p33, %p34
      %p37 = scmp.ne.s32.totalorder %s22, %s36
      %p38 = scmp.eq.s32.totalorder %s17, 0
      %p39 = por %p37, %p38
      %s40 = ssub.s32 %s11, %s18
      %p41 = scmp.eq.s32.totalorder %s40, 0
      %s43 = sadd.s32 %s42, 1
      %s44 = scalar_select %p41, %s42, %s43
      %p47 = pneg %p41
      %p48 = scmp.eq.s32.totalorder %s11, 1
      %p49 = por %p47, %p48
      %p50 = scmp.ne.s32.totalorder %s42, %s45
      %p51 = scmp.eq.s32.totalorder %s11, 0
      %p52 = por %p50, %p51
      %p53 = scmp.ne.s32.totalorder %s42, %s45
      %p54 = scmp.eq.s32.totalorder %s16, 1
      %p55 = por %p53, %p54
      %p56 = scmp.ne.s32.totalorder %s45, %s46
      %p57 = scmp.eq.s32.totalorder %s16, 0
      %p58 = por %p56, %p57
      %p59 = scmp.ne.s32.totalorder %s45, %s46
      %p60 = scmp.eq.s32.totalorder %s17, 1
      %p61 = por %p59, %p60
      %p63 = scmp.ne.s32.totalorder %s46, %s62
      %p64 = scmp.eq.s32.totalorder %s17, 0
      %p65 = por %p63, %p64
      %p66 = scmp.le.s32.totalorder 1, %s11
      %p67 = scmp.lt.s32.totalorder %s11, 3
      %p68 = pnand %p66, %p67
      %p69 = pneg %p68
      // Predicated region
      $region9: #{tpu_custom_call.1} parent=5 // pred_check
        _
      $region10: #{tpu_custom_call.1} parent=5 // pred_check_branch
        %71 = sbr.rel (%p68) target = $region12
      $region11: #{tpu_custom_call.1} parent=5 // pred_region
        %s72 = ssub.s32 %s11, 1
        // Predicated region
        $region13: #{tpu_custom_call.1} parent=11 // pred_check
          %p73 = pneg %p32
        $region14: #{tpu_custom_call.1} parent=11 // pred_check_branch
          %75 = sbr.rel (%p73) target = $region16
        $region15: #{tpu_custom_call.1} parent=11 // pred_region
          %s77 = ssub.s32 128, 128
          %78 = vsyncadd [#allocation3], %s77
          %s80 = sshll.u32 [#allocation2], 4
          %s81 = int_to_ptr.vmem [resolvable:$true] %s80
          %83 = dma.hbm_to_vmem [thread:$0]  %s0, 128, %s81, [#allocation3]
        $region16: #{tpu_custom_call.1} parent=11 // pred_fallthru
          _
      $region12: #{tpu_custom_call.1} parent=5 // pred_fallthru
        _
      %p84 = scmp.lt.s32.totalorder %s11, 2
      // Predicated region
      $region17: #{tpu_custom_call.1} parent=5 // pred_check
        %p85 = pneg %p84
      $region18: #{tpu_custom_call.1} parent=5 // pred_check_branch
        %87 = sbr.rel (%p85) target = $region20
      $region19: #{tpu_custom_call.1} parent=5 // pred_region
        _
      $region20: #{tpu_custom_call.1} parent=5 // pred_fallthru
        _
      %p88 = scmp.le.s32.totalorder 1, %s11
      %p89 = scmp.lt.s32.totalorder %s11, 3
      %p90 = pnand %p88, %p89
      %p91 = pneg %p90
      // Predicated region
      $region21: #{tpu_custom_call.1} parent=5 // pred_check
        _
      $region22: #{tpu_custom_call.1} parent=5 // pred_check_branch
        %93 = sbr.rel (%p90) target = $region24
      $region23: #{tpu_custom_call.1} parent=5 // pred_region
        %s94 = ssub.s32 %s11, 1
        // Predicated region
        $region25: #{tpu_custom_call.1} parent=23 // pred_check
          %p95 = pneg %p32
        $region26: #{tpu_custom_call.1} parent=23 // pred_check_branch
          %97 = sbr.rel (%p95) target = $region28
        $region27: #{tpu_custom_call.1} parent=23 // pred_region
          %98 = dma.done [#allocation3], 128
        $region28: #{tpu_custom_call.1} parent=23 // pred_fallthru
          _
        %p99 = pneg %p32
        %p100 = pneg %p29
        %p101 = pneg %p58
        %p102 = pneg %p55
        %s103 = sand.u32 %s45, 1
        %s104 = scalar_lea.sflag [#allocation4], %s103
        %s105 = sand.u32 %s45, 1
        %s106 = smul.addr %s105, 8
        %s107 = scalar_lea.vmem [#allocation5], %s106
        %v108 = vld [vmem:[#allocation2] sm:$0xff]
        %v109 = vadd.f32 %v108, 1.0
        %110 = vst [vmem:[%s107] sm:$0xff] %v109
        %s111 = sand.u32 %s45, 1
        %s112 = scalar_lea.sflag [#allocation4], %s111
        %s113 = sand.u32 %s45, 1
        %s114 = smul.addr %s113, 8
        %s115 = scalar_lea.vmem [#allocation5], %s114
        // Predicated region
        $region29: #{tpu_custom_call.1} parent=23 // pred_check
          %p116 = pneg %p55
        $region30: #{tpu_custom_call.1} parent=23 // pred_check_branch
          %118 = sbr.rel (%p116) target = $region32
        $region31: #{tpu_custom_call.1} parent=23 // pred_region
          %s120 = ssub.s32 128, 128
          %121 = vsyncadd %s112, %s120
          %s122 = smul.addr %s16, 128
          %s123 = scalar_lea.hbm %s1, %s122
          %s125 = sshll.u32 %s115, 4
          %s126 = int_to_ptr.vmem [resolvable:$true] %s125
          %128 = dma.vmem_to_hbm [thread:$0]  %s126, 128, %s123, %s112
        $region32: #{tpu_custom_call.1} parent=23 // pred_fallthru
          _
      $region24: #{tpu_custom_call.1} parent=5 // pred_fallthru
        _
      %p129 = scmp.le.s32.totalorder 2, %s11
      // Predicated region
      $region33: #{tpu_custom_call.1} parent=5 // pred_check
        %p130 = pneg %p129
      $region34: #{tpu_custom_call.1} parent=5 // pred_check_branch
        %132 = sbr.rel (%p130) target = $region36
      $region35: #{tpu_custom_call.1} parent=5 // pred_region
        %s133 = ssub.s32 %s11, 2
        // Predicated region
        $region37: #{tpu_custom_call.1} parent=35 // pred_check
          %p134 = pneg %p61
        $region38: #{tpu_custom_call.1} parent=35 // pred_check_branch
          %136 = sbr.rel (%p134) target = $region40
        $region39: #{tpu_custom_call.1} parent=35 // pred_region
          %s137 = sand.u32 %s46, 1
          %s138 = scalar_lea.sflag [#allocation4], %s137
          %s139 = sand.u32 %s46, 1
          %s140 = smul.addr %s139, 8
          %s141 = scalar_lea.vmem [#allocation5], %s140
          %142 = dma.done %s138, 128
        $region40: #{tpu_custom_call.1} parent=35 // pred_fallthru
          _
      $region36: #{tpu_custom_call.1} parent=5 // pred_fallthru
        _
    $region6: #{tpu_custom_call.1} parent=1 // loop_footer
      %s15 = sadd.s32 1, %s11
    $region7: #{tpu_custom_call.1} parent=1 // loop_footer_branch
      %10 = sbr.rel target = $region3
    $region8: #{tpu_custom_call.1} parent=1 // loop_exit
      _
    %143 = vsyncpa [#allocation3], 1
    %s144 = scalar_lea.sflag [#allocation3], 1
    %145 = vsyncpa %s144, 1
    %146 = vsyncpa [#allocation4], 1
    %s147 = scalar_lea.sflag [#allocation4], 1
    %148 = vsyncpa %s147, 1

// kernel: _mlp_forward.1
$region0: #{_mlp_forward.1}
  #allocation0 [shape = 'u32[]', space=smem, size = 0x4, offset = 0x4, fixed_abs, tag = 'smem constant byte address 0x4 - core index']
  #allocation1 [shape = 'u32[144,128]{1,0:T(1,128)}', space=vmem, size = 0x12000, scoped, tag = 'internal scratch']
  #allocation2 [shape = 'f32[64,512]{1,0:T(8,128)}', space=vmem, size = 0x20000, scoped, tag = 'scratch operand']
  %s0 = inlined_call_operand.vmem [shape: bf16[64,2048], index: 0, kind: input, shape index: {}]
  %s1 = inlined_call_operand.hbm [shape: bf16[2048,512], index: 1, kind: input, shape index: {}]
  %s2 = inlined_call_operand.hbm [shape: f32[1,512], index: 2, kind: input, shape index: {}]
  %s3 = inlined_call_operand.hbm [shape: bf16[512,128], index: 3, kind: input, shape index: {}]
  %s4 = inlined_call_operand.hbm [shape: f32[1,128], index: 4, kind: input, shape index: {}]
  %s5 = inlined_call_operand.hbm [shape: bf16[128,128], index: 5, kind: input, shape index: {}]
  %s6 = inlined_call_operand.hbm [shape: f32[1,128], index: 6, kind: input, shape index: {}]
  %s7 = inlined_call_operand.hbm [shape: bf16[128,128], index: 7, kind: input, shape index: {}]
  %s8 = inlined_call_operand.hbm [shape: f32[1,128], index: 8, kind: input, shape index: {}]
  %s9 = inlined_call_operand.hbm [shape: bf16[128,128], index: 9, kind: input, shape index: {}]
  %s10 = inlined_call_operand.hbm [shape: f32[1,128], index: 10, kind: input, shape index: {}]
  %s11 = inlined_call_operand.hbm [shape: bf16[128,128], index: 11, kind: input, shape index: {}]
  %s12 = inlined_call_operand.hbm [shape: f32[1,128], index: 12, kind: input, shape index: {}]
  %s13 = inlined_call_operand.hbm [shape: bf16[128,128], index: 13, kind: input, shape index: {}]
  %s14 = inlined_call_operand.hbm [shape: f32[1,128], index: 14, kind: input, shape index: {}]
  %s15 = inlined_call_operand.vmem [shape: f32[64,128], index: 15, kind: output, shape index: {}]
  %s16 = sld [smem:[#allocation0]]
  $region134: #{_mlp_forward.1} parent=0
    _
  %s18 = ssub.s32 1, %s16
  %s19 = scalar_select 0, %s18, %s16
  $region1: #{_mlp_forward.1} parent=0
    #allocation3 [shape = 'u8[2097152]{0}', space=vmem, size = 0x200000, scoped, tag = 'input window, operand 1, single buffered']
    #allocation4 [shape = 's32[1]{0}', space=sflag, size = 0x4, scoped, tag = 'scoped memory for _mlp_forward.1']
    #allocation5 [shape = 'u8[2048]{0}', space=vmem, size = 0x800, scoped, tag = 'input window, operand 2, single buffered']
    #allocation6 [shape = 's32[1]{0}', space=sflag, size = 0x4, scoped, tag = 'scoped memory for _mlp_forward.1']
    #allocation7 [shape = 'u8[131072]{0}', space=vmem, size = 0x20000, scoped, tag = 'input window, operand 3, single buffered']
    #allocation8 [shape = 'u8[512]{0}', space=vmem, size = 0x400, scoped, tag = 'input window, operand 4, single buffered']
    #allocation9 [shape = 's32[1]{0}', space=sflag, size = 0x4, scoped, tag = 'scoped memory for _mlp_forward.1']
    #allocation10 [shape = 'u8[32768]{0}', space=vmem, size = 0x8000, scoped, tag = 'input window, operand 5, single buffered']
    #allocation11 [shape = 'u8[512]{0}', space=vmem, size = 0x400, scoped, tag = 'input window, operand 6, single buffered']
    #allocation12 [shape = 's32[1]{0}', space=sflag, size = 0x4, scoped, tag = 'scoped memory for _mlp_forward.1']
    #allocation13 [shape = 'u8[32768]{0}', space=vmem, size = 0x8000, scoped, tag = 'input window, operand 7, single buffered']
    #allocation14 [shape = 'u8[512]{0}', space=vmem, size = 0x400, scoped, tag = 'input window, operand 8, single buffered']
    #allocation15 [shape = 's32[1]{0}', space=sflag, size = 0x4, scoped, tag = 'scoped memory for _mlp_forward.1']
    #allocation16 [shape = 'u8[32768]{0}', space=vmem, size = 0x8000, scoped, tag = 'input window, operand 9, single buffered']
    #allocation17 [shape = 'u8[512]{0}', space=vmem, size = 0x400, scoped, tag = 'input window, operand 10, single buffered']
    #allocation18 [shape = 's32[1]{0}', space=sflag, size = 0x4, scoped, tag = 'scoped memory for _mlp_forward.1']
    #allocation19 [shape = 'u8[32768]{0}', space=vmem, size = 0x8000, scoped, tag = 'input window, operand 11, single buffered']
    #allocation20 [shape = 'u8[512]{0}', space=vmem, size = 0x400, scoped, tag = 'input window, operand 12, single buffered']
    #allocation21 [shape = 's32[1]{0}', space=sflag, size = 0x4, scoped, tag = 'scoped memory for _mlp_forward.1']
    #allocation22 [shape = 'u8[32768]{0}', space=vmem, size = 0x8000, scoped, tag = 'input window, operand 13, single buffered']
    #allocation23 [shape = 'u8[512]{0}', space=vmem, size = 0x400, scoped, tag = 'input window, operand 14, single buffered']
    #allocation24 [shape = 's32[1]{0}', space=sflag, size = 0x4, scoped, tag = 'scoped memory for _mlp_forward.1']
    %20 = vsyncpa [#allocation4], 0
    %21 = vsyncpa [#allocation6], 0
    %22 = vsyncpa [#allocation9], 0
    %23 = vsyncpa [#allocation12], 0
    %24 = vsyncpa [#allocation15], 0
    %25 = vsyncpa [#allocation18], 0
    %26 = vsyncpa [#allocation21], 0
    %27 = vsyncpa [#allocation24], 0
    // Predicated region
    $region2: #{_mlp_forward.1} parent=1 // pred_check
      _
    $region3: #{_mlp_forward.1} parent=1 // pred_check_branch
      %29 = sbr.rel (0) target = $region5
    $region4: #{_mlp_forward.1} parent=1 // pred_region
      _
    $region5: #{_mlp_forward.1} parent=1 // pred_fallthru
      _
    // Predicated region
    $region6: #{_mlp_forward.1} parent=1 // pred_check
      _
    $region7: #{_mlp_forward.1} parent=1 // pred_check_branch
      %31 = sbr.rel (0) target = $region9
    $region8: #{_mlp_forward.1} parent=1 // pred_region
      %s33 = ssub.s32 65536, 65536
      %34 = vsyncadd [#allocation4], %s33
      %s35 = sshll.u32 [#allocation3], 4
      %s36 = int_to_ptr.vmem [resolvable:$true] %s35
      %41 = dma.hbm_to_vmem [thread:$0]  %s1, 65536, %s36, [#allocation4], 256, 256, 16
    $region9: #{_mlp_forward.1} parent=1 // pred_fallthru
      _
    // Predicated region
    $region10: #{_mlp_forward.1} parent=1 // pred_check
      _
    $region11: #{_mlp_forward.1} parent=1 // pred_check_branch
      %43 = sbr.rel (0) target = $region13
    $region12: #{_mlp_forward.1} parent=1 // pred_region
      %s45 = ssub.s32 64, 64
      %46 = vsyncadd [#allocation6], %s45
      %s48 = sshll.u32 [#allocation5], 4
      %s49 = int_to_ptr.vmem [resolvable:$true] %s48
      %51 = dma.hbm_to_vmem [thread:$0]  %s2, 64, %s49, [#allocation6]
    $region13: #{_mlp_forward.1} parent=1 // pred_fallthru
      _
    // Predicated region
    $region14: #{_mlp_forward.1} parent=1 // pred_check
      _
    $region15: #{_mlp_forward.1} parent=1 // pred_check_branch
      %53 = sbr.rel (0) target = $region17
    $region16: #{_mlp_forward.1} parent=1 // pred_region
      %s55 = ssub.s32 4096, 4096
      %56 = vsyncadd [#allocation6], %s55
      %s57 = sshll.u32 [#allocation7], 4
      %s58 = int_to_ptr.vmem [resolvable:$true] %s57
      %63 = dma.hbm_to_vmem [thread:$0]  %s3, 4096, %s58, [#allocation6], 64, 64, 4
    $region17: #{_mlp_forward.1} parent=1 // pred_fallthru
      _
    // Predicated region
    $region18: #{_mlp_forward.1} parent=1 // pred_check
      _
    $region19: #{_mlp_forward.1} parent=1 // pred_check_branch
      %65 = sbr.rel (0) target = $region21
    $region20: #{_mlp_forward.1} parent=1 // pred_region
      %s67 = ssub.s32 16, 16
      %68 = vsyncadd [#allocation9], %s67
      %s70 = sshll.u32 [#allocation8], 4
      %s71 = int_to_ptr.vmem [resolvable:$true] %s70
      %73 = dma.hbm_to_vmem [thread:$0]  %s4, 16, %s71, [#allocation9]
    $region21: #{_mlp_forward.1} parent=1 // pred_fallthru
      _
    // Predicated region
    $region22: #{_mlp_forward.1} parent=1 // pred_check
      _
    $region23: #{_mlp_forward.1} parent=1 // pred_check_branch
      %75 = sbr.rel (0) target = $region25
    $region24: #{_mlp_forward.1} parent=1 // pred_region
      %s77 = ssub.s32 1024, 1024
      %78 = vsyncadd [#allocation9], %s77
      %s79 = sshll.u32 [#allocation10], 4
      %s80 = int_to_ptr.vmem [resolvable:$true] %s79
      %85 = dma.hbm_to_vmem [thread:$0]  %s5, 1024, %s80, [#allocation9], 64, 64, 4
    $region25: #{_mlp_forward.1} parent=1 // pred_fallthru
      _
    // Predicated region
    $region26: #{_mlp_forward.1} parent=1 // pred_check
      _
    $region27: #{_mlp_forward.1} parent=1 // pred_check_branch
      %87 = sbr.rel (0) target = $region29
    $region28: #{_mlp_forward.1} parent=1 // pred_region
      %s89 = ssub.s32 16, 16
      %90 = vsyncadd [#allocation12], %s89
      %s92 = sshll.u32 [#allocation11], 4
      %s93 = int_to_ptr.vmem [resolvable:$true] %s92
      %95 = dma.hbm_to_vmem [thread:$0]  %s6, 16, %s93, [#allocation12]
    $region29: #{_mlp_forward.1} parent=1 // pred_fallthru
      _
    // Predicated region
    $region30: #{_mlp_forward.1} parent=1 // pred_check
      _
    $region31: #{_mlp_forward.1} parent=1 // pred_check_branch
      %97 = sbr.rel (0) target = $region33
    $region32: #{_mlp_forward.1} parent=1 // pred_region
      %s99 = ssub.s32 1024, 1024
      %100 = vsyncadd [#allocation12], %s99
      %s101 = sshll.u32 [#allocation13], 4
      %s102 = int_to_ptr.vmem [resolvable:$true] %s101
      %107 = dma.hbm_to_vmem [thread:$0]  %s7, 1024, %s102, [#allocation12], 64, 64, 4
    $region33: #{_mlp_forward.1} parent=1 // pred_fallthru
      _
    // Predicated region
    $region34: #{_mlp_forward.1} parent=1 // pred_check
      _
    $region35: #{_mlp_forward.1} parent=1 // pred_check_branch
      %109 = sbr.rel (0) target = $region37
    $region36: #{_mlp_forward.1} parent=1 // pred_region
      %s111 = ssub.s32 16, 16
      %112 = vsyncadd [#allocation15], %s111
      %s114 = sshll.u32 [#allocation14], 4
      %s115 = int_to_ptr.vmem [resolvable:$true] %s114
      %117 = dma.hbm_to_vmem [thread:$0]  %s8, 16, %s115, [#allocation15]
    $region37: #{_mlp_forward.1} parent=1 // pred_fallthru
      _
    // Predicated region
    $region38: #{_mlp_forward.1} parent=1 // pred_check
      _
    $region39: #{_mlp_forward.1} parent=1 // pred_check_branch
      %119 = sbr.rel (0) target = $region41
    $region40: #{_mlp_forward.1} parent=1 // pred_region
      %s121 = ssub.s32 1024, 1024
      %122 = vsyncadd [#allocation15], %s121
      %s123 = sshll.u32 [#allocation16], 4
      %s124 = int_to_ptr.vmem [resolvable:$true] %s123
      %129 = dma.hbm_to_vmem [thread:$0]  %s9, 1024, %s124, [#allocation15], 64, 64, 4
    $region41: #{_mlp_forward.1} parent=1 // pred_fallthru
      _
    // Predicated region
    $region42: #{_mlp_forward.1} parent=1 // pred_check
      _
    $region43: #{_mlp_forward.1} parent=1 // pred_check_branch
      %131 = sbr.rel (0) target = $region45
    $region44: #{_mlp_forward.1} parent=1 // pred_region
      %s133 = ssub.s32 16, 16
      %134 = vsyncadd [#allocation18], %s133
      %s136 = sshll.u32 [#allocation17], 4
      %s137 = int_to_ptr.vmem [resolvable:$true] %s136
      %139 = dma.hbm_to_vmem [thread:$0]  %s10, 16, %s137, [#allocation18]
    $region45: #{_mlp_forward.1} parent=1 // pred_fallthru
      _
    // Predicated region
    $region46: #{_mlp_forward.1} parent=1 // pred_check
      _
    $region47: #{_mlp_forward.1} parent=1 // pred_check_branch
      %141 = sbr.rel (0) target = $region49
    $region48: #{_mlp_forward.1} parent=1 // pred_region
      %s143 = ssub.s32 1024, 1024
      %144 = vsyncadd [#allocation18], %s143
      %s145 = sshll.u32 [#allocation19], 4
      %s146 = int_to_ptr.vmem [resolvable:$true] %s145
      %151 = dma.hbm_to_vmem [thread:$0]  %s11, 1024, %s146, [#allocation18], 64, 64, 4
    $region49: #{_mlp_forward.1} parent=1 // pred_fallthru
      _
    // Predicated region
    $region50: #{_mlp_forward.1} parent=1 // pred_check
      _
    $region51: #{_mlp_forward.1} parent=1 // pred_check_branch
      %153 = sbr.rel (0) target = $region53
    $region52: #{_mlp_forward.1} parent=1 // pred_region
      %s155 = ssub.s32 16, 16
      %156 = vsyncadd [#allocation21], %s155
      %s158 = sshll.u32 [#allocation20], 4
      %s159 = int_to_ptr.vmem [resolvable:$true] %s158
      %161 = dma.hbm_to_vmem [thread:$0]  %s12, 16, %s159, [#allocation21]
    $region53: #{_mlp_forward.1} parent=1 // pred_fallthru
      _
    // Predicated region
    $region54: #{_mlp_forward.1} parent=1 // pred_check
      _
    $region55: #{_mlp_forward.1} parent=1 // pred_check_branch
      %163 = sbr.rel (0) target = $region57
    $region56: #{_mlp_forward.1} parent=1 // pred_region
      %s165 = ssub.s32 1024, 1024
      %166 = vsyncadd [#allocation21], %s165
      %s167 = sshll.u32 [#allocation22], 4
      %s168 = int_to_ptr.vmem [resolvable:$true] %s167
      %173 = dma.hbm_to_vmem [thread:$0]  %s13, 1024, %s168, [#allocation21], 64, 64, 4
    $region57: #{_mlp_forward.1} parent=1 // pred_fallthru
      _
    // Predicated region
    $region58: #{_mlp_forward.1} parent=1 // pred_check
      _
    $region59: #{_mlp_forward.1} parent=1 // pred_check_branch
      %175 = sbr.rel (0) target = $region61
    $region60: #{_mlp_forward.1} parent=1 // pred_region
      %s177 = ssub.s32 16, 16
      %178 = vsyncadd [#allocation24], %s177
      %s180 = sshll.u32 [#allocation23], 4
      %s181 = int_to_ptr.vmem [resolvable:$true] %s180
      %183 = dma.hbm_to_vmem [thread:$0]  %s14, 16, %s181, [#allocation24]
    $region61: #{_mlp_forward.1} parent=1 // pred_fallthru
      _
    // Predicated region
    $region62: #{_mlp_forward.1} parent=1 // pred_check
      _
    $region63: #{_mlp_forward.1} parent=1 // pred_check_branch
      %185 = sbr.rel (0) target = $region65
    $region64: #{_mlp_forward.1} parent=1 // pred_region
      %186 = dma.done [#allocation4], 65536
    $region65: #{_mlp_forward.1} parent=1 // pred_fallthru
      _
    // Predicated region
    $region66: #{_mlp_forward.1} parent=1 // pred_check
      _
    $region67: #{_mlp_forward.1} parent=1 // pred_check_branch
      %188 = sbr.rel (0) target = $region69
    $region68: #{_mlp_forward.1} parent=1 // pred_region
      %189 = dma.done [#allocation6], 64
    $region69: #{_mlp_forward.1} parent=1 // pred_fallthru
      _
    // Predicated region
    $region70: #{_mlp_forward.1} parent=1 // pred_check
      _
    $region71: #{_mlp_forward.1} parent=1 // pred_check_branch
      %191 = sbr.rel (0) target = $region73
    $region72: #{_mlp_forward.1} parent=1 // pred_region
      %192 = dma.done [#allocation6], 4096
    $region73: #{_mlp_forward.1} parent=1 // pred_fallthru
      _
    // Predicated region
    $region74: #{_mlp_forward.1} parent=1 // pred_check
      _
    $region75: #{_mlp_forward.1} parent=1 // pred_check_branch
      %194 = sbr.rel (0) target = $region77
    $region76: #{_mlp_forward.1} parent=1 // pred_region
      %195 = dma.done [#allocation9], 16
    $region77: #{_mlp_forward.1} parent=1 // pred_fallthru
      _
    // Predicated region
    $region78: #{_mlp_forward.1} parent=1 // pred_check
      _
    $region79: #{_mlp_forward.1} parent=1 // pred_check_branch
      %197 = sbr.rel (0) target = $region81
    $region80: #{_mlp_forward.1} parent=1 // pred_region
      %198 = dma.done [#allocation9], 1024
    $region81: #{_mlp_forward.1} parent=1 // pred_fallthru
      _
    // Predicated region
    $region82: #{_mlp_forward.1} parent=1 // pred_check
      _
    $region83: #{_mlp_forward.1} parent=1 // pred_check_branch
      %200 = sbr.rel (0) target = $region85
    $region84: #{_mlp_forward.1} parent=1 // pred_region
      %201 = dma.done [#allocation12], 16
    $region85: #{_mlp_forward.1} parent=1 // pred_fallthru
      _
    // Predicated region
    $region86: #{_mlp_forward.1} parent=1 // pred_check
      _
    $region87: #{_mlp_forward.1} parent=1 // pred_check_branch
      %203 = sbr.rel (0) target = $region89
    $region88: #{_mlp_forward.1} parent=1 // pred_region
      %204 = dma.done [#allocation12], 1024
    $region89: #{_mlp_forward.1} parent=1 // pred_fallthru
      _
    // Predicated region
    $region90: #{_mlp_forward.1} parent=1 // pred_check
      _
    $region91: #{_mlp_forward.1} parent=1 // pred_check_branch
      %206 = sbr.rel (0) target = $region93
    $region92: #{_mlp_forward.1} parent=1 // pred_region
      %207 = dma.done [#allocation15], 16
    $region93: #{_mlp_forward.1} parent=1 // pred_fallthru
      _
    // Predicated region
    $region94: #{_mlp_forward.1} parent=1 // pred_check
      _
    $region95: #{_mlp_forward.1} parent=1 // pred_check_branch
      %209 = sbr.rel (0) target = $region97
    $region96: #{_mlp_forward.1} parent=1 // pred_region
      %210 = dma.done [#allocation15], 1024
    $region97: #{_mlp_forward.1} parent=1 // pred_fallthru
      _
    // Predicated region
    $region98: #{_mlp_forward.1} parent=1 // pred_check
      _
    $region99: #{_mlp_forward.1} parent=1 // pred_check_branch
      %212 = sbr.rel (0) target = $region101
    $region100: #{_mlp_forward.1} parent=1 // pred_region
      %213 = dma.done [#allocation18], 16
    $region101: #{_mlp_forward.1} parent=1 // pred_fallthru
      _
    // Predicated region
    $region102: #{_mlp_forward.1} parent=1 // pred_check
      _
    $region103: #{_mlp_forward.1} parent=1 // pred_check_branch
      %215 = sbr.rel (0) target = $region105
    $region104: #{_mlp_forward.1} parent=1 // pred_region
      %216 = dma.done [#allocation18], 1024
    $region105: #{_mlp_forward.1} parent=1 // pred_fallthru
      _
    // Predicated region
    $region106: #{_mlp_forward.1} parent=1 // pred_check
      _
    $region107: #{_mlp_forward.1} parent=1 // pred_check_branch
      %218 = sbr.rel (0) target = $region109
    $region108: #{_mlp_forward.1} parent=1 // pred_region
      %219 = dma.done [#allocation21], 16
    $region109: #{_mlp_forward.1} parent=1 // pred_fallthru
      _
    // Predicated region
    $region110: #{_mlp_forward.1} parent=1 // pred_check
      _
    $region111: #{_mlp_forward.1} parent=1 // pred_check_branch
      %221 = sbr.rel (0) target = $region113
    $region112: #{_mlp_forward.1} parent=1 // pred_region
      %222 = dma.done [#allocation21], 1024
    $region113: #{_mlp_forward.1} parent=1 // pred_fallthru
      _
    // Predicated region
    $region114: #{_mlp_forward.1} parent=1 // pred_check
      _
    $region115: #{_mlp_forward.1} parent=1 // pred_check_branch
      %224 = sbr.rel (0) target = $region117
    $region116: #{_mlp_forward.1} parent=1 // pred_region
      %225 = dma.done [#allocation24], 16
    $region117: #{_mlp_forward.1} parent=1 // pred_fallthru
      _
    %p227 = scmp.eq.s32.totalorder 0, 0
    // Predicated region
    $region118: #{_mlp_forward.1} parent=1 // pred_check
      %p228 = pneg %p227
    $region119: #{_mlp_forward.1} parent=1 // pred_check_branch
      %230 = sbr.rel (%p228) target = $region121
    $region120: #{_mlp_forward.1} parent=1 // pred_region
      %v231 = vld [vmem:[#allocation5] sm:$0xf]
      %v233 = vlaneseq
      %v234 = vshrl.u32 %v233, 7
      %v235 = vsub.s32 0, %v234
      %v236 = vrot.slane %v231, %v235
      %v237 = vlaneseq
      %v238 = vshrl.u32 %v237, 7
      %v239 = vsub.s32 1, %v238
      %v240 = vrot.slane %v231, %v239
      %v241 = vlaneseq
      %v242 = vshrl.u32 %v241, 7
      %v243 = vsub.s32 2, %v242
      %v244 = vrot.slane %v231, %v243
      %v245 = vlaneseq
      %v246 = vshrl.u32 %v245, 7
      %v247 = vsub.s32 3, %v246
      %v248 = vrot.slane %v231, %v247
      %253 = vst [vmem:[#allocation2] sm:$0xff] %v236
      %254 = vst [vmem:[#allocation2 + $0x8] sm:$0xff] %v240
      %255 = vst [vmem:[#allocation2 + $0x10] sm:$0xff] %v244
      %256 = vst [vmem:[#allocation2 + $0x18] sm:$0xff] %v248
      %257 = vst [vmem:[#allocation2 + $0x20] sm:$0xff] %v236
      %258 = vst [vmem:[#allocation2 + $0x28] sm:$0xff] %v240
      %259 = vst [vmem:[#allocation2 + $0x30] sm:$0xff] %v244
      %260 = vst [vmem:[#allocation2 + $0x38] sm:$0xff] %v248
      %261 = vst [vmem:[#allocation2 + $0x40] sm:$0xff] %v236
      %262 = vst [vmem:[#allocation2 + $0x48] sm:$0xff] %v240
      %263 = vst [vmem:[#allocation2 + $0x50] sm:$0xff] %v244
      %264 = vst [vmem:[#allocation2 + $0x58] sm:$0xff] %v248
      %265 = vst [vmem:[#allocation2 + $0x60] sm:$0xff] %v236
      %266 = vst [vmem:[#allocation2 + $0x68] sm:$0xff] %v240
      %267 = vst [vmem:[#allocation2 + $0x70] sm:$0xff] %v244
      %268 = vst [vmem:[#allocation2 + $0x78] sm:$0xff] %v248
      %269 = vst [vmem:[#allocation2 + $0x80] sm:$0xff] %v236
      %270 = vst [vmem:[#allocation2 + $0x88] sm:$0xff] %v240
      %271 = vst [vmem:[#allocation2 + $0x90] sm:$0xff] %v244
      %272 = vst [vmem:[#allocation2 + $0x98] sm:$0xff] %v248
      %273 = vst [vmem:[#allocation2 + $0xa0] sm:$0xff] %v236
      %274 = vst [vmem:[#allocation2 + $0xa8] sm:$0xff] %v240
      %275 = vst [vmem:[#allocation2 + $0xb0] sm:$0xff] %v244
      %276 = vst [vmem:[#allocation2 + $0xb8] sm:$0xff] %v248
      %277 = vst [vmem:[#allocation2 + $0xc0] sm:$0xff] %v236
      %278 = vst [vmem:[#allocation2 + $0xc8] sm:$0xff] %v240
      %279 = vst [vmem:[#allocation2 + $0xd0] sm:$0xff] %v244
      %280 = vst [vmem:[#allocation2 + $0xd8] sm:$0xff] %v248
      %281 = vst [vmem:[#allocation2 + $0xe0] sm:$0xff] %v236
      %282 = vst [vmem:[#allocation2 + $0xe8] sm:$0xff] %v240
      %283 = vst [vmem:[#allocation2 + $0xf0] sm:$0xff] %v244
      %284 = vst [vmem:[#allocation2 + $0xf8] sm:$0xff] %v248
    $region121: #{_mlp_forward.1} parent=1 // pred_fallthru
      _
    %v285 = vld [vmem:[%s0] sm:$0xff]
    %v286 = vld [vmem:[%s0 + $0x8] sm:$0xff]
    %v287 = vld [vmem:[%s0 + $0x10] sm:$0xff]
    %v288 = vld [vmem:[%s0 + $0x18] sm:$0xff]
    %v289 = vld [vmem:[%s0 + $0x20] sm:$0xff]
    %v290 = vld [vmem:[%s0 + $0x28] sm:$0xff]
    %v291 = vld [vmem:[%s0 + $0x30] sm:$0xff]
    %v292 = vld [vmem:[%s0 + $0x38] sm:$0xff]
    %v293 = vld [vmem:[%s0 + $0x40] sm:$0xff]
    %v294 = vld [vmem:[%s0 + $0x48] sm:$0xff]
    %v295 = vld [vmem:[%s0 + $0x50] sm:$0xff]
    %v296 = vld [vmem:[%s0 + $0x58] sm:$0xff]
    %v297 = vld [vmem:[%s0 + $0x60] sm:$0xff]
    %v298 = vld [vmem:[%s0 + $0x68] sm:$0xff]
    %v299 = vld [vmem:[%s0 + $0x70] sm:$0xff]
    %v300 = vld [vmem:[%s0 + $0x78] sm:$0xff]
    %v301 = vld [vmem:[%s0 + $0x80] sm:$0xff]
    %v302 = vld [vmem:[%s0 + $0x88] sm:$0xff]
    %v303 = vld [vmem:[%s0 + $0x90] sm:$0xff]
    %v304 = vld [vmem:[%s0 + $0x98] sm:$0xff]
    %v305 = vld [vmem:[%s0 + $0xa0] sm:$0xff]
    %v306 = vld [vmem:[%s0 + $0xa8] sm:$0xff]
    %v307 = vld [vmem:[%s0 + $0xb0] sm:$0xff]
    %v308 = vld [vmem:[%s0 + $0xb8] sm:$0xff]
    %v309 = vld [vmem:[%s0 + $0xc0] sm:$0xff]
    %v310 = vld [vmem:[%s0 + $0xc8] sm:$0xff]
    %v311 = vld [vmem:[%s0 + $0xd0] sm:$0xff]
    %v312 = vld [vmem:[%s0 + $0xd8] sm:$0xff]
    %v313 = vld [vmem:[%s0 + $0xe0] sm:$0xff]
    %v314 = vld [vmem:[%s0 + $0xe8] sm:$0xff]
    %v315 = vld [vmem:[%s0 + $0xf0] sm:$0xff]
    %v316 = vld [vmem:[%s0 + $0xf8] sm:$0xff]
    %v317 = vld [vmem:[%s0 + $0x100] sm:$0xff]
    %v318 = vld [vmem:[%s0 + $0x108] sm:$0xff]
    %v319 = vld [vmem:[%s0 + $0x110] sm:$0xff]
    %v320 = vld [vmem:[%s0 + $0x118] sm:$0xff]
    %v321 = vld [vmem:[%s0 + $0x120] sm:$0xff]
    %v322 = vld [vmem:[%s0 + $0x128] sm:$0xff]
    %v323 = vld [vmem:[%s0 + $0x130] sm:$0xff]
    %v324 = vld [vmem:[%s0 + $0x138] sm:$0xff]
    %v325 = vld [vmem:[%s0 + $0x140] sm:$0xff]
    %v326 = vld [vmem:[%s0 + $0x148] sm:$0xff]
    %v327 = vld [vmem:[%s0 + $0x150] sm:$0xff]
    %v328 = vld [vmem:[%s0 + $0x158] sm:$0xff]
    %v329 = vld [vmem:[%s0 + $0x160] sm:$0xff]
    %v330 = vld [vmem:[%s0 + $0x168] sm:$0xff]
    %v331 = vld [vmem:[%s0 + $0x170] sm:$0xff]
    %v332 = vld [vmem:[%s0 + $0x178] sm:$0xff]
    %v333 = vld [vmem:[%s0 + $0x180] sm:$0xff]
    %v334 = vld [vmem:[%s0 + $0x188] sm:$0xff]
    %v335 = vld [vmem:[%s0 + $0x190] sm:$0xff]
    %v336 = vld [vmem:[%s0 + $0x198] sm:$0xff]
    %v337 = vld [vmem:[%s0 + $0x1a0] sm:$0xff]
    %v338 = vld [vmem:[%s0 + $0x1a8] sm:$0xff]
    %v339 = vld [vmem:[%s0 + $0x1b0] sm:$0xff]
    %v340 = vld [vmem:[%s0 + $0x1b8] sm:$0xff]
    %v341 = vld [vmem:[%s0 + $0x1c0] sm:$0xff]
    %v342 = vld [vmem:[%s0 + $0x1c8] sm:$0xff]
    %v343 = vld [vmem:[%s0 + $0x1d0] sm:$0xff]
    %v344 = vld [vmem:[%s0 + $0x1d8] sm:$0xff]
    %v345 = vld [vmem:[%s0 + $0x1e0] sm:$0xff]
    %v346 = vld [vmem:[%s0 + $0x1e8] sm:$0xff]
    %v347 = vld [vmem:[%s0 + $0x1f0] sm:$0xff]
    %v348 = vld [vmem:[%s0 + $0x1f8] sm:$0xff]
    %v349 = vld [vmem:[#allocation2] sm:$0xff]
    %v350 = vld [vmem:[#allocation2 + $0x8] sm:$0xff]
    %v351 = vld [vmem:[#allocation2 + $0x10] sm:$0xff]
    %v352 = vld [vmem:[#allocation2 + $0x18] sm:$0xff]
    %v353 = vld [vmem:[#allocation2 + $0x20] sm:$0xff]
    %v354 = vld [vmem:[#allocation2 + $0x28] sm:$0xff]
    %v355 = vld [vmem:[#allocation2 + $0x30] sm:$0xff]
    %v356 = vld [vmem:[#allocation2 + $0x38] sm:$0xff]
    %v357 = vld [vmem:[#allocation2 + $0x40] sm:$0xff]
    %v358 = vld [vmem:[#allocation2 + $0x48] sm:$0xff]
    %v359 = vld [vmem:[#allocation2 + $0x50] sm:$0xff]
    %v360 = vld [vmem:[#allocation2 + $0x58] sm:$0xff]
    %v361 = vld [vmem:[#allocation2 + $0x60] sm:$0xff]
    %v362 = vld [vmem:[#allocation2 + $0x68] sm:$0xff]
    %v363 = vld [vmem:[#allocation2 + $0x70] sm:$0xff]
    %v364 = vld [vmem:[#allocation2 + $0x78] sm:$0xff]
    %v365 = vld [vmem:[#allocation2 + $0x80] sm:$0xff]
    %v366 = vld [vmem:[#allocation2 + $0x88] sm:$0xff]
    %v367 = vld [vmem:[#allocation2 + $0x90] sm:$0xff]
    %v368 = vld [vmem:[#allocation2 + $0x98] sm:$0xff]
    %v369 = vld [vmem:[#allocation2 + $0xa0] sm:$0xff]
    %v370 = vld [vmem:[#allocation2 + $0xa8] sm:$0xff]
    %v371 = vld [vmem:[#allocation2 + $0xb0] sm:$0xff]
    %v372 = vld [vmem:[#allocation2 + $0xb8] sm:$0xff]
    %v373 = vld [vmem:[#allocation2 + $0xc0] sm:$0xff]
    %v374 = vld [vmem:[#allocation2 + $0xc8] sm:$0xff]
    %v375 = vld [vmem:[#allocation2 + $0xd0] sm:$0xff]
    %v376 = vld [vmem:[#allocation2 + $0xd8] sm:$0xff]
    %v377 = vld [vmem:[#allocation2 + $0xe0] sm:$0xff]
    %v378 = vld [vmem:[#allocation2 + $0xe8] sm:$0xff]
    %v379 = vld [vmem:[#allocation2 + $0xf0] sm:$0xff]
    %v380 = vld [vmem:[#allocation2 + $0xf8] sm:$0xff]
    %v381 = vld [vmem:[#allocation3] sm:$0xff]
    %v382 = vld [vmem:[#allocation3 + $0x8] sm:$0xff]
    %v383 = vld [vmem:[#allocation3 + $0x10] sm:$0xff]
    %v384 = vld [vmem:[#allocation3 + $0x18] sm:$0xff]
    %v385 = vld [vmem:[#allocation3 + $0x20] sm:$0xff]
    %v386 = vld [vmem:[#allocation3 + $0x28] sm:$0xff]
    %v387 = vld [vmem:[#allocation3 + $0x30] sm:$0xff]
    %v388 = vld [vmem:[#allocation3 + $0x38] sm:$0xff]
    %v389 = vld [vmem:[#allocation3 + $0x40] sm:$0xff]
    %v390 = vld [vmem:[#allocation3 + $0x48] sm:$0xff]
    %v391 = vld [vmem:[#allocation3 + $0x50] sm:$0xff]
    %v392 = vld [vmem:[#allocation3 + $0x58] sm:$0xff]
    %v393 = vld [vmem:[#allocation3 + $0x60] sm:$0xff]
    %v394 = vld [vmem:[#allocation3 + $0x68] sm:$0xff]
    %v395 = vld [vmem:[#allocation3 + $0x70] sm:$0xff]
    %v396 = vld [vmem:[#allocation3 + $0x78] sm:$0xff]
    %v397 = vld [vmem:[#allocation3 + $0x80] sm:$0xff]
    %v398 = vld [vmem:[#allocation3 + $0x88] sm:$0xff]
    %v399 = vld [vmem:[#allocation3 + $0x90] sm:$0xff]
    %v400 = vld [vmem:[#allocation3 + $0x98] sm:$0xff]
    %v401 = vld [vmem:[#allocation3 + $0xa0] sm:$0xff]
    %v402 = vld [vmem:[#allocation3 + $0xa8] sm:$0xff]
    %v403 = vld [vmem:[#allocation3 + $0xb0] sm:$0xff]
    %v404 = vld [vmem:[#allocation3 + $0xb8] sm:$0xff]
    %v405 = vld [vmem:[#allocation3 + $0xc0] sm:$0xff]
    %v406 = vld [vmem:[#allocation3 + $0xc8] sm:$0xff]
    %v407 = vld [vmem:[#allocation3 + $0xd0] sm:$0xff]
    %v408 = vld [vmem:[#allocation3 + $0xd8] sm:$0xff]
    %v409 = vld [vmem:[#allocation3 + $0xe0] sm:$0xff]
    %v410 = vld [vmem:[#allocation3 + $0xe8] sm:$0xff]
    %v411 = vld [vmem:[#allocation3 + $0xf0] sm:$0xff]
    %v412 = vld [vmem:[#allocation3 + $0xf8] sm:$0xff]
    %v413 = vld [vmem:[#allocation3 + $0x100] sm:$0xff]
    %v414 = vld [vmem:[#allocation3 + $0x108] sm:$0xff]
    %v415 = vld [vmem:[#allocation3 + $0x110] sm:$0xff]
    %v416 = vld [vmem:[#allocation3 + $0x118] sm:$0xff]
    %v417 = vld [vmem:[#allocation3 + $0x120] sm:$0xff]
    %v418 = vld [vmem:[#allocation3 + $0x128] sm:$0xff]
    %v419 = vld [vmem:[#allocation3 + $0x130] sm:$0xff]
    %v420 = vld [vmem:[#allocation3 + $0x138] sm:$0xff]
    %v421 = vld [vmem:[#allocation3 + $0x140] sm:$0xff]
    %v422 = vld [vmem:[#allocation3 + $0x148] sm:$0xff]
    %v423 = vld [vmem:[#allocation3 + $0x150] sm:$0xff]
    %v424 = vld [vmem:[#allocation3 + $0x158] sm:$0xff]
    %v425 = vld [vmem:[#allocation3 + $0x160] sm:$0xff]
    %v426 = vld [vmem:[#allocation3 + $0x168] sm:$0xff]
    %v427 = vld [vmem:[#allocation3 + $0x170] sm:$0xff]
    %v428 = vld [vmem:[#allocation3 + $0x178] sm:$0xff]
    %v429 = vld [vmem:[#allocation3 + $0x180] sm:$0xff]
    %v430 = vld [vmem:[#allocation3 + $0x188] sm:$0xff]
    %v431 = vld [vmem:[#allocation3 + $0x190] sm:$0xff]
    %v432 = vld [vmem:[#allocation3 + $0x198] sm:$0xff]
    %v433 = vld [vmem:[#allocation3 + $0x1a0] sm:$0xff]
    %v434 = vld [vmem:[#allocation3 + $0x1a8] sm:$0xff]
    %v435 = vld [vmem:[#allocation3 + $0x1b0] sm:$0xff]
    %v436 = vld [vmem:[#allocation3 + $0x1b8] sm:$0xff]
    %v437 = vld [vmem:[#allocation3 + $0x1c0] sm:$0xff]
    %v438 = vld [vmem:[#allocation3 + $0x1c8] sm:$0xff]
    %v439 = vld [vmem:[#allocation3 + $0x1d0] sm:$0xff]
    %v440 = vld [vmem:[#allocation3 + $0x1d8] sm:$0xff]
    %v441 = vld [vmem:[#allocation3 + $0x1e0] sm:$0xff]
    %v442 = vld [vmem:[#allocation3 + $0x1e8] sm:$0xff]
    %v443 = vld [vmem:[#allocation3 + $0x1f0] sm:$0xff]
    %v444 = vld [vmem:[#allocation3 + $0x1f8] sm:$0xff]
    %v445 = vld [vmem:[#allocation3 + $0x200] sm:$0xff]
    %v446 = vld [vmem:[#allocation3 + $0x208] sm:$0xff]
    %v447 = vld [vmem:[#allocation3 + $0x210] sm:$0xff]
    %v448 = vld [vmem:[#allocation3 + $0x218] sm:$0xff]
    %v449 = vld [vmem:[#allocation3 + $0x220] sm:$0xff]
    %v450 = vld [vmem:[#allocation3 + $0x228] sm:$0xff]
    %v451 = vld [vmem:[#allocation3 + $0x230] sm:$0xff]
    %v452 = vld [vmem:[#allocation3 + $0x238] sm:$0xff]
    %v453 = vld [vmem:[#allocation3 + $0x240] sm:$0xff]
    %v454 = vld [vmem:[#allocation3 + $0x248] sm:$0xff]
    %v455 = vld [vmem:[#allocation3 + $0x250] sm:$0xff]
    %v456 = vld [vmem:[#allocation3 + $0x258] sm:$0xff]
    %v457 = vld [vmem:[#allocation3 + $0x260] sm:$0xff]
    %v458 = vld [vmem:[#allocation3 + $0x268] sm:$0xff]
    %v459 = vld [vmem:[#allocation3 + $0x270] sm:$0xff]
    %v460 = vld [vmem:[#allocation3 + $0x278] sm:$0xff]
    %v461 = vld [vmem:[#allocation3 + $0x280] sm:$0xff]
    %v462 = vld [vmem:[#allocation3 + $0x288] sm:$0xff]
    %v463 = vld [vmem:[#allocation3 + $0x290] sm:$0xff]
    %v464 = vld [vmem:[#allocation3 + $0x298] sm:$0xff]
    %v465 = vld [vmem:[#allocation3 + $0x2a0] sm:$0xff]
    %v466 = vld [vmem:[#allocation3 + $0x2a8] sm:$0xff]
    %v467 = vld [vmem:[#allocation3 + $0x2b0] sm:$0xff]
    %v468 = vld [vmem:[#allocation3 + $0x2b8] sm:$0xff]
    %v469 = vld [vmem:[#allocation3 + $0x2c0] sm:$0xff]
    %v470 = vld [vmem:[#allocation3 + $0x2c8] sm:$0xff]
    %v471 = vld [vmem:[#allocation3 + $0x2d0] sm:$0xff]
    %v472 = vld [vmem:[#allocation3 + $0x2d8] sm:$0xff]
    %v473 = vld [vmem:[#allocation3 + $0x2e0] sm:$0xff]
    %v474 = vld [vmem:[#allocation3 + $0x2e8] sm:$0xff]
    %v475 = vld [vmem:[#allocation3 + $0x2f0] sm:$0xff]
    %v476 = vld [vmem:[#allocation3 + $0x2f8] sm:$0xff]
    %v477 = vld [vmem:[#allocation3 + $0x300] sm:$0xff]
    %v478 = vld [vmem:[#allocation3 + $0x308] sm:$0xff]
    %v479 = vld [vmem:[#allocation3 + $0x310] sm:$0xff]
    %v480 = vld [vmem:[#allocation3 + $0x318] sm:$0xff]
    %v481 = vld [vmem:[#allocation3 + $0x320] sm:$0xff]
    %v482 = vld [vmem:[#allocation3 + $0x328] sm:$0xff]
    %v483 = vld [vmem:[#allocation3 + $0x330] sm:$0xff]
    %v484 = vld [vmem:[#allocation3 + $0x338] sm:$0xff]
    %v485 = vld [vmem:[#allocation3 + $0x340] sm:$0xff]
    %v486 = vld [vmem:[#allocation3 + $0x348] sm:$0xff]
    %v487 = vld [vmem:[#allocation3 + $0x350] sm:$0xff]
    %v488 = vld [vmem:[#allocation3 + $0x358] sm:$0xff]
    %v489 = vld [vmem:[#allocation3 + $0x360] sm:$0xff]
    %v490 = vld [vmem:[#allocation3 + $0x368] sm:$0xff]
    %v491 = vld [vmem:[#allocation3 + $0x370] sm:$0xff]
    %v492 = vld [vmem:[#allocation3 + $0x378] sm:$0xff]
    %v493 = vld [vmem:[#allocation3 + $0x380] sm:$0xff]
    %v494 = vld [vmem:[#allocation3 + $0x388] sm:$0xff]
    %v495 = vld [vmem:[#allocation3 + $0x390] sm:$0xff]
    %v496 = vld [vmem:[#allocation3 + $0x398] sm:$0xff]
    %v497 = vld [vmem:[#allocation3 + $0x3a0] sm:$0xff]
    %v498 = vld [vmem:[#allocation3 + $0x3a8] sm:$0xff]
    %v499 = vld [vmem:[#allocation3 + $0x3b0] sm:$0xff]
    %v500 = vld [vmem:[#allocation3 + $0x3b8] sm:$0xff]
    %v501 = vld [vmem:[#allocation3 + $0x3c0] sm:$0xff]
    %v502 = vld [vmem:[#allocation3 + $0x3c8] sm:$0xff]
    %v503 = vld [vmem:[#allocation3 + $0x3d0] sm:$0xff]
    %v504 = vld [vmem:[#allocation3 + $0x3d8] sm:$0xff]
    %v505 = vld [vmem:[#allocation3 + $0x3e0] sm:$0xff]
    %v506 = vld [vmem:[#allocation3 + $0x3e8] sm:$0xff]
    %v507 = vld [vmem:[#allocation3 + $0x3f0] sm:$0xff]
    %v508 = vld [vmem:[#allocation3 + $0x3f8] sm:$0xff]
    %v509 = vld [vmem:[#allocation3 + $0x400] sm:$0xff]
    %v510 = vld [vmem:[#allocation3 + $0x408] sm:$0xff]
    %v511 = vld [vmem:[#allocation3 + $0x410] sm:$0xff]
    %v512 = vld [vmem:[#allocation3 + $0x418] sm:$0xff]
    %v513 = vld [vmem:[#allocation3 + $0x420] sm:$0xff]
    %v514 = vld [vmem:[#allocation3 + $0x428] sm:$0xff]
    %v515 = vld [vmem:[#allocation3 + $0x430] sm:$0xff]
    %v516 = vld [vmem:[#allocation3 + $0x438] sm:$0xff]
    %v517 = vld [vmem:[#allocation3 + $0x440] sm:$0xff]
    %v518 = vld [vmem:[#allocation3 + $0x448] sm:$0xff]
    %v519 = vld [vmem:[#allocation3 + $0x450] sm:$0xff]
    %v520 = vld [vmem:[#allocation3 + $0x458] sm:$0xff]
    %v521 = vld [vmem:[#allocation3 + $0x460] sm:$0xff]
    %v522 = vld [vmem:[#allocation3 + $0x468] sm:$0xff]
    %v523 = vld [vmem:[#allocation3 + $0x470] sm:$0xff]
    %v524 = vld [vmem:[#allocation3 + $0x478] sm:$0xff]
    %v525 = vld [vmem:[#allocation3 + $0x480] sm:$0xff]
    %v526 = vld [vmem:[#allocation3 + $0x488] sm:$0xff]
    %v527 = vld [vmem:[#allocation3 + $0x490] sm:$0xff]
    %v528 = vld [vmem:[#allocation3 + $0x498] sm:$0xff]
    %v529 = vld [vmem:[#allocation3 + $0x4a0] sm:$0xff]
    %v530 = vld [vmem:[#allocation3 + $0x4a8] sm:$0xff]
    %v531 = vld [vmem:[#allocation3 + $0x4b0] sm:$0xff]
    %v532 = vld [vmem:[#allocation3 + $0x4b8] sm:$0xff]
    %v533 = vld [vmem:[#allocation3 + $0x4c0] sm:$0xff]
    %v534 = vld [vmem:[#allocation3 + $0x4c8] sm:$0xff]
    %v535 = vld [vmem:[#allocation3 + $0x4d0] sm:$0xff]
    %v536 = vld [vmem:[#allocation3 + $0x4d8] sm:$0xff]
    %v537 = vld [vmem:[#allocation3 + $0x4e0] sm:$0xff]
    %v538 = vld [vmem:[#allocation3 + $0x4e8] sm:$0xff]
    %v539 = vld [vmem:[#allocation3 + $0x4f0] sm:$0xff]
    %v540 = vld [vmem:[#allocation3 + $0x4f8] sm:$0xff]
    %v541 = vld [vmem:[#allocation3 + $0x500] sm:$0xff]
    %v542 = vld [vmem:[#allocation3 + $0x508] sm:$0xff]
    %v543 = vld [vmem:[#allocation3 + $0x510] sm:$0xff]
    %v544 = vld [vmem:[#allocation3 + $0x518] sm:$0xff]
    %v545 = vld [vmem:[#allocation3 + $0x520] sm:$0xff]
    %v546 = vld [vmem:[#allocation3 + $0x528] sm:$0xff]
    %v547 = vld [vmem:[#allocation3 + $0x530] sm:$0xff]
    %v548 = vld [vmem:[#allocation3 + $0x538] sm:$0xff]
    %v549 = vld [vmem:[#allocation3 + $0x540] sm:$0xff]
    %v550 = vld [vmem:[#allocation3 + $0x548] sm:$0xff]
    %v551 = vld [vmem:[#allocation3 + $0x550] sm:$0xff]
    %v552 = vld [vmem:[#allocation3 + $0x558] sm:$0xff]
    %v553 = vld [vmem:[#allocation3 + $0x560] sm:$0xff]
    %v554 = vld [vmem:[#allocation3 + $0x568] sm:$0xff]
    %v555 = vld [vmem:[#allocation3 + $0x570] sm:$0xff]
    %v556 = vld [vmem:[#allocation3 + $0x578] sm:$0xff]
    %v557 = vld [vmem:[#allocation3 + $0x580] sm:$0xff]
    %v558 = vld [vmem:[#allocation3 + $0x588] sm:$0xff]
    %v559 = vld [vmem:[#allocation3 + $0x590] sm:$0xff]
    %v560 = vld [vmem:[#allocation3 + $0x598] sm:$0xff]
    %v561 = vld [vmem:[#allocation3 + $0x5a0] sm:$0xff]
    %v562 = vld [vmem:[#allocation3 + $0x5a8] sm:$0xff]
    %v563 = vld [vmem:[#allocation3 + $0x5b0] sm:$0xff]
    %v564 = vld [vmem:[#allocation3 + $0x5b8] sm:$0xff]
    %v565 = vld [vmem:[#allocation3 + $0x5c0] sm:$0xff]
    %v566 = vld [vmem:[#allocation3 + $0x5c8] sm:$0xff]
    %v567 = vld [vmem:[#allocation3 + $0x5d0] sm:$0xff]
    %v568 = vld [vmem:[#allocation3 + $0x5d8] sm:$0xff]
    %v569 = vld [vmem:[#allocation3 + $0x5e0] sm:$0xff]
    %v570 = vld [vmem:[#allocation3 + $0x5e8] sm:$0xff]
    %v571 = vld [vmem:[#allocation3 + $0x5f0] sm:$0xff]
    %v572 = vld [vmem:[#allocation3 + $0x5f8] sm:$0xff]
    %v573 = vld [vmem:[#allocation3 + $0x600] sm:$0xff]
    %v574 = vld [vmem:[#allocation3 + $0x608] sm:$0xff]
    %v575 = vld [vmem:[#allocation3 + $0x610] sm:$0xff]
    %v576 = vld [vmem:[#allocation3 + $0x618] sm:$0xff]
    %v577 = vld [vmem:[#allocation3 + $0x620] sm:$0xff]
    %v578 = vld [vmem:[#allocation3 + $0x628] sm:$0xff]
    %v579 = vld [vmem:[#allocation3 + $0x630] sm:$0xff]
    %v580 = vld [vmem:[#allocation3 + $0x638] sm:$0xff]
    %v581 = vld [vmem:[#allocation3 + $0x640] sm:$0xff]
    %v582 = vld [vmem:[#allocation3 + $0x648] sm:$0xff]
    %v583 = vld [vmem:[#allocation3 + $0x650] sm:$0xff]
    %v584 = vld [vmem:[#allocation3 + $0x658] sm:$0xff]
    %v585 = vld [vmem:[#allocation3 + $0x660] sm:$0xff]
    %v586 = vld [vmem:[#allocation3 + $0x668] sm:$0xff]
    %v587 = vld [vmem:[#allocation3 + $0x670] sm:$0xff]
    %v588 = vld [vmem:[#allocation3 + $0x678] sm:$0xff]
    %v589 = vld [vmem:[#allocation3 + $0x680] sm:$0xff]
    %v590 = vld [vmem:[#allocation3 + $0x688] sm:$0xff]
    %v591 = vld [vmem:[#allocation3 + $0x690] sm:$0xff]
    %v592 = vld [vmem:[#allocation3 + $0x698] sm:$0xff]
    %v593 = vld [vmem:[#allocation3 + $0x6a0] sm:$0xff]
    %v594 = vld [vmem:[#allocation3 + $0x6a8] sm:$0xff]
    %v595 = vld [vmem:[#allocation3 + $0x6b0] sm:$0xff]
    %v596 = vld [vmem:[#allocation3 + $0x6b8] sm:$0xff]
    %v597 = vld [vmem:[#allocation3 + $0x6c0] sm:$0xff]
    %v598 = vld [vmem:[#allocation3 + $0x6c8] sm:$0xff]
    %v599 = vld [vmem:[#allocation3 + $0x6d0] sm:$0xff]
    %v600 = vld [vmem:[#allocation3 + $0x6d8] sm:$0xff]
    %v601 = vld [vmem:[#allocation3 + $0x6e0] sm:$0xff]
    %v602 = vld [vmem:[#allocation3 + $0x6e8] sm:$0xff]
    %v603 = vld [vmem:[#allocation3 + $0x6f0] sm:$0xff]
    %v604 = vld [vmem:[#allocation3 + $0x6f8] sm:$0xff]
    %v605 = vld [vmem:[#allocation3 + $0x700] sm:$0xff]
    %v606 = vld [vmem:[#allocation3 + $0x708] sm:$0xff]
    %v607 = vld [vmem:[#allocation3 + $0x710] sm:$0xff]
    %v608 = vld [vmem:[#allocation3 + $0x718] sm:$0xff]
    %v609 = vld [vmem:[#allocation3 + $0x720] sm:$0xff]
    %v610 = vld [vmem:[#allocation3 + $0x728] sm:$0xff]
    %v611 = vld [vmem:[#allocation3 + $0x730] sm:$0xff]
    %v612 = vld [vmem:[#allocation3 + $0x738] sm:$0xff]
    %v613 = vld [vmem:[#allocation3 + $0x740] sm:$0xff]
    %v614 = vld [vmem:[#allocation3 + $0x748] sm:$0xff]
    %v615 = vld [vmem:[#allocation3 + $0x750] sm:$0xff]
    %v616 = vld [vmem:[#allocation3 + $0x758] sm:$0xff]
    %v617 = vld [vmem:[#allocation3 + $0x760] sm:$0xff]
    %v618 = vld [vmem:[#allocation3 + $0x768] sm:$0xff]
    %v619 = vld [vmem:[#allocation3 + $0x770] sm:$0xff]
    %v620 = vld [vmem:[#allocation3 + $0x778] sm:$0xff]
    %v621 = vld [vmem:[#allocation3 + $0x780] sm:$0xff]
    %v622 = vld [vmem:[#allocation3 + $0x788] sm:$0xff]
    %v623 = vld [vmem:[#allocation3 + $0x790] sm:$0xff]
    %v624 = vld [vmem:[#allocation3 + $0x798] sm:$0xff]
    %v625 = vld [vmem:[#allocation3 + $0x7a0] sm:$0xff]
    %v626 = vld [vmem:[#allocation3 + $0x7a8] sm:$0xff]
    %v627 = vld [vmem:[#allocation3 + $0x7b0] sm:$0xff]
    %v628 = vld [vmem:[#allocation3 + $0x7b8] sm:$0xff]
    %v629 = vld [vmem:[#allocation3 + $0x7c0] sm:$0xff]
    %v630 = vld [vmem:[#allocation3 + $0x7c8] sm:$0xff]
    %v631 = vld [vmem:[#allocation3 + $0x7d0] sm:$0xff]
    %v632 = vld [vmem:[#allocation3 + $0x7d8] sm:$0xff]
    %v633 = vld [vmem:[#allocation3 + $0x7e0] sm:$0xff]
    %v634 = vld [vmem:[#allocation3 + $0x7e8] sm:$0xff]
    %v635 = vld [vmem:[#allocation3 + $0x7f0] sm:$0xff]
    %v636 = vld [vmem:[#allocation3 + $0x7f8] sm:$0xff]
    %v637 = vld [vmem:[#allocation3 + $0x800] sm:$0xff]
    %v638 = vld [vmem:[#allocation3 + $0x808] sm:$0xff]
    %v639 = vld [vmem:[#allocation3 + $0x810] sm:$0xff]
    %v640 = vld [vmem:[#allocation3 + $0x818] sm:$0xff]
    %v641 = vld [vmem:[#allocation3 + $0x820] sm:$0xff]
    %v642 = vld [vmem:[#allocation3 + $0x828] sm:$0xff]
    %v643 = vld [vmem:[#allocation3 + $0x830] sm:$0xff]
    %v644 = vld [vmem:[#allocation3 + $0x838] sm:$0xff]
    %v645 = vld [vmem:[#allocation3 + $0x840] sm:$0xff]
    %v646 = vld [vmem:[#allocation3 + $0x848] sm:$0xff]
    %v647 = vld [vmem:[#allocation3 + $0x850] sm:$0xff]
    %v648 = vld [vmem:[#allocation3 + $0x858] sm:$0xff]
    %v649 = vld [vmem:[#allocation3 + $0x860] sm:$0xff]
    %v650 = vld [vmem:[#allocation3 + $0x868] sm:$0xff]
    %v651 = vld [vmem:[#allocation3 + $0x870] sm:$0xff]
    %v652 = vld [vmem:[#allocation3 + $0x878] sm:$0xff]
    %v653 = vld [vmem:[#allocation3 + $0x880] sm:$0xff]
    %v654 = vld [vmem:[#allocation3 + $0x888] sm:$0xff]
    %v655 = vld [vmem:[#allocation3 + $0x890] sm:$0xff]
    %v656 = vld [vmem:[#allocation3 + $0x898] sm:$0xff]
    %v657 = vld [vmem:[#allocation3 + $0x8a0] sm:$0xff]
    %v658 = vld [vmem:[#allocation3 + $0x8a8] sm:$0xff]
    %v659 = vld [vmem:[#allocation3 + $0x8b0] sm:$0xff]
    %v660 = vld [vmem:[#allocation3 + $0x8b8] sm:$0xff]
    %v661 = vld [vmem:[#allocation3 + $0x8c0] sm:$0xff]
    %v662 = vld [vmem:[#allocation3 + $0x8c8] sm:$0xff]
    %v663 = vld [vmem:[#allocation3 + $0x8d0] sm:$0xff]
    %v664 = vld [vmem:[#allocation3 + $0x8d8] sm:$0xff]
    %v665 = vld [vmem:[#allocation3 + $0x8e0] sm:$0xff]
    %v666 = vld [vmem:[#allocation3 + $0x8e8] sm:$0xff]
    %v667 = vld [vmem:[#allocation3 + $0x8f0] sm:$0xff]
    %v668 = vld [vmem:[#allocation3 + $0x8f8] sm:$0xff]
    %v669 = vld [vmem:[#allocation3 + $0x900] sm:$0xff]
    %v670 = vld [vmem:[#allocation3 + $0x908] sm:$0xff]
    %v671 = vld [vmem:[#allocation3 + $0x910] sm:$0xff]
    %v672 = vld [vmem:[#allocation3 + $0x918] sm:$0xff]
    %v673 = vld [vmem:[#allocation3 + $0x920] sm:$0xff]
    %v674 = vld [vmem:[#allocation3 + $0x928] sm:$0xff]
    %v675 = vld [vmem:[#allocation3 + $0x930] sm:$0xff]
    %v676 = vld [vmem:[#allocation3 + $0x938] sm:$0xff]
    %v677 = vld [vmem:[#allocation3 + $0x940] sm:$0xff]
    %v678 = vld [vmem:[#allocation3 + $0x948] sm:$0xff]
    %v679 = vld [vmem:[#allocation3 + $0x950] sm:$0xff]
    %v680 = vld [vmem:[#allocation3 + $0x958] sm:$0xff]
    %v681 = vld [vmem:[#allocation3 + $0x960] sm:$0xff]
    %v682 = vld [vmem:[#allocation3 + $0x968] sm:$0xff]
    %v683 = vld [vmem:[#allocation3 + $0x970] sm:$0xff]
    %v684 = vld [vmem:[#allocation3 + $0x978] sm:$0xff]
    %v685 = vld [vmem:[#allocation3 + $0x980] sm:$0xff]
    %v686 = vld [vmem:[#allocation3 + $0x988] sm:$0xff]
    %v687 = vld [vmem:[#allocation3 + $0x990] sm:$0xff]
    %v688 = vld [vmem:[#allocation3 + $0x998] sm:$0xff]
    %v689 = vld [vmem:[#allocation3 + $0x9a0] sm:$0xff]
    %v690 = vld [vmem:[#allocation3 + $0x9a8] sm:$0xff]
    %v691 = vld [vmem:[#allocation3 + $0x9b0] sm:$0xff]
    %v692 = vld [vmem:[#allocation3 + $0x9b8] sm:$0xff]
    %v693 = vld [vmem:[#allocation3 + $0x9c0] sm:$0xff]
    %v694 = vld [vmem:[#allocation3 + $0x9c8] sm:$0xff]
    %v695 = vld [vmem:[#allocation3 + $0x9d0] sm:$0xff]
    %v696 = vld [vmem:[#allocation3 + $0x9d8] sm:$0xff]
    %v697 = vld [vmem:[#allocation3 + $0x9e0] sm:$0xff]
    %v698 = vld [vmem:[#allocation3 + $0x9e8] sm:$0xff]
    %v699 = vld [vmem:[#allocation3 + $0x9f0] sm:$0xff]
    %v700 = vld [vmem:[#allocation3 + $0x9f8] sm:$0xff]
    %v701 = vld [vmem:[#allocation3 + $0xa00] sm:$0xff]
    %v702 = vld [vmem:[#allocation3 + $0xa08] sm:$0xff]
    %v703 = vld [vmem:[#allocation3 + $0xa10] sm:$0xff]
    %v704 = vld [vmem:[#allocation3 + $0xa18] sm:$0xff]
    %v705 = vld [vmem:[#allocation3 + $0xa20] sm:$0xff]
    %v706 = vld [vmem:[#allocation3 + $0xa28] sm:$0xff]
    %v707 = vld [vmem:[#allocation3 + $0xa30] sm:$0xff]
    %v708 = vld [vmem:[#allocation3 + $0xa38] sm:$0xff]
    %v709 = vld [vmem:[#allocation3 + $0xa40] sm:$0xff]
    %v710 = vld [vmem:[#allocation3 + $0xa48] sm:$0xff]
    %v711 = vld [vmem:[#allocation3 + $0xa50] sm:$0xff]
    %v712 = vld [vmem:[#allocation3 + $0xa58] sm:$0xff]
    %v713 = vld [vmem:[#allocation3 + $0xa60] sm:$0xff]
    %v714 = vld [vmem:[#allocation3 + $0xa68] sm:$0xff]
    %v715 = vld [vmem:[#allocation3 + $0xa70] sm:$0xff]
    %v716 = vld [vmem:[#allocation3 + $0xa78] sm:$0xff]
    %v717 = vld [vmem:[#allocation3 + $0xa80] sm:$0xff]
    %v718 = vld [vmem:[#allocation3 + $0xa88] sm:$0xff]
    %v719 = vld [vmem:[#allocation3 + $0xa90] sm:$0xff]
    %v720 = vld [vmem:[#allocation3 + $0xa98] sm:$0xff]
    %v721 = vld [vmem:[#allocation3 + $0xaa0] sm:$0xff]
    %v722 = vld [vmem:[#allocation3 + $0xaa8] sm:$0xff]
    %v723 = vld [vmem:[#allocation3 + $0xab0] sm:$0xff]
    %v724 = vld [vmem:[#allocation3 + $0xab8] sm:$0xff]
    %v725 = vld [vmem:[#allocation3 + $0xac0] sm:$0xff]
    %v726 = vld [vmem:[#allocation3 + $0xac8] sm:$0xff]
    %v727 = vld [vmem:[#allocation3 + $0xad0] sm:$0xff]
    %v728 = vld [vmem:[#allocation3 + $0xad8] sm:$0xff]
    %v729 = vld [vmem:[#allocation3 + $0xae0] sm:$0xff]
    %v730 = vld [vmem:[#allocation3 + $0xae8] sm:$0xff]
    %v731 = vld [vmem:[#allocation3 + $0xaf0] sm:$0xff]
    %v732 = vld [vmem:[#allocation3 + $0xaf8] sm:$0xff]
    %v733 = vld [vmem:[#allocation3 + $0xb00] sm:$0xff]
    %v734 = vld [vmem:[#allocation3 + $0xb08] sm:$0xff]
    %v735 = vld [vmem:[#allocation3 + $0xb10] sm:$0xff]
    %v736 = vld [vmem:[#allocation3 + $0xb18] sm:$0xff]
    %v737 = vld [vmem:[#allocation3 + $0xb20] sm:$0xff]
    %v738 = vld [vmem:[#allocation3 + $0xb28] sm:$0xff]
    %v739 = vld [vmem:[#allocation3 + $0xb30] sm:$0xff]
    %v740 = vld [vmem:[#allocation3 + $0xb38] sm:$0xff]
    %v741 = vld [vmem:[#allocation3 + $0xb40] sm:$0xff]
    %v742 = vld [vmem:[#allocation3 + $0xb48] sm:$0xff]
    %v743 = vld [vmem:[#allocation3 + $0xb50] sm:$0xff]
    %v744 = vld [vmem:[#allocation3 + $0xb58] sm:$0xff]
    %v745 = vld [vmem:[#allocation3 + $0xb60] sm:$0xff]
    %v746 = vld [vmem:[#allocation3 + $0xb68] sm:$0xff]
    %v747 = vld [vmem:[#allocation3 + $0xb70] sm:$0xff]
    %v748 = vld [vmem:[#allocation3 + $0xb78] sm:$0xff]
    %v749 = vld [vmem:[#allocation3 + $0xb80] sm:$0xff]
    %v750 = vld [vmem:[#allocation3 + $0xb88] sm:$0xff]
    %v751 = vld [vmem:[#allocation3 + $0xb90] sm:$0xff]
    %v752 = vld [vmem:[#allocation3 + $0xb98] sm:$0xff]
    %v753 = vld [vmem:[#allocation3 + $0xba0] sm:$0xff]
    %v754 = vld [vmem:[#allocation3 + $0xba8] sm:$0xff]
    %v755 = vld [vmem:[#allocation3 + $0xbb0] sm:$0xff]
    %v756 = vld [vmem:[#allocation3 + $0xbb8] sm:$0xff]
    %v757 = vld [vmem:[#allocation3 + $0xbc0] sm:$0xff]
    %v758 = vld [vmem:[#allocation3 + $0xbc8] sm:$0xff]
    %v759 = vld [vmem:[#allocation3 + $0xbd0] sm:$0xff]
    %v760 = vld [vmem:[#allocation3 + $0xbd8] sm:$0xff]
    %v761 = vld [vmem:[#allocation3 + $0xbe0] sm:$0xff]
    %v762 = vld [vmem:[#allocation3 + $0xbe8] sm:$0xff]
    %v763 = vld [vmem:[#allocation3 + $0xbf0] sm:$0xff]
    %v764 = vld [vmem:[#allocation3 + $0xbf8] sm:$0xff]
    %v765 = vld [vmem:[#allocation3 + $0xc00] sm:$0xff]
    %v766 = vld [vmem:[#allocation3 + $0xc08] sm:$0xff]
    %v767 = vld [vmem:[#allocation3 + $0xc10] sm:$0xff]
    %v768 = vld [vmem:[#allocation3 + $0xc18] sm:$0xff]
    %v769 = vld [vmem:[#allocation3 + $0xc20] sm:$0xff]
    %v770 = vld [vmem:[#allocation3 + $0xc28] sm:$0xff]
    %v771 = vld [vmem:[#allocation3 + $0xc30] sm:$0xff]
    %v772 = vld [vmem:[#allocation3 + $0xc38] sm:$0xff]
    %v773 = vld [vmem:[#allocation3 + $0xc40] sm:$0xff]
    %v774 = vld [vmem:[#allocation3 + $0xc48] sm:$0xff]
    %v775 = vld [vmem:[#allocation3 + $0xc50] sm:$0xff]
    %v776 = vld [vmem:[#allocation3 + $0xc58] sm:$0xff]
    %v777 = vld [vmem:[#allocation3 + $0xc60] sm:$0xff]
    %v778 = vld [vmem:[#allocation3 + $0xc68] sm:$0xff]
    %v779 = vld [vmem:[#allocation3 + $0xc70] sm:$0xff]
    %v780 = vld [vmem:[#allocation3 + $0xc78] sm:$0xff]
    %v781 = vld [vmem:[#allocation3 + $0xc80] sm:$0xff]
    %v782 = vld [vmem:[#allocation3 + $0xc88] sm:$0xff]
    %v783 = vld [vmem:[#allocation3 + $0xc90] sm:$0xff]
    %v784 = vld [vmem:[#allocation3 + $0xc98] sm:$0xff]
    %v785 = vld [vmem:[#allocation3 + $0xca0] sm:$0xff]
    %v786 = vld [vmem:[#allocation3 + $0xca8] sm:$0xff]
    %v787 = vld [vmem:[#allocation3 + $0xcb0] sm:$0xff]
    %v788 = vld [vmem:[#allocation3 + $0xcb8] sm:$0xff]
    %v789 = vld [vmem:[#allocation3 + $0xcc0] sm:$0xff]
    %v790 = vld [vmem:[#allocation3 + $0xcc8] sm:$0xff]
    %v791 = vld [vmem:[#allocation3 + $0xcd0] sm:$0xff]
    %v792 = vld [vmem:[#allocation3 + $0xcd8] sm:$0xff]
    %v793 = vld [vmem:[#allocation3 + $0xce0] sm:$0xff]
    %v794 = vld [vmem:[#allocation3 + $0xce8] sm:$0xff]
    %v795 = vld [vmem:[#allocation3 + $0xcf0] sm:$0xff]
    %v796 = vld [vmem:[#allocation3 + $0xcf8] sm:$0xff]
    %v797 = vld [vmem:[#allocation3 + $0xd00] sm:$0xff]
    %v798 = vld [vmem:[#allocation3 + $0xd08] sm:$0xff]
    %v799 = vld [vmem:[#allocation3 + $0xd10] sm:$0xff]
    %v800 = vld [vmem:[#allocation3 + $0xd18] sm:$0xff]
    %v801 = vld [vmem:[#allocation3 + $0xd20] sm:$0xff]
    %v802 = vld [vmem:[#allocation3 + $0xd28] sm:$0xff]
    %v803 = vld [vmem:[#allocation3 + $0xd30] sm:$0xff]
    %v804 = vld [vmem:[#allocation3 + $0xd38] sm:$0xff]
    %v805 = vld [vmem:[#allocation3 + $0xd40] sm:$0xff]
    %v806 = vld [vmem:[#allocation3 + $0xd48] sm:$0xff]
    %v807 = vld [vmem:[#allocation3 + $0xd50] sm:$0xff]
    %v808 = vld [vmem:[#allocation3 + $0xd58] sm:$0xff]
    %v809 = vld [vmem:[#allocation3 + $0xd60] sm:$0xff]
    %v810 = vld [vmem:[#allocation3 + $0xd68] sm:$0xff]
    %v811 = vld [vmem:[#allocation3 + $0xd70] sm:$0xff]
    %v812 = vld [vmem:[#allocation3 + $0xd78] sm:$0xff]
    %v813 = vld [vmem:[#allocation3 + $0xd80] sm:$0xff]
    %v814 = vld [vmem:[#allocation3 + $0xd88] sm:$0xff]
    %v815 = vld [vmem:[#allocation3 + $0xd90] sm:$0xff]
    %v816 = vld [vmem:[#allocation3 + $0xd98] sm:$0xff]
    %v817 = vld [vmem:[#allocation3 + $0xda0] sm:$0xff]
    %v818 = vld [vmem:[#allocation3 + $0xda8] sm:$0xff]
    %v819 = vld [vmem:[#allocation3 + $0xdb0] sm:$0xff]
    %v820 = vld [vmem:[#allocation3 + $0xdb8] sm:$0xff]
    %v821 = vld [vmem:[#allocation3 + $0xdc0] sm:$0xff]
    %v822 = vld [vmem:[#allocation3 + $0xdc8] sm:$0xff]
    %v823 = vld [vmem:[#allocation3 + $0xdd0] sm:$0xff]
    %v824 = vld [vmem:[#allocation3 + $0xdd8] sm:$0xff]
    %v825 = vld [vmem:[#allocation3 + $0xde0] sm:$0xff]
    %v826 = vld [vmem:[#allocation3 + $0xde8] sm:$0xff]
    %v827 = vld [vmem:[#allocation3 + $0xdf0] sm:$0xff]
    %v828 = vld [vmem:[#allocation3 + $0xdf8] sm:$0xff]
    %v829 = vld [vmem:[#allocation3 + $0xe00] sm:$0xff]
    %v830 = vld [vmem:[#allocation3 + $0xe08] sm:$0xff]
    %v831 = vld [vmem:[#allocation3 + $0xe10] sm:$0xff]
    %v832 = vld [vmem:[#allocation3 + $0xe18] sm:$0xff]
    %v833 = vld [vmem:[#allocation3 + $0xe20] sm:$0xff]
    %v834 = vld [vmem:[#allocation3 + $0xe28] sm:$0xff]
    %v835 = vld [vmem:[#allocation3 + $0xe30] sm:$0xff]
    %v836 = vld [vmem:[#allocation3 + $0xe38] sm:$0xff]
    %v837 = vld [vmem:[#allocation3 + $0xe40] sm:$0xff]
    %v838 = vld [vmem:[#allocation3 + $0xe48] sm:$0xff]
    %v839 = vld [vmem:[#allocation3 + $0xe50] sm:$0xff]
    %v840 = vld [vmem:[#allocation3 + $0xe58] sm:$0xff]
    %v841 = vld [vmem:[#allocation3 + $0xe60] sm:$0xff]
    %v842 = vld [vmem:[#allocation3 + $0xe68] sm:$0xff]
    %v843 = vld [vmem:[#allocation3 + $0xe70] sm:$0xff]
    %v844 = vld [vmem:[#allocation3 + $0xe78] sm:$0xff]
    %v845 = vld [vmem:[#allocation3 + $0xe80] sm:$0xff]
    %v846 = vld [vmem:[#allocation3 + $0xe88] sm:$0xff]
    %v847 = vld [vmem:[#allocation3 + $0xe90] sm:$0xff]
    %v848 = vld [vmem:[#allocation3 + $0xe98] sm:$0xff]
    %v849 = vld [vmem:[#allocation3 + $0xea0] sm:$0xff]
    %v850 = vld [vmem:[#allocation3 + $0xea8] sm:$0xff]
    %v851 = vld [vmem:[#allocation3 + $0xeb0] sm:$0xff]
    %v852 = vld [vmem:[#allocation3 + $0xeb8] sm:$0xff]
    %v853 = vld [vmem:[#allocation3 + $0xec0] sm:$0xff]
    %v854 = vld [vmem:[#allocation3 + $0xec8] sm:$0xff]
    %v855 = vld [vmem:[#allocation3 + $0xed0] sm:$0xff]
    %v856 = vld [vmem:[#allocation3 + $0xed8] sm:$0xff]
    %v857 = vld [vmem:[#allocation3 + $0xee0] sm:$0xff]
    %v858 = vld [vmem:[#allocation3 + $0xee8] sm:$0xff]
    %v859 = vld [vmem:[#allocation3 + $0xef0] sm:$0xff]
    %v860 = vld [vmem:[#allocation3 + $0xef8] sm:$0xff]
    %v861 = vld [vmem:[#allocation3 + $0xf00] sm:$0xff]
    %v862 = vld [vmem:[#allocation3 + $0xf08] sm:$0xff]
    %v863 = vld [vmem:[#allocation3 + $0xf10] sm:$0xff]
    %v864 = vld [vmem:[#allocation3 + $0xf18] sm:$0xff]
    %v865 = vld [vmem:[#allocation3 + $0xf20] sm:$0xff]
    %v866 = vld [vmem:[#allocation3 + $0xf28] sm:$0xff]
    %v867 = vld [vmem:[#allocation3 + $0xf30] sm:$0xff]
    %v868 = vld [vmem:[#allocation3 + $0xf38] sm:$0xff]
    %v869 = vld [vmem:[#allocation3 + $0xf40] sm:$0xff]
    %v870 = vld [vmem:[#allocation3 + $0xf48] sm:$0xff]
    %v871 = vld [vmem:[#allocation3 + $0xf50] sm:$0xff]
    %v872 = vld [vmem:[#allocation3 + $0xf58] sm:$0xff]
    %v873 = vld [vmem:[#allocation3 + $0xf60] sm:$0xff]
    %v874 = vld [vmem:[#allocation3 + $0xf68] sm:$0xff]
    %v875 = vld [vmem:[#allocation3 + $0xf70] sm:$0xff]
    %v876 = vld [vmem:[#allocation3 + $0xf78] sm:$0xff]
    %v877 = vld [vmem:[#allocation3 + $0xf80] sm:$0xff]
    %v878 = vld [vmem:[#allocation3 + $0xf88] sm:$0xff]
    %v879 = vld [vmem:[#allocation3 + $0xf90] sm:$0xff]
    %v880 = vld [vmem:[#allocation3 + $0xf98] sm:$0xff]
    %v881 = vld [vmem:[#allocation3 + $0xfa0] sm:$0xff]
    %v882 = vld [vmem:[#allocation3 + $0xfa8] sm:$0xff]
    %v883 = vld [vmem:[#allocation3 + $0xfb0] sm:$0xff]
    %v884 = vld [vmem:[#allocation3 + $0xfb8] sm:$0xff]
    %v885 = vld [vmem:[#allocation3 + $0xfc0] sm:$0xff]
    %v886 = vld [vmem:[#allocation3 + $0xfc8] sm:$0xff]
    %v887 = vld [vmem:[#allocation3 + $0xfd0] sm:$0xff]
    %v888 = vld [vmem:[#allocation3 + $0xfd8] sm:$0xff]
    %v889 = vld [vmem:[#allocation3 + $0xfe0] sm:$0xff]
    %v890 = vld [vmem:[#allocation3 + $0xfe8] sm:$0xff]
    %v891 = vld [vmem:[#allocation3 + $0xff0] sm:$0xff]
    %v892 = vld [vmem:[#allocation3 + $0xff8] sm:$0xff]
    %v957 = vunpack.c.l.b16 %v285
    %v958 = vunpack.c.h.b16 %v285
    %v959 = vunpack.c.l.b16 %v286
    %v960 = vunpack.c.h.b16 %v286
    %v961 = vunpack.c.l.b16 %v287
    %v962 = vunpack.c.h.b16 %v287
    %v963 = vunpack.c.l.b16 %v288
    %v964 = vunpack.c.h.b16 %v288
    %v965 = vunpack.c.l.b16 %v289
    %v966 = vunpack.c.h.b16 %v289
    %v967 = vunpack.c.l.b16 %v290
    %v968 = vunpack.c.h.b16 %v290
    %v969 = vunpack.c.l.b16 %v291
    %v970 = vunpack.c.h.b16 %v291
    %v971 = vunpack.c.l.b16 %v292
    %v972 = vunpack.c.h.b16 %v292
    %v973 = vunpack.c.l.b16 %v293
    %v974 = vunpack.c.h.b16 %v293
    %v975 = vunpack.c.l.b16 %v294
    %v976 = vunpack.c.h.b16 %v294
    %v977 = vunpack.c.l.b16 %v295
    %v978 = vunpack.c.h.b16 %v295
    %v979 = vunpack.c.l.b16 %v296
    %v980 = vunpack.c.h.b16 %v296
    %v981 = vunpack.c.l.b16 %v297
    %v982 = vunpack.c.h.b16 %v297
    %v983 = vunpack.c.l.b16 %v298
    %v984 = vunpack.c.h.b16 %v298
    %v985 = vunpack.c.l.b16 %v299
    %v986 = vunpack.c.h.b16 %v299
    %v987 = vunpack.c.l.b16 %v300
    %v988 = vunpack.c.h.b16 %v300
    %v989 = vunpack.c.l.b16 %v301
    %v990 = vunpack.c.h.b16 %v301
    %v991 = vunpack.c.l.b16 %v302
    %v992 = vunpack.c.h.b16 %v302
    %v993 = vunpack.c.l.b16 %v303
    %v994 = vunpack.c.h.b16 %v303
    %v995 = vunpack.c.l.b16 %v304
    %v996 = vunpack.c.h.b16 %v304
    %v997 = vunpack.c.l.b16 %v305
    %v998 = vunpack.c.h.b16 %v305
    %v999 = vunpack.c.l.b16 %v306
    %v1000 = vunpack.c.h.b16 %v306
    %v1001 = vunpack.c.l.b16 %v307
    %v1002 = vunpack.c.h.b16 %v307
    %v1003 = vunpack.c.l.b16 %v308
    %v1004 = vunpack.c.h.b16 %v308
    %v1005 = vunpack.c.l.b16 %v309
    %v1006 = vunpack.c.h.b16 %v309
    %v1007 = vunpack.c.l.b16 %v310
    %v1008 = vunpack.c.h.b16 %v310
    %v1009 = vunpack.c.l.b16 %v311
    %v1010 = vunpack.c.h.b16 %v311
    %v1011 = vunpack.c.l.b16 %v312
    %v1012 = vunpack.c.h.b16 %v312
    %v1013 = vunpack.c.l.b16 %v313
    %v1014 = vunpack.c.h.b16 %v313
    %v1015 = vunpack.c.l.b16 %v314
    %v1016 = vunpack.c.h.b16 %v314
    %v1017 = vunpack.c.l.b16 %v315
    %v1018 = vunpack.c.h.b16 %v315
    %v1019 = vunpack.c.l.b16 %v316
    %v1020 = vunpack.c.h.b16 %v316
    %v1021 = vunpack.c.l.b16 %v317
    %v1022 = vunpack.c.h.b16 %v317
    %v1023 = vunpack.c.l.b16 %v318
    %v1024 = vunpack.c.h.b16 %v318
    %v1025 = vunpack.c.l.b16 %v319
    %v1026 = vunpack.c.h.b16 %v319
    %v1027 = vunpack.c.l.b16 %v320
    %v1028 = vunpack.c.h.b16 %v320
    %v1029 = vunpack.c.l.b16 %v321
    %v1030 = vunpack.c.h.b16 %v321
    %v1031 = vunpack.c.l.b16 %v322
    %v1032 = vunpack.c.h.b16 %v322
    %v1033 = vunpack.c.l.b16 %v323
    %v1034 = vunpack.c.h.b16 %v323
    %v1035 = vunpack.c.l.b16 %v324
    %v1036 = vunpack.c.h.b16 %v324
    %v1037 = vunpack.c.l.b16 %v325
    %v1038 = vunpack.c.h.b16 %v325
    %v1039 = vunpack.c.l.b16 %v326
    %v1040 = vunpack.c.h.b16 %v326
    %v1041 = vunpack.c.l.b16 %v327
    %v1042 = vunpack.c.h.b16 %v327
    %v1043 = vunpack.c.l.b16 %v328
    %v1044 = vunpack.c.h.b16 %v328
    %v1045 = vunpack.c.l.b16 %v329
    %v1046 = vunpack.c.h.b16 %v329
    %v1047 = vunpack.c.l.b16 %v330
    %v1048 = vunpack.c.h.b16 %v330
    %v1049 = vunpack.c.l.b16 %v331
    %v1050 = vunpack.c.h.b16 %v331
    %v1051 = vunpack.c.l.b16 %v332
    %v1052 = vunpack.c.h.b16 %v332
    %v1053 = vunpack.c.l.b16 %v333
    %v1054 = vunpack.c.h.b16 %v333
    %v1055 = vunpack.c.l.b16 %v334
    %v1056 = vunpack.c.h.b16 %v334
    %v1057 = vunpack.c.l.b16 %v335
    %v1058 = vunpack.c.h.b16 %v335
    %v1059 = vunpack.c.l.b16 %v336
    %v1060 = vunpack.c.h.b16 %v336
    %v1061 = vunpack.c.l.b16 %v337
    %v1062 = vunpack.c.h.b16 %v337
    %v1063 = vunpack.c.l.b16 %v338
    %v1064 = vunpack.c.h.b16 %v338
    %v1065 = vunpack.c.l.b16 %v339
    %v1066 = vunpack.c.h.b16 %v339
    %v1067 = vunpack.c.l.b16 %v340
    %v1068 = vunpack.c.h.b16 %v340
    %v1069 = vunpack.c.l.b16 %v341
    %v1070 = vunpack.c.h.b16 %v341
    %v1071 = vunpack.c.l.b16 %v342
    %v1072 = vunpack.c.h.b16 %v342
    %v1073 = vunpack.c.l.b16 %v343
    %v1074 = vunpack.c.h.b16 %v343
    %v1075 = vunpack.c.l.b16 %v344
    %v1076 = vunpack.c.h.b16 %v344
    %v1077 = vunpack.c.l.b16 %v345
    %v1078 = vunpack.c.h.b16 %v345
    %v1079 = vunpack.c.l.b16 %v346
    %v1080 = vunpack.c.h.b16 %v346
    %v1081 = vunpack.c.l.b16 %v347
    %v1082 = vunpack.c.h.b16 %v347
    %v1083 = vunpack.c.l.b16 %v348
    %v1084 = vunpack.c.h.b16 %v348
    %v1085 = vpack.c.b16 %v973, %v957
    %v1086 = vpack.c.b16 %v974, %v958
    %v1087 = vpack.c.b16 %v975, %v959
    %v1088 = vpack.c.b16 %v976, %v960
    %v1089 = vpack.c.b16 %v977, %v961
    %v1090 = vpack.c.b16 %v978, %v962
    %v1091 = vpack.c.b16 %v979, %v963
    %v1092 = vpack.c.b16 %v980, %v964
    %v1093 = vpack.c.b16 %v981, %v965
    %v1094 = vpack.c.b16 %v982, %v966
    %v1095 = vpack.c.b16 %v983, %v967
    %v1096 = vpack.c.b16 %v984, %v968
    %v1097 = vpack.c.b16 %v985, %v969
    %v1098 = vpack.c.b16 %v986, %v970
    %v1099 = vpack.c.b16 %v987, %v971
    %v1100 = vpack.c.b16 %v988, %v972
    %v1101 = vpack.c.b16 %v1005, %v989
    %v1102 = vpack.c.b16 %v1006, %v990
    %v1103 = vpack.c.b16 %v1007, %v991
    %v1104 = vpack.c.b16 %v1008, %v992
    %v1105 = vpack.c.b16 %v1009, %v993
    %v1106 = vpack.c.b16 %v1010, %v994
    %v1107 = vpack.c.b16 %v1011, %v995
    %v1108 = vpack.c.b16 %v1012, %v996
    %v1109 = vpack.c.b16 %v1013, %v997
    %v1110 = vpack.c.b16 %v1014, %v998
    %v1111 = vpack.c.b16 %v1015, %v999
    %v1112 = vpack.c.b16 %v1016, %v1000
    %v1113 = vpack.c.b16 %v1017, %v1001
    %v1114 = vpack.c.b16 %v1018, %v1002
    %v1115 = vpack.c.b16 %v1019, %v1003
    %v1116 = vpack.c.b16 %v1020, %v1004
    %v1117 = vpack.c.b16 %v1037, %v1021
    %v1118 = vpack.c.b16 %v1038, %v1022
    %v1119 = vpack.c.b16 %v1039, %v1023
    %v1120 = vpack.c.b16 %v1040, %v1024
    %v1121 = vpack.c.b16 %v1041, %v1025
    %v1122 = vpack.c.b16 %v1042, %v1026
    %v1123 = vpack.c.b16 %v1043, %v1027
    %v1124 = vpack.c.b16 %v1044, %v1028
    %v1125 = vpack.c.b16 %v1045, %v1029
    %v1126 = vpack.c.b16 %v1046, %v1030
    %v1127 = vpack.c.b16 %v1047, %v1031
    %v1128 = vpack.c.b16 %v1048, %v1032
    %v1129 = vpack.c.b16 %v1049, %v1033
    %v1130 = vpack.c.b16 %v1050, %v1034
    %v1131 = vpack.c.b16 %v1051, %v1035
    %v1132 = vpack.c.b16 %v1052, %v1036
    %v1133 = vpack.c.b16 %v1069, %v1053
    %v1134 = vpack.c.b16 %v1070, %v1054
    %v1135 = vpack.c.b16 %v1071, %v1055
    %v1136 = vpack.c.b16 %v1072, %v1056
    %v1137 = vpack.c.b16 %v1073, %v1057
    %v1138 = vpack.c.b16 %v1074, %v1058
    %v1139 = vpack.c.b16 %v1075, %v1059
    %v1140 = vpack.c.b16 %v1076, %v1060
    %v1141 = vpack.c.b16 %v1077, %v1061
    %v1142 = vpack.c.b16 %v1078, %v1062
    %v1143 = vpack.c.b16 %v1079, %v1063
    %v1144 = vpack.c.b16 %v1080, %v1064
    %v1145 = vpack.c.b16 %v1081, %v1065
    %v1146 = vpack.c.b16 %v1082, %v1066
    %v1147 = vpack.c.b16 %v1083, %v1067
    %v1148 = vpack.c.b16 %v1084, %v1068
    %v1725 = vunpack.c.l.b16 %v381
    %v1726 = vunpack.c.h.b16 %v381
    %v1727 = vunpack.c.l.b16 %v382
    %v1728 = vunpack.c.h.b16 %v382
    %v1729 = vunpack.c.l.b16 %v383
    %v1730 = vunpack.c.h.b16 %v383
    %v1731 = vunpack.c.l.b16 %v384
    %v1732 = vunpack.c.h.b16 %v384
    %v1733 = vunpack.c.l.b16 %v385
    %v1734 = vunpack.c.h.b16 %v385
    %v1735 = vunpack.c.l.b16 %v386
    %v1736 = vunpack.c.h.b16 %v386
    %v1737 = vunpack.c.l.b16 %v387
    %v1738 = vunpack.c.h.b16 %v387
    %v1739 = vunpack.c.l.b16 %v388
    %v1740 = vunpack.c.h.b16 %v388
    %v1741 = vunpack.c.l.b16 %v389
    %v1742 = vunpack.c.h.b16 %v389
    %v1743 = vunpack.c.l.b16 %v390
    %v1744 = vunpack.c.h.b16 %v390
    %v1745 = vunpack.c.l.b16 %v391
    %v1746 = vunpack.c.h.b16 %v391
    %v1747 = vunpack.c.l.b16 %v392
    %v1748 = vunpack.c.h.b16 %v392
    %v1749 = vunpack.c.l.b16 %v393
    %v1750 = vunpack.c.h.b16 %v393
    %v1751 = vunpack.c.l.b16 %v394
    %v1752 = vunpack.c.h.b16 %v394
    %v1753 = vunpack.c.l.b16 %v395
    %v1754 = vunpack.c.h.b16 %v395
    %v1755 = vunpack.c.l.b16 %v396
    %v1756 = vunpack.c.h.b16 %v396
    %v1757 = vunpack.c.l.b16 %v397
    %v1758 = vunpack.c.h.b16 %v397
    %v1759 = vunpack.c.l.b16 %v398
    %v1760 = vunpack.c.h.b16 %v398
    %v1761 = vunpack.c.l.b16 %v399
    %v1762 = vunpack.c.h.b16 %v399
    %v1763 = vunpack.c.l.b16 %v400
    %v1764 = vunpack.c.h.b16 %v400
    %v1765 = vunpack.c.l.b16 %v401
    %v1766 = vunpack.c.h.b16 %v401
    %v1767 = vunpack.c.l.b16 %v402
    %v1768 = vunpack.c.h.b16 %v402
    %v1769 = vunpack.c.l.b16 %v403
    %v1770 = vunpack.c.h.b16 %v403
    %v1771 = vunpack.c.l.b16 %v404
    %v1772 = vunpack.c.h.b16 %v404
    %v1773 = vunpack.c.l.b16 %v405
    %v1774 = vunpack.c.h.b16 %v405
    %v1775 = vunpack.c.l.b16 %v406
    %v1776 = vunpack.c.h.b16 %v406
    %v1777 = vunpack.c.l.b16 %v407
    %v1778 = vunpack.c.h.b16 %v407
    %v1779 = vunpack.c.l.b16 %v408
    %v1780 = vunpack.c.h.b16 %v408
    %v1781 = vunpack.c.l.b16 %v409
    %v1782 = vunpack.c.h.b16 %v409
    %v1783 = vunpack.c.l.b16 %v410
    %v1784 = vunpack.c.h.b16 %v410
    %v1785 = vunpack.c.l.b16 %v411
    %v1786 = vunpack.c.h.b16 %v411
    %v1787 = vunpack.c.l.b16 %v412
    %v1788 = vunpack.c.h.b16 %v412
    %v1789 = vunpack.c.l.b16 %v413
    %v1790 = vunpack.c.h.b16 %v413
    %v1791 = vunpack.c.l.b16 %v414
    %v1792 = vunpack.c.h.b16 %v414
    %v1793 = vunpack.c.l.b16 %v415
    %v1794 = vunpack.c.h.b16 %v415
    %v1795 = vunpack.c.l.b16 %v416
    %v1796 = vunpack.c.h.b16 %v416
    %v1797 = vunpack.c.l.b16 %v417
    %v1798 = vunpack.c.h.b16 %v417
    %v1799 = vunpack.c.l.b16 %v418
    %v1800 = vunpack.c.h.b16 %v418
    %v1801 = vunpack.c.l.b16 %v419
    %v1802 = vunpack.c.h.b16 %v419
    %v1803 = vunpack.c.l.b16 %v420
    %v1804 = vunpack.c.h.b16 %v420
    %v1805 = vunpack.c.l.b16 %v421
    %v1806 = vunpack.c.h.b16 %v421
    %v1807 = vunpack.c.l.b16 %v422
    %v1808 = vunpack.c.h.b16 %v422
    %v1809 = vunpack.c.l.b16 %v423
    %v1810 = vunpack.c.h.b16 %v423
    %v1811 = vunpack.c.l.b16 %v424
    %v1812 = vunpack.c.h.b16 %v424
    %v1813 = vunpack.c.l.b16 %v425
    %v1814 = vunpack.c.h.b16 %v425
    %v1815 = vunpack.c.l.b16 %v426
    %v1816 = vunpack.c.h.b16 %v426
    %v1817 = vunpack.c.l.b16 %v427
    %v1818 = vunpack.c.h.b16 %v427
    %v1819 = vunpack.c.l.b16 %v428
    %v1820 = vunpack.c.h.b16 %v428
    %v1821 = vunpack.c.l.b16 %v429
    %v1822 = vunpack.c.h.b16 %v429
    %v1823 = vunpack.c.l.b16 %v430
    %v1824 = vunpack.c.h.b16 %v430
    %v1825 = vunpack.c.l.b16 %v431
    %v1826 = vunpack.c.h.b16 %v431
    %v1827 = vunpack.c.l.b16 %v432
    %v1828 = vunpack.c.h.b16 %v432
    %v1829 = vunpack.c.l.b16 %v433
    %v1830 = vunpack.c.h.b16 %v433
    %v1831 = vunpack.c.l.b16 %v434
    %v1832 = vunpack.c.h.b16 %v434
    %v1833 = vunpack.c.l.b16 %v435
    %v1834 = vunpack.c.h.b16 %v435
    %v1835 = vunpack.c.l.b16 %v436
    %v1836 = vunpack.c.h.b16 %v436
    %v1837 = vunpack.c.l.b16 %v437
    %v1838 = vunpack.c.h.b16 %v437
    %v1839 = vunpack.c.l.b16 %v438
    %v1840 = vunpack.c.h.b16 %v438
    %v1841 = vunpack.c.l.b16 %v439
    %v1842 = vunpack.c.h.b16 %v439
    %v1843 = vunpack.c.l.b16 %v440
    %v1844 = vunpack.c.h.b16 %v440
    %v1845 = vunpack.c.l.b16 %v441
    %v1846 = vunpack.c.h.b16 %v441
    %v1847 = vunpack.c.l.b16 %v442
    %v1848 = vunpack.c.h.b16 %v442
    %v1849 = vunpack.c.l.b16 %v443
    %v1850 = vunpack.c.h.b16 %v443
    %v1851 = vunpack.c.l.b16 %v444
    %v1852 = vunpack.c.h.b16 %v444
    %v1853 = vunpack.c.l.b16 %v445
    %v1854 = vunpack.c.h.b16 %v445
    %v1855 = vunpack.c.l.b16 %v446
    %v1856 = vunpack.c.h.b16 %v446
    %v1857 = vunpack.c.l.b16 %v447
    %v1858 = vunpack.c.h.b16 %v447
    %v1859 = vunpack.c.l.b16 %v448
    %v1860 = vunpack.c.h.b16 %v448
    %v1861 = vunpack.c.l.b16 %v449
    %v1862 = vunpack.c.h.b16 %v449
    %v1863 = vunpack.c.l.b16 %v450
    %v1864 = vunpack.c.h.b16 %v450
    %v1865 = vunpack.c.l.b16 %v451
    %v1866 = vunpack.c.h.b16 %v451
    %v1867 = vunpack.c.l.b16 %v452
    %v1868 = vunpack.c.h.b16 %v452
    %v1869 = vunpack.c.l.b16 %v453
    %v1870 = vunpack.c.h.b16 %v453
    %v1871 = vunpack.c.l.b16 %v454
    %v1872 = vunpack.c.h.b16 %v454
    %v1873 = vunpack.c.l.b16 %v455
    %v1874 = vunpack.c.h.b16 %v455
    %v1875 = vunpack.c.l.b16 %v456
    %v1876 = vunpack.c.h.b16 %v456
    %v1877 = vunpack.c.l.b16 %v457
    %v1878 = vunpack.c.h.b16 %v457
    %v1879 = vunpack.c.l.b16 %v458
    %v1880 = vunpack.c.h.b16 %v458
    %v1881 = vunpack.c.l.b16 %v459
    %v1882 = vunpack.c.h.b16 %v459
    %v1883 = vunpack.c.l.b16 %v460
    %v1884 = vunpack.c.h.b16 %v460
    %v1885 = vunpack.c.l.b16 %v461
    %v1886 = vunpack.c.h.b16 %v461
    %v1887 = vunpack.c.l.b16 %v462
    %v1888 = vunpack.c.h.b16 %v462
    %v1889 = vunpack.c.l.b16 %v463
    %v1890 = vunpack.c.h.b16 %v463
    %v1891 = vunpack.c.l.b16 %v464
    %v1892 = vunpack.c.h.b16 %v464
    %v1893 = vunpack.c.l.b16 %v465
    %v1894 = vunpack.c.h.b16 %v465
    %v1895 = vunpack.c.l.b16 %v466
    %v1896 = vunpack.c.h.b16 %v466
    %v1897 = vunpack.c.l.b16 %v467
    %v1898 = vunpack.c.h.b16 %v467
    %v1899 = vunpack.c.l.b16 %v468
    %v1900 = vunpack.c.h.b16 %v468
    %v1901 = vunpack.c.l.b16 %v469
    %v1902 = vunpack.c.h.b16 %v469
    %v1903 = vunpack.c.l.b16 %v470
    %v1904 = vunpack.c.h.b16 %v470
    %v1905 = vunpack.c.l.b16 %v471
    %v1906 = vunpack.c.h.b16 %v471
    %v1907 = vunpack.c.l.b16 %v472
    %v1908 = vunpack.c.h.b16 %v472
    %v1909 = vunpack.c.l.b16 %v473
    %v1910 = vunpack.c.h.b16 %v473
    %v1911 = vunpack.c.l.b16 %v474
    %v1912 = vunpack.c.h.b16 %v474
    %v1913 = vunpack.c.l.b16 %v475
    %v1914 = vunpack.c.h.b16 %v475
    %v1915 = vunpack.c.l.b16 %v476
    %v1916 = vunpack.c.h.b16 %v476
    %v1917 = vunpack.c.l.b16 %v477
    %v1918 = vunpack.c.h.b16 %v477
    %v1919 = vunpack.c.l.b16 %v478
    %v1920 = vunpack.c.h.b16 %v478
    %v1921 = vunpack.c.l.b16 %v479
    %v1922 = vunpack.c.h.b16 %v479
    %v1923 = vunpack.c.l.b16 %v480
    %v1924 = vunpack.c.h.b16 %v480
    %v1925 = vunpack.c.l.b16 %v481
    %v1926 = vunpack.c.h.b16 %v481
    %v1927 = vunpack.c.l.b16 %v482
    %v1928 = vunpack.c.h.b16 %v482
    %v1929 = vunpack.c.l.b16 %v483
    %v1930 = vunpack.c.h.b16 %v483
    %v1931 = vunpack.c.l.b16 %v484
    %v1932 = vunpack.c.h.b16 %v484
    %v1933 = vunpack.c.l.b16 %v485
    %v1934 = vunpack.c.h.b16 %v485
    %v1935 = vunpack.c.l.b16 %v486
    %v1936 = vunpack.c.h.b16 %v486
    %v1937 = vunpack.c.l.b16 %v487
    %v1938 = vunpack.c.h.b16 %v487
    %v1939 = vunpack.c.l.b16 %v488
    %v1940 = vunpack.c.h.b16 %v488
    %v1941 = vunpack.c.l.b16 %v489
    %v1942 = vunpack.c.h.b16 %v489
    %v1943 = vunpack.c.l.b16 %v490
    %v1944 = vunpack.c.h.b16 %v490
    %v1945 = vunpack.c.l.b16 %v491
    %v1946 = vunpack.c.h.b16 %v491
    %v1947 = vunpack.c.l.b16 %v492
    %v1948 = vunpack.c.h.b16 %v492
    %v1949 = vunpack.c.l.b16 %v493
    %v1950 = vunpack.c.h.b16 %v493
    %v1951 = vunpack.c.l.b16 %v494
    %v1952 = vunpack.c.h.b16 %v494
    %v1953 = vunpack.c.l.b16 %v495
    %v1954 = vunpack.c.h.b16 %v495
    %v1955 = vunpack.c.l.b16 %v496
    %v1956 = vunpack.c.h.b16 %v496
    %v1957 = vunpack.c.l.b16 %v497
    %v1958 = vunpack.c.h.b16 %v497
    %v1959 = vunpack.c.l.b16 %v498
    %v1960 = vunpack.c.h.b16 %v498
    %v1961 = vunpack.c.l.b16 %v499
    %v1962 = vunpack.c.h.b16 %v499
    %v1963 = vunpack.c.l.b16 %v500
    %v1964 = vunpack.c.h.b16 %v500
    %v1965 = vunpack.c.l.b16 %v501
    %v1966 = vunpack.c.h.b16 %v501
    %v1967 = vunpack.c.l.b16 %v502
    %v1968 = vunpack.c.h.b16 %v502
    %v1969 = vunpack.c.l.b16 %v503
    %v1970 = vunpack.c.h.b16 %v503
    %v1971 = vunpack.c.l.b16 %v504
    %v1972 = vunpack.c.h.b16 %v504
    %v1973 = vunpack.c.l.b16 %v505
    %v1974 = vunpack.c.h.b16 %v505
    %v1975 = vunpack.c.l.b16 %v506
    %v1976 = vunpack.c.h.b16 %v506
    %v1977 = vunpack.c.l.b16 %v507
    %v1978 = vunpack.c.h.b16 %v507
    %v1979 = vunpack.c.l.b16 %v508
    %v1980 = vunpack.c.h.b16 %v508
    %v1981 = vunpack.c.l.b16 %v509
    %v1982 = vunpack.c.h.b16 %v509
    %v1983 = vunpack.c.l.b16 %v510
    %v1984 = vunpack.c.h.b16 %v510
    %v1985 = vunpack.c.l.b16 %v511
    %v1986 = vunpack.c.h.b16 %v511
    %v1987 = vunpack.c.l.b16 %v512
    %v1988 = vunpack.c.h.b16 %v512
    %v1989 = vunpack.c.l.b16 %v513
    %v1990 = vunpack.c.h.b16 %v513
    %v1991 = vunpack.c.l.b16 %v514
    %v1992 = vunpack.c.h.b16 %v514
    %v1993 = vunpack.c.l.b16 %v515
    %v1994 = vunpack.c.h.b16 %v515
    %v1995 = vunpack.c.l.b16 %v516
    %v1996 = vunpack.c.h.b16 %v516
    %v1997 = vunpack.c.l.b16 %v517
    %v1998 = vunpack.c.h.b16 %v517
    %v1999 = vunpack.c.l.b16 %v518
    %v2000 = vunpack.c.h.b16 %v518
    %v2001 = vunpack.c.l.b16 %v519
    %v2002 = vunpack.c.h.b16 %v519
    %v2003 = vunpack.c.l.b16 %v520
    %v2004 = vunpack.c.h.b16 %v520
    %v2005 = vunpack.c.l.b16 %v521
    %v2006 = vunpack.c.h.b16 %v521
    %v2007 = vunpack.c.l.b16 %v522
    %v2008 = vunpack.c.h.b16 %v522
    %v2009 = vunpack.c.l.b16 %v523
    %v2010 = vunpack.c.h.b16 %v523
    %v2011 = vunpack.c.l.b16 %v524
    %v2012 = vunpack.c.h.b16 %v524
    %v2013 = vunpack.c.l.b16 %v525
    %v2014 = vunpack.c.h.b16 %v525
    %v2015 = vunpack.c.l.b16 %v526
    %v2016 = vunpack.c.h.b16 %v526
    %v2017 = vunpack.c.l.b16 %v527
    %v2018 = vunpack.c.h.b16 %v527
    %v2019 = vunpack.c.l.b16 %v528
    %v2020 = vunpack.c.h.b16 %v528
    %v2021 = vunpack.c.l.b16 %v529
    %v2022 = vunpack.c.h.b16 %v529
    %v2023 = vunpack.c.l.b16 %v530
    %v2024 = vunpack.c.h.b16 %v530
    %v2025 = vunpack.c.l.b16 %v531
    %v2026 = vunpack.c.h.b16 %v531
    %v2027 = vunpack.c.l.b16 %v532
    %v2028 = vunpack.c.h.b16 %v532
    %v2029 = vunpack.c.l.b16 %v533
    %v2030 = vunpack.c.h.b16 %v533
    %v2031 = vunpack.c.l.b16 %v534
    %v2032 = vunpack.c.h.b16 %v534
    %v2033 = vunpack.c.l.b16 %v535
    %v2034 = vunpack.c.h.b16 %v535
    %v2035 = vunpack.c.l.b16 %v536
    %v2036 = vunpack.c.h.b16 %v536
    %v2037 = vunpack.c.l.b16 %v537
    %v2038 = vunpack.c.h.b16 %v537
    %v2039 = vunpack.c.l.b16 %v538
    %v2040 = vunpack.c.h.b16 %v538
    %v2041 = vunpack.c.l.b16 %v539
    %v2042 = vunpack.c.h.b16 %v539
    %v2043 = vunpack.c.l.b16 %v540
    %v2044 = vunpack.c.h.b16 %v540
    %v2045 = vunpack.c.l.b16 %v541
    %v2046 = vunpack.c.h.b16 %v541
    %v2047 = vunpack.c.l.b16 %v542
    %v2048 = vunpack.c.h.b16 %v542
    %v2049 = vunpack.c.l.b16 %v543
    %v2050 = vunpack.c.h.b16 %v543
    %v2051 = vunpack.c.l.b16 %v544
    %v2052 = vunpack.c.h.b16 %v544
    %v2053 = vunpack.c.l.b16 %v545
    %v2054 = vunpack.c.h.b16 %v545
    %v2055 = vunpack.c.l.b16 %v546
    %v2056 = vunpack.c.h.b16 %v546
    %v2057 = vunpack.c.l.b16 %v547
    %v2058 = vunpack.c.h.b16 %v547
    %v2059 = vunpack.c.l.b16 %v548
    %v2060 = vunpack.c.h.b16 %v548
    %v2061 = vunpack.c.l.b16 %v549
    %v2062 = vunpack.c.h.b16 %v549
    %v2063 = vunpack.c.l.b16 %v550
    %v2064 = vunpack.c.h.b16 %v550
    %v2065 = vunpack.c.l.b16 %v551
    %v2066 = vunpack.c.h.b16 %v551
    %v2067 = vunpack.c.l.b16 %v552
    %v2068 = vunpack.c.h.b16 %v552
    %v2069 = vunpack.c.l.b16 %v553
    %v2070 = vunpack.c.h.b16 %v553
    %v2071 = vunpack.c.l.b16 %v554
    %v2072 = vunpack.c.h.b16 %v554
    %v2073 = vunpack.c.l.b16 %v555
    %v2074 = vunpack.c.h.b16 %v555
    %v2075 = vunpack.c.l.b16 %v556
    %v2076 = vunpack.c.h.b16 %v556
    %v2077 = vunpack.c.l.b16 %v557
    %v2078 = vunpack.c.h.b16 %v557
    %v2079 = vunpack.c.l.b16 %v558
    %v2080 = vunpack.c.h.b16 %v558
    %v2081 = vunpack.c.l.b16 %v559
    %v2082 = vunpack.c.h.b16 %v559
    %v2083 = vunpack.c.l.b16 %v560
    %v2084 = vunpack.c.h.b16 %v560
    %v2085 = vunpack.c.l.b16 %v561
    %v2086 = vunpack.c.h.b16 %v561
    %v2087 = vunpack.c.l.b16 %v562
    %v2088 = vunpack.c.h.b16 %v562
    %v2089 = vunpack.c.l.b16 %v563
    %v2090 = vunpack.c.h.b16 %v563
    %v2091 = vunpack.c.l.b16 %v564
    %v2092 = vunpack.c.h.b16 %v564
    %v2093 = vunpack.c.l.b16 %v565
    %v2094 = vunpack.c.h.b16 %v565
    %v2095 = vunpack.c.l.b16 %v566
    %v2096 = vunpack.c.h.b16 %v566
    %v2097 = vunpack.c.l.b16 %v567
    %v2098 = vunpack.c.h.b16 %v567
    %v2099 = vunpack.c.l.b16 %v568
    %v2100 = vunpack.c.h.b16 %v568
    %v2101 = vunpack.c.l.b16 %v569
    %v2102 = vunpack.c.h.b16 %v569
    %v2103 = vunpack.c.l.b16 %v570
    %v2104 = vunpack.c.h.b16 %v570
    %v2105 = vunpack.c.l.b16 %v571
    %v2106 = vunpack.c.h.b16 %v571
    %v2107 = vunpack.c.l.b16 %v572
    %v2108 = vunpack.c.h.b16 %v572
    %v2109 = vunpack.c.l.b16 %v573
    %v2110 = vunpack.c.h.b16 %v573
    %v2111 = vunpack.c.l.b16 %v574
    %v2112 = vunpack.c.h.b16 %v574
    %v2113 = vunpack.c.l.b16 %v575
    %v2114 = vunpack.c.h.b16 %v575
    %v2115 = vunpack.c.l.b16 %v576
    %v2116 = vunpack.c.h.b16 %v576
    %v2117 = vunpack.c.l.b16 %v577
    %v2118 = vunpack.c.h.b16 %v577
    %v2119 = vunpack.c.l.b16 %v578
    %v2120 = vunpack.c.h.b16 %v578
    %v2121 = vunpack.c.l.b16 %v579
    %v2122 = vunpack.c.h.b16 %v579
    %v2123 = vunpack.c.l.b16 %v580
    %v2124 = vunpack.c.h.b16 %v580
    %v2125 = vunpack.c.l.b16 %v581
    %v2126 = vunpack.c.h.b16 %v581
    %v2127 = vunpack.c.l.b16 %v582
    %v2128 = vunpack.c.h.b16 %v582
    %v2129 = vunpack.c.l.b16 %v583
    %v2130 = vunpack.c.h.b16 %v583
    %v2131 = vunpack.c.l.b16 %v584
    %v2132 = vunpack.c.h.b16 %v584
    %v2133 = vunpack.c.l.b16 %v585
    %v2134 = vunpack.c.h.b16 %v585
    %v2135 = vunpack.c.l.b16 %v586
    %v2136 = vunpack.c.h.b16 %v586
    %v2137 = vunpack.c.l.b16 %v587
    %v2138 = vunpack.c.h.b16 %v587
    %v2139 = vunpack.c.l.b16 %v588
    %v2140 = vunpack.c.h.b16 %v588
    %v2141 = vunpack.c.l.b16 %v589
    %v2142 = vunpack.c.h.b16 %v589
    %v2143 = vunpack.c.l.b16 %v590
    %v2144 = vunpack.c.h.b16 %v590
    %v2145 = vunpack.c.l.b16 %v591
    %v2146 = vunpack.c.h.b16 %v591
    %v2147 = vunpack.c.l.b16 %v592
    %v2148 = vunpack.c.h.b16 %v592
    %v2149 = vunpack.c.l.b16 %v593
    %v2150 = vunpack.c.h.b16 %v593
    %v2151 = vunpack.c.l.b16 %v594
    %v2152 = vunpack.c.h.b16 %v594
    %v2153 = vunpack.c.l.b16 %v595
    %v2154 = vunpack.c.h.b16 %v595
    %v2155 = vunpack.c.l.b16 %v596
    %v2156 = vunpack.c.h.b16 %v596
    %v2157 = vunpack.c.l.b16 %v597
    %v2158 = vunpack.c.h.b16 %v597
    %v2159 = vunpack.c.l.b16 %v598
    %v2160 = vunpack.c.h.b16 %v598
    %v2161 = vunpack.c.l.b16 %v599
    %v2162 = vunpack.c.h.b16 %v599
    %v2163 = vunpack.c.l.b16 %v600
    %v2164 = vunpack.c.h.b16 %v600
    %v2165 = vunpack.c.l.b16 %v601
    %v2166 = vunpack.c.h.b16 %v601
    %v2167 = vunpack.c.l.b16 %v602
    %v2168 = vunpack.c.h.b16 %v602
    %v2169 = vunpack.c.l.b16 %v603
    %v2170 = vunpack.c.h.b16 %v603
    %v2171 = vunpack.c.l.b16 %v604
    %v2172 = vunpack.c.h.b16 %v604
    %v2173 = vunpack.c.l.b16 %v605
    %v2174 = vunpack.c.h.b16 %v605
    %v2175 = vunpack.c.l.b16 %v606
    %v2176 = vunpack.c.h.b16 %v606
    %v2177 = vunpack.c.l.b16 %v607
    %v2178 = vunpack.c.h.b16 %v607
    %v2179 = vunpack.c.l.b16 %v608
    %v2180 = vunpack.c.h.b16 %v608
    %v2181 = vunpack.c.l.b16 %v609
    %v2182 = vunpack.c.h.b16 %v609
    %v2183 = vunpack.c.l.b16 %v610
    %v2184 = vunpack.c.h.b16 %v610
    %v2185 = vunpack.c.l.b16 %v611
    %v2186 = vunpack.c.h.b16 %v611
    %v2187 = vunpack.c.l.b16 %v612
    %v2188 = vunpack.c.h.b16 %v612
    %v2189 = vunpack.c.l.b16 %v613
    %v2190 = vunpack.c.h.b16 %v613
    %v2191 = vunpack.c.l.b16 %v614
    %v2192 = vunpack.c.h.b16 %v614
    %v2193 = vunpack.c.l.b16 %v615
    %v2194 = vunpack.c.h.b16 %v615
    %v2195 = vunpack.c.l.b16 %v616
    %v2196 = vunpack.c.h.b16 %v616
    %v2197 = vunpack.c.l.b16 %v617
    %v2198 = vunpack.c.h.b16 %v617
    %v2199 = vunpack.c.l.b16 %v618
    %v2200 = vunpack.c.h.b16 %v618
    %v2201 = vunpack.c.l.b16 %v619
    %v2202 = vunpack.c.h.b16 %v619
    %v2203 = vunpack.c.l.b16 %v620
    %v2204 = vunpack.c.h.b16 %v620
    %v2205 = vunpack.c.l.b16 %v621
    %v2206 = vunpack.c.h.b16 %v621
    %v2207 = vunpack.c.l.b16 %v622
    %v2208 = vunpack.c.h.b16 %v622
    %v2209 = vunpack.c.l.b16 %v623
    %v2210 = vunpack.c.h.b16 %v623
    %v2211 = vunpack.c.l.b16 %v624
    %v2212 = vunpack.c.h.b16 %v624
    %v2213 = vunpack.c.l.b16 %v625
    %v2214 = vunpack.c.h.b16 %v625
    %v2215 = vunpack.c.l.b16 %v626
    %v2216 = vunpack.c.h.b16 %v626
    %v2217 = vunpack.c.l.b16 %v627
    %v2218 = vunpack.c.h.b16 %v627
    %v2219 = vunpack.c.l.b16 %v628
    %v2220 = vunpack.c.h.b16 %v628
    %v2221 = vunpack.c.l.b16 %v629
    %v2222 = vunpack.c.h.b16 %v629
    %v2223 = vunpack.c.l.b16 %v630
    %v2224 = vunpack.c.h.b16 %v630
    %v2225 = vunpack.c.l.b16 %v631
    %v2226 = vunpack.c.h.b16 %v631
    %v2227 = vunpack.c.l.b16 %v632
    %v2228 = vunpack.c.h.b16 %v632
    %v2229 = vunpack.c.l.b16 %v633
    %v2230 = vunpack.c.h.b16 %v633
    %v2231 = vunpack.c.l.b16 %v634
    %v2232 = vunpack.c.h.b16 %v634
    %v2233 = vunpack.c.l.b16 %v635
    %v2234 = vunpack.c.h.b16 %v635
    %v2235 = vunpack.c.l.b16 %v636
    %v2236 = vunpack.c.h.b16 %v636
    %v2237 = vunpack.c.l.b16 %v637
    %v2238 = vunpack.c.h.b16 %v637
    %v2239 = vunpack.c.l.b16 %v638
    %v2240 = vunpack.c.h.b16 %v638
    %v2241 = vunpack.c.l.b16 %v639
    %v2242 = vunpack.c.h.b16 %v639
    %v2243 = vunpack.c.l.b16 %v640
    %v2244 = vunpack.c.h.b16 %v640
    %v2245 = vunpack.c.l.b16 %v641
    %v2246 = vunpack.c.h.b16 %v641
    %v2247 = vunpack.c.l.b16 %v642
    %v2248 = vunpack.c.h.b16 %v642
    %v2249 = vunpack.c.l.b16 %v643
    %v2250 = vunpack.c.h.b16 %v643
    %v2251 = vunpack.c.l.b16 %v644
    %v2252 = vunpack.c.h.b16 %v644
    %v2253 = vunpack.c.l.b16 %v645
    %v2254 = vunpack.c.h.b16 %v645
    %v2255 = vunpack.c.l.b16 %v646
    %v2256 = vunpack.c.h.b16 %v646
    %v2257 = vunpack.c.l.b16 %v647
    %v2258 = vunpack.c.h.b16 %v647
    %v2259 = vunpack.c.l.b16 %v648
    %v2260 = vunpack.c.h.b16 %v648
    %v2261 = vunpack.c.l.b16 %v649
    %v2262 = vunpack.c.h.b16 %v649
    %v2263 = vunpack.c.l.b16 %v650
    %v2264 = vunpack.c.h.b16 %v650
    %v2265 = vunpack.c.l.b16 %v651
    %v2266 = vunpack.c.h.b16 %v651
    %v2267 = vunpack.c.l.b16 %v652
    %v2268 = vunpack.c.h.b16 %v652
    %v2269 = vunpack.c.l.b16 %v653
    %v2270 = vunpack.c.h.b16 %v653
    %v2271 = vunpack.c.l.b16 %v654
    %v2272 = vunpack.c.h.b16 %v654
    %v2273 = vunpack.c.l.b16 %v655
    %v2274 = vunpack.c.h.b16 %v655
    %v2275 = vunpack.c.l.b16 %v656
    %v2276 = vunpack.c.h.b16 %v656
    %v2277 = vunpack.c.l.b16 %v657
    %v2278 = vunpack.c.h.b16 %v657
    %v2279 = vunpack.c.l.b16 %v658
    %v2280 = vunpack.c.h.b16 %v658
    %v2281 = vunpack.c.l.b16 %v659
    %v2282 = vunpack.c.h.b16 %v659
    %v2283 = vunpack.c.l.b16 %v660
    %v2284 = vunpack.c.h.b16 %v660
    %v2285 = vunpack.c.l.b16 %v661
    %v2286 = vunpack.c.h.b16 %v661
    %v2287 = vunpack.c.l.b16 %v662
    %v2288 = vunpack.c.h.b16 %v662
    %v2289 = vunpack.c.l.b16 %v663
    %v2290 = vunpack.c.h.b16 %v663
    %v2291 = vunpack.c.l.b16 %v664
    %v2292 = vunpack.c.h.b16 %v664
    %v2293 = vunpack.c.l.b16 %v665
    %v2294 = vunpack.c.h.b16 %v665
    %v2295 = vunpack.c.l.b16 %v666
    %v2296 = vunpack.c.h.b16 %v666
    %v2297 = vunpack.c.l.b16 %v667
    %v2298 = vunpack.c.h.b16 %v667
    %v2299 = vunpack.c.l.b16 %v668
    %v2300 = vunpack.c.h.b16 %v668
    %v2301 = vunpack.c.l.b16 %v669
    %v2302 = vunpack.c.h.b16 %v669
    %v2303 = vunpack.c.l.b16 %v670
    %v2304 = vunpack.c.h.b16 %v670
    %v2305 = vunpack.c.l.b16 %v671
    %v2306 = vunpack.c.h.b16 %v671
    %v2307 = vunpack.c.l.b16 %v672
    %v2308 = vunpack.c.h.b16 %v672
    %v2309 = vunpack.c.l.b16 %v673
    %v2310 = vunpack.c.h.b16 %v673
    %v2311 = vunpack.c.l.b16 %v674
    %v2312 = vunpack.c.h.b16 %v674
    %v2313 = vunpack.c.l.b16 %v675
    %v2314 = vunpack.c.h.b16 %v675
    %v2315 = vunpack.c.l.b16 %v676
    %v2316 = vunpack.c.h.b16 %v676
    %v2317 = vunpack.c.l.b16 %v677
    %v2318 = vunpack.c.h.b16 %v677
    %v2319 = vunpack.c.l.b16 %v678
    %v2320 = vunpack.c.h.b16 %v678
    %v2321 = vunpack.c.l.b16 %v679
    %v2322 = vunpack.c.h.b16 %v679
    %v2323 = vunpack.c.l.b16 %v680
    %v2324 = vunpack.c.h.b16 %v680
    %v2325 = vunpack.c.l.b16 %v681
    %v2326 = vunpack.c.h.b16 %v681
    %v2327 = vunpack.c.l.b16 %v682
    %v2328 = vunpack.c.h.b16 %v682
    %v2329 = vunpack.c.l.b16 %v683
    %v2330 = vunpack.c.h.b16 %v683
    %v2331 = vunpack.c.l.b16 %v684
    %v2332 = vunpack.c.h.b16 %v684
    %v2333 = vunpack.c.l.b16 %v685
    %v2334 = vunpack.c.h.b16 %v685
    %v2335 = vunpack.c.l.b16 %v686
    %v2336 = vunpack.c.h.b16 %v686
    %v2337 = vunpack.c.l.b16 %v687
    %v2338 = vunpack.c.h.b16 %v687
    %v2339 = vunpack.c.l.b16 %v688
    %v2340 = vunpack.c.h.b16 %v688
    %v2341 = vunpack.c.l.b16 %v689
    %v2342 = vunpack.c.h.b16 %v689
    %v2343 = vunpack.c.l.b16 %v690
    %v2344 = vunpack.c.h.b16 %v690
    %v2345 = vunpack.c.l.b16 %v691
    %v2346 = vunpack.c.h.b16 %v691
    %v2347 = vunpack.c.l.b16 %v692
    %v2348 = vunpack.c.h.b16 %v692
    %v2349 = vunpack.c.l.b16 %v693
    %v2350 = vunpack.c.h.b16 %v693
    %v2351 = vunpack.c.l.b16 %v694
    %v2352 = vunpack.c.h.b16 %v694
    %v2353 = vunpack.c.l.b16 %v695
    %v2354 = vunpack.c.h.b16 %v695
    %v2355 = vunpack.c.l.b16 %v696
    %v2356 = vunpack.c.h.b16 %v696
    %v2357 = vunpack.c.l.b16 %v697
    %v2358 = vunpack.c.h.b16 %v697
    %v2359 = vunpack.c.l.b16 %v698
    %v2360 = vunpack.c.h.b16 %v698
    %v2361 = vunpack.c.l.b16 %v699
    %v2362 = vunpack.c.h.b16 %v699
    %v2363 = vunpack.c.l.b16 %v700
    %v2364 = vunpack.c.h.b16 %v700
    %v2365 = vunpack.c.l.b16 %v701
    %v2366 = vunpack.c.h.b16 %v701
    %v2367 = vunpack.c.l.b16 %v702
    %v2368 = vunpack.c.h.b16 %v702
    %v2369 = vunpack.c.l.b16 %v703
    %v2370 = vunpack.c.h.b16 %v703
    %v2371 = vunpack.c.l.b16 %v704
    %v2372 = vunpack.c.h.b16 %v704
    %v2373 = vunpack.c.l.b16 %v705
    %v2374 = vunpack.c.h.b16 %v705
    %v2375 = vunpack.c.l.b16 %v706
    %v2376 = vunpack.c.h.b16 %v706
    %v2377 = vunpack.c.l.b16 %v707
    %v2378 = vunpack.c.h.b16 %v707
    %v2379 = vunpack.c.l.b16 %v708
    %v2380 = vunpack.c.h.b16 %v708
    %v2381 = vunpack.c.l.b16 %v709
    %v2382 = vunpack.c.h.b16 %v709
    %v2383 = vunpack.c.l.b16 %v710
    %v2384 = vunpack.c.h.b16 %v710
    %v2385 = vunpack.c.l.b16 %v711
    %v2386 = vunpack.c.h.b16 %v711
    %v2387 = vunpack.c.l.b16 %v712
    %v2388 = vunpack.c.h.b16 %v712
    %v2389 = vunpack.c.l.b16 %v713
    %v2390 = vunpack.c.h.b16 %v713
    %v2391 = vunpack.c.l.b16 %v714
    %v2392 = vunpack.c.h.b16 %v714
    %v2393 = vunpack.c.l.b16 %v715
    %v2394 = vunpack.c.h.b16 %v715
    %v2395 = vunpack.c.l.b16 %v716
    %v2396 = vunpack.c.h.b16 %v716
    %v2397 = vunpack.c.l.b16 %v717
    %v2398 = vunpack.c.h.b16 %v717
    %v2399 = vunpack.c.l.b16 %v718
    %v2400 = vunpack.c.h.b16 %v718
    %v2401 = vunpack.c.l.b16 %v719
    %v2402 = vunpack.c.h.b16 %v719
    %v2403 = vunpack.c.l.b16 %v720
    %v2404 = vunpack.c.h.b16 %v720
    %v2405 = vunpack.c.l.b16 %v721
    %v2406 = vunpack.c.h.b16 %v721
    %v2407 = vunpack.c.l.b16 %v722
    %v2408 = vunpack.c.h.b16 %v722
    %v2409 = vunpack.c.l.b16 %v723
    %v2410 = vunpack.c.h.b16 %v723
    %v2411 = vunpack.c.l.b16 %v724
    %v2412 = vunpack.c.h.b16 %v724
    %v2413 = vunpack.c.l.b16 %v725
    %v2414 = vunpack.c.h.b16 %v725
    %v2415 = vunpack.c.l.b16 %v726
    %v2416 = vunpack.c.h.b16 %v726
    %v2417 = vunpack.c.l.b16 %v727
    %v2418 = vunpack.c.h.b16 %v727
    %v2419 = vunpack.c.l.b16 %v728
    %v2420 = vunpack.c.h.b16 %v728
    %v2421 = vunpack.c.l.b16 %v729
    %v2422 = vunpack.c.h.b16 %v729
    %v2423 = vunpack.c.l.b16 %v730
    %v2424 = vunpack.c.h.b16 %v730
    %v2425 = vunpack.c.l.b16 %v731
    %v2426 = vunpack.c.h.b16 %v731
    %v2427 = vunpack.c.l.b16 %v732
    %v2428 = vunpack.c.h.b16 %v732
    %v2429 = vunpack.c.l.b16 %v733
    %v2430 = vunpack.c.h.b16 %v733
    %v2431 = vunpack.c.l.b16 %v734
    %v2432 = vunpack.c.h.b16 %v734
    %v2433 = vunpack.c.l.b16 %v735
    %v2434 = vunpack.c.h.b16 %v735
    %v2435 = vunpack.c.l.b16 %v736
    %v2436 = vunpack.c.h.b16 %v736
    %v2437 = vunpack.c.l.b16 %v737
    %v2438 = vunpack.c.h.b16 %v737
    %v2439 = vunpack.c.l.b16 %v738
    %v2440 = vunpack.c.h.b16 %v738
    %v2441 = vunpack.c.l.b16 %v739
    %v2442 = vunpack.c.h.b16 %v739
    %v2443 = vunpack.c.l.b16 %v740
    %v2444 = vunpack.c.h.b16 %v740
    %v2445 = vunpack.c.l.b16 %v741
    %v2446 = vunpack.c.h.b16 %v741
    %v2447 = vunpack.c.l.b16 %v742
    %v2448 = vunpack.c.h.b16 %v742
    %v2449 = vunpack.c.l.b16 %v743
    %v2450 = vunpack.c.h.b16 %v743
    %v2451 = vunpack.c.l.b16 %v744
    %v2452 = vunpack.c.h.b16 %v744
    %v2453 = vunpack.c.l.b16 %v745
    %v2454 = vunpack.c.h.b16 %v745
    %v2455 = vunpack.c.l.b16 %v746
    %v2456 = vunpack.c.h.b16 %v746
    %v2457 = vunpack.c.l.b16 %v747
    %v2458 = vunpack.c.h.b16 %v747
    %v2459 = vunpack.c.l.b16 %v748
    %v2460 = vunpack.c.h.b16 %v748
    %v2461 = vunpack.c.l.b16 %v749
    %v2462 = vunpack.c.h.b16 %v749
    %v2463 = vunpack.c.l.b16 %v750
    %v2464 = vunpack.c.h.b16 %v750
    %v2465 = vunpack.c.l.b16 %v751
    %v2466 = vunpack.c.h.b16 %v751
    %v2467 = vunpack.c.l.b16 %v752
    %v2468 = vunpack.c.h.b16 %v752
    %v2469 = vunpack.c.l.b16 %v753
    %v2470 = vunpack.c.h.b16 %v753
    %v2471 = vunpack.c.l.b16 %v754
    %v2472 = vunpack.c.h.b16 %v754
    %v2473 = vunpack.c.l.b16 %v755
    %v2474 = vunpack.c.h.b16 %v755
    %v2475 = vunpack.c.l.b16 %v756
    %v2476 = vunpack.c.h.b16 %v756
    %v2477 = vunpack.c.l.b16 %v757
    %v2478 = vunpack.c.h.b16 %v757
    %v2479 = vunpack.c.l.b16 %v758
    %v2480 = vunpack.c.h.b16 %v758
    %v2481 = vunpack.c.l.b16 %v759
    %v2482 = vunpack.c.h.b16 %v759
    %v2483 = vunpack.c.l.b16 %v760
    %v2484 = vunpack.c.h.b16 %v760
    %v2485 = vunpack.c.l.b16 %v761
    %v2486 = vunpack.c.h.b16 %v761
    %v2487 = vunpack.c.l.b16 %v762
    %v2488 = vunpack.c.h.b16 %v762
    %v2489 = vunpack.c.l.b16 %v763
    %v2490 = vunpack.c.h.b16 %v763
    %v2491 = vunpack.c.l.b16 %v764
    %v2492 = vunpack.c.h.b16 %v764
    %v2493 = vunpack.c.l.b16 %v765
    %v2494 = vunpack.c.h.b16 %v765
    %v2495 = vunpack.c.l.b16 %v766
    %v2496 = vunpack.c.h.b16 %v766
    %v2497 = vunpack.c.l.b16 %v767
    %v2498 = vunpack.c.h.b16 %v767
    %v2499 = vunpack.c.l.b16 %v768
    %v2500 = vunpack.c.h.b16 %v768
    %v2501 = vunpack.c.l.b16 %v769
    %v2502 = vunpack.c.h.b16 %v769
    %v2503 = vunpack.c.l.b16 %v770
    %v2504 = vunpack.c.h.b16 %v770
    %v2505 = vunpack.c.l.b16 %v771
    %v2506 = vunpack.c.h.b16 %v771
    %v2507 = vunpack.c.l.b16 %v772
    %v2508 = vunpack.c.h.b16 %v772
    %v2509 = vunpack.c.l.b16 %v773
    %v2510 = vunpack.c.h.b16 %v773
    %v2511 = vunpack.c.l.b16 %v774
    %v2512 = vunpack.c.h.b16 %v774
    %v2513 = vunpack.c.l.b16 %v775
    %v2514 = vunpack.c.h.b16 %v775
    %v2515 = vunpack.c.l.b16 %v776
    %v2516 = vunpack.c.h.b16 %v776
    %v2517 = vunpack.c.l.b16 %v777
    %v2518 = vunpack.c.h.b16 %v777
    %v2519 = vunpack.c.l.b16 %v778
    %v2520 = vunpack.c.h.b16 %v778
    %v2521 = vunpack.c.l.b16 %v779
    %v2522 = vunpack.c.h.b16 %v779
    %v2523 = vunpack.c.l.b16 %v780
    %v2524 = vunpack.c.h.b16 %v780
    %v2525 = vunpack.c.l.b16 %v781
    %v2526 = vunpack.c.h.b16 %v781
    %v2527 = vunpack.c.l.b16 %v782
    %v2528 = vunpack.c.h.b16 %v782
    %v2529 = vunpack.c.l.b16 %v783
    %v2530 = vunpack.c.h.b16 %v783
    %v2531 = vunpack.c.l.b16 %v784
    %v2532 = vunpack.c.h.b16 %v784
    %v2533 = vunpack.c.l.b16 %v785
    %v2534 = vunpack.c.h.b16 %v785
    %v2535 = vunpack.c.l.b16 %v786
    %v2536 = vunpack.c.h.b16 %v786
    %v2537 = vunpack.c.l.b16 %v787
    %v2538 = vunpack.c.h.b16 %v787
    %v2539 = vunpack.c.l.b16 %v788
    %v2540 = vunpack.c.h.b16 %v788
    %v2541 = vunpack.c.l.b16 %v789
    %v2542 = vunpack.c.h.b16 %v789
    %v2543 = vunpack.c.l.b16 %v790
    %v2544 = vunpack.c.h.b16 %v790
    %v2545 = vunpack.c.l.b16 %v791
    %v2546 = vunpack.c.h.b16 %v791
    %v2547 = vunpack.c.l.b16 %v792
    %v2548 = vunpack.c.h.b16 %v792
    %v2549 = vunpack.c.l.b16 %v793
    %v2550 = vunpack.c.h.b16 %v793
    %v2551 = vunpack.c.l.b16 %v794
    %v2552 = vunpack.c.h.b16 %v794
    %v2553 = vunpack.c.l.b16 %v795
    %v2554 = vunpack.c.h.b16 %v795
    %v2555 = vunpack.c.l.b16 %v796
    %v2556 = vunpack.c.h.b16 %v796
    %v2557 = vunpack.c.l.b16 %v797
    %v2558 = vunpack.c.h.b16 %v797
    %v2559 = vunpack.c.l.b16 %v798
    %v2560 = vunpack.c.h.b16 %v798
    %v2561 = vunpack.c.l.b16 %v799
    %v2562 = vunpack.c.h.b16 %v799
    %v2563 = vunpack.c.l.b16 %v800
    %v2564 = vunpack.c.h.b16 %v800
    %v2565 = vunpack.c.l.b16 %v801
    %v2566 = vunpack.c.h.b16 %v801
    %v2567 = vunpack.c.l.b16 %v802
    %v2568 = vunpack.c.h.b16 %v802
    %v2569 = vunpack.c.l.b16 %v803
    %v2570 = vunpack.c.h.b16 %v803
    %v2571 = vunpack.c.l.b16 %v804
    %v2572 = vunpack.c.h.b16 %v804
    %v2573 = vunpack.c.l.b16 %v805
    %v2574 = vunpack.c.h.b16 %v805
    %v2575 = vunpack.c.l.b16 %v806
    %v2576 = vunpack.c.h.b16 %v806
    %v2577 = vunpack.c.l.b16 %v807
    %v2578 = vunpack.c.h.b16 %v807
    %v2579 = vunpack.c.l.b16 %v808
    %v2580 = vunpack.c.h.b16 %v808
    %v2581 = vunpack.c.l.b16 %v809
    %v2582 = vunpack.c.h.b16 %v809
    %v2583 = vunpack.c.l.b16 %v810
    %v2584 = vunpack.c.h.b16 %v810
    %v2585 = vunpack.c.l.b16 %v811
    %v2586 = vunpack.c.h.b16 %v811
    %v2587 = vunpack.c.l.b16 %v812
    %v2588 = vunpack.c.h.b16 %v812
    %v2589 = vunpack.c.l.b16 %v813
    %v2590 = vunpack.c.h.b16 %v813
    %v2591 = vunpack.c.l.b16 %v814
    %v2592 = vunpack.c.h.b16 %v814
    %v2593 = vunpack.c.l.b16 %v815
    %v2594 = vunpack.c.h.b16 %v815
    %v2595 = vunpack.c.l.b16 %v816
    %v2596 = vunpack.c.h.b16 %v816
    %v2597 = vunpack.c.l.b16 %v817
    %v2598 = vunpack.c.h.b16 %v817
    %v2599 = vunpack.c.l.b16 %v818
    %v2600 = vunpack.c.h.b16 %v818
    %v2601 = vunpack.c.l.b16 %v819
    %v2602 = vunpack.c.h.b16 %v819
    %v2603 = vunpack.c.l.b16 %v820
    %v2604 = vunpack.c.h.b16 %v820
    %v2605 = vunpack.c.l.b16 %v821
    %v2606 = vunpack.c.h.b16 %v821
    %v2607 = vunpack.c.l.b16 %v822
    %v2608 = vunpack.c.h.b16 %v822
    %v2609 = vunpack.c.l.b16 %v823
    %v2610 = vunpack.c.h.b16 %v823
    %v2611 = vunpack.c.l.b16 %v824
    %v2612 = vunpack.c.h.b16 %v824
    %v2613 = vunpack.c.l.b16 %v825
    %v2614 = vunpack.c.h.b16 %v825
    %v2615 = vunpack.c.l.b16 %v826
    %v2616 = vunpack.c.h.b16 %v826
    %v2617 = vunpack.c.l.b16 %v827
    %v2618 = vunpack.c.h.b16 %v827
    %v2619 = vunpack.c.l.b16 %v828
    %v2620 = vunpack.c.h.b16 %v828
    %v2621 = vunpack.c.l.b16 %v829
    %v2622 = vunpack.c.h.b16 %v829
    %v2623 = vunpack.c.l.b16 %v830
    %v2624 = vunpack.c.h.b16 %v830
    %v2625 = vunpack.c.l.b16 %v831
    %v2626 = vunpack.c.h.b16 %v831
    %v2627 = vunpack.c.l.b16 %v832
    %v2628 = vunpack.c.h.b16 %v832
    %v2629 = vunpack.c.l.b16 %v833
    %v2630 = vunpack.c.h.b16 %v833
    %v2631 = vunpack.c.l.b16 %v834
    %v2632 = vunpack.c.h.b16 %v834
    %v2633 = vunpack.c.l.b16 %v835
    %v2634 = vunpack.c.h.b16 %v835
    %v2635 = vunpack.c.l.b16 %v836
    %v2636 = vunpack.c.h.b16 %v836
    %v2637 = vunpack.c.l.b16 %v837
    %v2638 = vunpack.c.h.b16 %v837
    %v2639 = vunpack.c.l.b16 %v838
    %v2640 = vunpack.c.h.b16 %v838
    %v2641 = vunpack.c.l.b16 %v839
    %v2642 = vunpack.c.h.b16 %v839
    %v2643 = vunpack.c.l.b16 %v840
    %v2644 = vunpack.c.h.b16 %v840
    %v2645 = vunpack.c.l.b16 %v841
    %v2646 = vunpack.c.h.b16 %v841
    %v2647 = vunpack.c.l.b16 %v842
    %v2648 = vunpack.c.h.b16 %v842
    %v2649 = vunpack.c.l.b16 %v843
    %v2650 = vunpack.c.h.b16 %v843
    %v2651 = vunpack.c.l.b16 %v844
    %v2652 = vunpack.c.h.b16 %v844
    %v2653 = vunpack.c.l.b16 %v845
    %v2654 = vunpack.c.h.b16 %v845
    %v2655 = vunpack.c.l.b16 %v846
    %v2656 = vunpack.c.h.b16 %v846
    %v2657 = vunpack.c.l.b16 %v847
    %v2658 = vunpack.c.h.b16 %v847
    %v2659 = vunpack.c.l.b16 %v848
    %v2660 = vunpack.c.h.b16 %v848
    %v2661 = vunpack.c.l.b16 %v849
    %v2662 = vunpack.c.h.b16 %v849
    %v2663 = vunpack.c.l.b16 %v850
    %v2664 = vunpack.c.h.b16 %v850
    %v2665 = vunpack.c.l.b16 %v851
    %v2666 = vunpack.c.h.b16 %v851
    %v2667 = vunpack.c.l.b16 %v852
    %v2668 = vunpack.c.h.b16 %v852
    %v2669 = vunpack.c.l.b16 %v853
    %v2670 = vunpack.c.h.b16 %v853
    %v2671 = vunpack.c.l.b16 %v854
    %v2672 = vunpack.c.h.b16 %v854
    %v2673 = vunpack.c.l.b16 %v855
    %v2674 = vunpack.c.h.b16 %v855
    %v2675 = vunpack.c.l.b16 %v856
    %v2676 = vunpack.c.h.b16 %v856
    %v2677 = vunpack.c.l.b16 %v857
    %v2678 = vunpack.c.h.b16 %v857
    %v2679 = vunpack.c.l.b16 %v858
    %v2680 = vunpack.c.h.b16 %v858
    %v2681 = vunpack.c.l.b16 %v859
    %v2682 = vunpack.c.h.b16 %v859
    %v2683 = vunpack.c.l.b16 %v860
    %v2684 = vunpack.c.h.b16 %v860
    %v2685 = vunpack.c.l.b16 %v861
    %v2686 = vunpack.c.h.b16 %v861
    %v2687 = vunpack.c.l.b16 %v862
    %v2688 = vunpack.c.h.b16 %v862
    %v2689 = vunpack.c.l.b16 %v863
    %v2690 = vunpack.c.h.b16 %v863
    %v2691 = vunpack.c.l.b16 %v864
    %v2692 = vunpack.c.h.b16 %v864
    %v2693 = vunpack.c.l.b16 %v865
    %v2694 = vunpack.c.h.b16 %v865
    %v2695 = vunpack.c.l.b16 %v866
    %v2696 = vunpack.c.h.b16 %v866
    %v2697 = vunpack.c.l.b16 %v867
    %v2698 = vunpack.c.h.b16 %v867
    %v2699 = vunpack.c.l.b16 %v868
    %v2700 = vunpack.c.h.b16 %v868
    %v2701 = vunpack.c.l.b16 %v869
    %v2702 = vunpack.c.h.b16 %v869
    %v2703 = vunpack.c.l.b16 %v870
    %v2704 = vunpack.c.h.b16 %v870
    %v2705 = vunpack.c.l.b16 %v871
    %v2706 = vunpack.c.h.b16 %v871
    %v2707 = vunpack.c.l.b16 %v872
    %v2708 = vunpack.c.h.b16 %v872
    %v2709 = vunpack.c.l.b16 %v873
    %v2710 = vunpack.c.h.b16 %v873
    %v2711 = vunpack.c.l.b16 %v874
    %v2712 = vunpack.c.h.b16 %v874
    %v2713 = vunpack.c.l.b16 %v875
    %v2714 = vunpack.c.h.b16 %v875
    %v2715 = vunpack.c.l.b16 %v876
    %v2716 = vunpack.c.h.b16 %v876
    %v2717 = vunpack.c.l.b16 %v877
    %v2718 = vunpack.c.h.b16 %v877
    %v2719 = vunpack.c.l.b16 %v878
    %v2720 = vunpack.c.h.b16 %v878
    %v2721 = vunpack.c.l.b16 %v879
    %v2722 = vunpack.c.h.b16 %v879
    %v2723 = vunpack.c.l.b16 %v880
    %v2724 = vunpack.c.h.b16 %v880
    %v2725 = vunpack.c.l.b16 %v881
    %v2726 = vunpack.c.h.b16 %v881
    %v2727 = vunpack.c.l.b16 %v882
    %v2728 = vunpack.c.h.b16 %v882
    %v2729 = vunpack.c.l.b16 %v883
    %v2730 = vunpack.c.h.b16 %v883
    %v2731 = vunpack.c.l.b16 %v884
    %v2732 = vunpack.c.h.b16 %v884
    %v2733 = vunpack.c.l.b16 %v885
    %v2734 = vunpack.c.h.b16 %v885
    %v2735 = vunpack.c.l.b16 %v886
    %v2736 = vunpack.c.h.b16 %v886
    %v2737 = vunpack.c.l.b16 %v887
    %v2738 = vunpack.c.h.b16 %v887
    %v2739 = vunpack.c.l.b16 %v888
    %v2740 = vunpack.c.h.b16 %v888
    %v2741 = vunpack.c.l.b16 %v889
    %v2742 = vunpack.c.h.b16 %v889
    %v2743 = vunpack.c.l.b16 %v890
    %v2744 = vunpack.c.h.b16 %v890
    %v2745 = vunpack.c.l.b16 %v891
    %v2746 = vunpack.c.h.b16 %v891
    %v2747 = vunpack.c.l.b16 %v892
    %v2748 = vunpack.c.h.b16 %v892
    %v2749 = vpack.c.b16 %v1729, %v1725
    %v2750 = vpack.c.b16 %v1730, %v1726
    %v2751 = vpack.c.b16 %v1731, %v1727
    %v2752 = vpack.c.b16 %v1732, %v1728
    %v2753 = vpack.c.b16 %v1737, %v1733
    %v2754 = vpack.c.b16 %v1738, %v1734
    %v2755 = vpack.c.b16 %v1739, %v1735
    %v2756 = vpack.c.b16 %v1740, %v1736
    %v2757 = vpack.c.b16 %v1745, %v1741
    %v2758 = vpack.c.b16 %v1746, %v1742
    %v2759 = vpack.c.b16 %v1747, %v1743
    %v2760 = vpack.c.b16 %v1748, %v1744
    %v2761 = vpack.c.b16 %v1753, %v1749
    %v2762 = vpack.c.b16 %v1754, %v1750
    %v2763 = vpack.c.b16 %v1755, %v1751
    %v2764 = vpack.c.b16 %v1756, %v1752
    %v2765 = vpack.c.b16 %v1761, %v1757
    %v2766 = vpack.c.b16 %v1762, %v1758
    %v2767 = vpack.c.b16 %v1763, %v1759
    %v2768 = vpack.c.b16 %v1764, %v1760
    %v2769 = vpack.c.b16 %v1769, %v1765
    %v2770 = vpack.c.b16 %v1770, %v1766
    %v2771 = vpack.c.b16 %v1771, %v1767
    %v2772 = vpack.c.b16 %v1772, %v1768
    %v2773 = vpack.c.b16 %v1777, %v1773
    %v2774 = vpack.c.b16 %v1778, %v1774
    %v2775 = vpack.c.b16 %v1779, %v1775
    %v2776 = vpack.c.b16 %v1780, %v1776
    %v2777 = vpack.c.b16 %v1785, %v1781
    %v2778 = vpack.c.b16 %v1786, %v1782
    %v2779 = vpack.c.b16 %v1787, %v1783
    %v2780 = vpack.c.b16 %v1788, %v1784
    %v2781 = vpack.c.b16 %v1793, %v1789
    %v2782 = vpack.c.b16 %v1794, %v1790
    %v2783 = vpack.c.b16 %v1795, %v1791
    %v2784 = vpack.c.b16 %v1796, %v1792
    %v2785 = vpack.c.b16 %v1801, %v1797
    %v2786 = vpack.c.b16 %v1802, %v1798
    %v2787 = vpack.c.b16 %v1803, %v1799
    %v2788 = vpack.c.b16 %v1804, %v1800
    %v2789 = vpack.c.b16 %v1809, %v1805
    %v2790 = vpack.c.b16 %v1810, %v1806
    %v2791 = vpack.c.b16 %v1811, %v1807
    %v2792 = vpack.c.b16 %v1812, %v1808
    %v2793 = vpack.c.b16 %v1817, %v1813
    %v2794 = vpack.c.b16 %v1818, %v1814
    %v2795 = vpack.c.b16 %v1819, %v1815
    %v2796 = vpack.c.b16 %v1820, %v1816
    %v2797 = vpack.c.b16 %v1825, %v1821
    %v2798 = vpack.c.b16 %v1826, %v1822
    %v2799 = vpack.c.b16 %v1827, %v1823
    %v2800 = vpack.c.b16 %v1828, %v1824
    %v2801 = vpack.c.b16 %v1833, %v1829
    %v2802 = vpack.c.b16 %v1834, %v1830
    %v2803 = vpack.c.b16 %v1835, %v1831
    %v2804 = vpack.c.b16 %v1836, %v1832
    %v2805 = vpack.c.b16 %v1841, %v1837
    %v2806 = vpack.c.b16 %v1842, %v1838
    %v2807 = vpack.c.b16 %v1843, %v1839
    %v2808 = vpack.c.b16 %v1844, %v1840
    %v2809 = vpack.c.b16 %v1849, %v1845
    %v2810 = vpack.c.b16 %v1850, %v1846
    %v2811 = vpack.c.b16 %v1851, %v1847
    %v2812 = vpack.c.b16 %v1852, %v1848
    %v2813 = vpack.c.b16 %v1857, %v1853
    %v2814 = vpack.c.b16 %v1858, %v1854
    %v2815 = vpack.c.b16 %v1859, %v1855
    %v2816 = vpack.c.b16 %v1860, %v1856
    %v2817 = vpack.c.b16 %v1865, %v1861
    %v2818 = vpack.c.b16 %v1866, %v1862
    %v2819 = vpack.c.b16 %v1867, %v1863
    %v2820 = vpack.c.b16 %v1868, %v1864
    %v2821 = vpack.c.b16 %v1873, %v1869
    %v2822 = vpack.c.b16 %v1874, %v1870
    %v2823 = vpack.c.b16 %v1875, %v1871
    %v2824 = vpack.c.b16 %v1876, %v1872
    %v2825 = vpack.c.b16 %v1881, %v1877
    %v2826 = vpack.c.b16 %v1882, %v1878
    %v2827 = vpack.c.b16 %v1883, %v1879
    %v2828 = vpack.c.b16 %v1884, %v1880
    %v2829 = vpack.c.b16 %v1889, %v1885
    %v2830 = vpack.c.b16 %v1890, %v1886
    %v2831 = vpack.c.b16 %v1891, %v1887
    %v2832 = vpack.c.b16 %v1892, %v1888
    %v2833 = vpack.c.b16 %v1897, %v1893
    %v2834 = vpack.c.b16 %v1898, %v1894
    %v2835 = vpack.c.b16 %v1899, %v1895
    %v2836 = vpack.c.b16 %v1900, %v1896
    %v2837 = vpack.c.b16 %v1905, %v1901
    %v2838 = vpack.c.b16 %v1906, %v1902
    %v2839 = vpack.c.b16 %v1907, %v1903
    %v2840 = vpack.c.b16 %v1908, %v1904
    %v2841 = vpack.c.b16 %v1913, %v1909
    %v2842 = vpack.c.b16 %v1914, %v1910
    %v2843 = vpack.c.b16 %v1915, %v1911
    %v2844 = vpack.c.b16 %v1916, %v1912
    %v2845 = vpack.c.b16 %v1921, %v1917
    %v2846 = vpack.c.b16 %v1922, %v1918
    %v2847 = vpack.c.b16 %v1923, %v1919
    %v2848 = vpack.c.b16 %v1924, %v1920
    %v2849 = vpack.c.b16 %v1929, %v1925
    %v2850 = vpack.c.b16 %v1930, %v1926
    %v2851 = vpack.c.b16 %v1931, %v1927
    %v2852 = vpack.c.b16 %v1932, %v1928
    %v2853 = vpack.c.b16 %v1937, %v1933
    %v2854 = vpack.c.b16 %v1938, %v1934
    %v2855 = vpack.c.b16 %v1939, %v1935
    %v2856 = vpack.c.b16 %v1940, %v1936
    %v2857 = vpack.c.b16 %v1945, %v1941
    %v2858 = vpack.c.b16 %v1946, %v1942
    %v2859 = vpack.c.b16 %v1947, %v1943
    %v2860 = vpack.c.b16 %v1948, %v1944
    %v2861 = vpack.c.b16 %v1953, %v1949
    %v2862 = vpack.c.b16 %v1954, %v1950
    %v2863 = vpack.c.b16 %v1955, %v1951
    %v2864 = vpack.c.b16 %v1956, %v1952
    %v2865 = vpack.c.b16 %v1961, %v1957
    %v2866 = vpack.c.b16 %v1962, %v1958
    %v2867 = vpack.c.b16 %v1963, %v1959
    %v2868 = vpack.c.b16 %v1964, %v1960
    %v2869 = vpack.c.b16 %v1969, %v1965
    %v2870 = vpack.c.b16 %v1970, %v1966
    %v2871 = vpack.c.b16 %v1971, %v1967
    %v2872 = vpack.c.b16 %v1972, %v1968
    %v2873 = vpack.c.b16 %v1977, %v1973
    %v2874 = vpack.c.b16 %v1978, %v1974
    %v2875 = vpack.c.b16 %v1979, %v1975
    %v2876 = vpack.c.b16 %v1980, %v1976
    %v2877 = vpack.c.b16 %v1985, %v1981
    %v2878 = vpack.c.b16 %v1986, %v1982
    %v2879 = vpack.c.b16 %v1987, %v1983
    %v2880 = vpack.c.b16 %v1988, %v1984
    %v2881 = vpack.c.b16 %v1993, %v1989
    %v2882 = vpack.c.b16 %v1994, %v1990
    %v2883 = vpack.c.b16 %v1995, %v1991
    %v2884 = vpack.c.b16 %v1996, %v1992
    %v2885 = vpack.c.b16 %v2001, %v1997
    %v2886 = vpack.c.b16 %v2002, %v1998
    %v2887 = vpack.c.b16 %v2003, %v1999
    %v2888 = vpack.c.b16 %v2004, %v2000
    %v2889 = vpack.c.b16 %v2009, %v2005
    %v2890 = vpack.c.b16 %v2010, %v2006
    %v2891 = vpack.c.b16 %v2011, %v2007
    %v2892 = vpack.c.b16 %v2012, %v2008
    %v2893 = vpack.c.b16 %v2017, %v2013
    %v2894 = vpack.c.b16 %v2018, %v2014
    %v2895 = vpack.c.b16 %v2019, %v2015
    %v2896 = vpack.c.b16 %v2020, %v2016
    %v2897 = vpack.c.b16 %v2025, %v2021
    %v2898 = vpack.c.b16 %v2026, %v2022
    %v2899 = vpack.c.b16 %v2027, %v2023
    %v2900 = vpack.c.b16 %v2028, %v2024
    %v2901 = vpack.c.b16 %v2033, %v2029
    %v2902 = vpack.c.b16 %v2034, %v2030
    %v2903 = vpack.c.b16 %v2035, %v2031
    %v2904 = vpack.c.b16 %v2036, %v2032
    %v2905 = vpack.c.b16 %v2041, %v2037
    %v2906 = vpack.c.b16 %v2042, %v2038
    %v2907 = vpack.c.b16 %v2043, %v2039
    %v2908 = vpack.c.b16 %v2044, %v2040
    %v2909 = vpack.c.b16 %v2049, %v2045
    %v2910 = vpack.c.b16 %v2050, %v2046
    %v2911 = vpack.c.b16 %v2051, %v2047
    %v2912 = vpack.c.b16 %v2052, %v2048
    %v2913 = vpack.c.b16 %v2057, %v2053
    %v2914 = vpack.c.b16 %v2058, %v2054
    %v2915 = vpack.c.b16 %v2059, %v2055
    %v2916 = vpack.c.b16 %v2060, %v2056
    %v2917 = vpack.c.b16 %v2065, %v2061
    %v2918 = vpack.c.b16 %v2066, %v2062
    %v2919 = vpack.c.b16 %v2067, %v2063
    %v2920 = vpack.c.b16 %v2068, %v2064
    %v2921 = vpack.c.b16 %v2073, %v2069
    %v2922 = vpack.c.b16 %v2074, %v2070
    %v2923 = vpack.c.b16 %v2075, %v2071
    %v2924 = vpack.c.b16 %v2076, %v2072
    %v2925 = vpack.c.b16 %v2081, %v2077
    %v2926 = vpack.c.b16 %v2082, %v2078
    %v2927 = vpack.c.b16 %v2083, %v2079
    %v2928 = vpack.c.b16 %v2084, %v2080
    %v2929 = vpack.c.b16 %v2089, %v2085
    %v2930 = vpack.c.b16 %v2090, %v2086
    %v2931 = vpack.c.b16 %v2091, %v2087
    %v2932 = vpack.c.b16 %v2092, %v2088
    %v2933 = vpack.c.b16 %v2097, %v2093
    %v2934 = vpack.c.b16 %v2098, %v2094
    %v2935 = vpack.c.b16 %v2099, %v2095
    %v2936 = vpack.c.b16 %v2100, %v2096
    %v2937 = vpack.c.b16 %v2105, %v2101
    %v2938 = vpack.c.b16 %v2106, %v2102
    %v2939 = vpack.c.b16 %v2107, %v2103
    %v2940 = vpack.c.b16 %v2108, %v2104
    %v2941 = vpack.c.b16 %v2113, %v2109
    %v2942 = vpack.c.b16 %v2114, %v2110
    %v2943 = vpack.c.b16 %v2115, %v2111
    %v2944 = vpack.c.b16 %v2116, %v2112
    %v2945 = vpack.c.b16 %v2121, %v2117
    %v2946 = vpack.c.b16 %v2122, %v2118
    %v2947 = vpack.c.b16 %v2123, %v2119
    %v2948 = vpack.c.b16 %v2124, %v2120
    %v2949 = vpack.c.b16 %v2129, %v2125
    %v2950 = vpack.c.b16 %v2130, %v2126
    %v2951 = vpack.c.b16 %v2131, %v2127
    %v2952 = vpack.c.b16 %v2132, %v2128
    %v2953 = vpack.c.b16 %v2137, %v2133
    %v2954 = vpack.c.b16 %v2138, %v2134
    %v2955 = vpack.c.b16 %v2139, %v2135
    %v2956 = vpack.c.b16 %v2140, %v2136
    %v2957 = vpack.c.b16 %v2145, %v2141
    %v2958 = vpack.c.b16 %v2146, %v2142
    %v2959 = vpack.c.b16 %v2147, %v2143
    %v2960 = vpack.c.b16 %v2148, %v2144
    %v2961 = vpack.c.b16 %v2153, %v2149
    %v2962 = vpack.c.b16 %v2154, %v2150
    %v2963 = vpack.c.b16 %v2155, %v2151
    %v2964 = vpack.c.b16 %v2156, %v2152
    %v2965 = vpack.c.b16 %v2161, %v2157
    %v2966 = vpack.c.b16 %v2162, %v2158
    %v2967 = vpack.c.b16 %v2163, %v2159
    %v2968 = vpack.c.b16 %v2164, %v2160
    %v2969 = vpack.c.b16 %v2169, %v2165
    %v2970 = vpack.c.b16 %v2170, %v2166
    %v2971 = vpack.c.b16 %v2171, %v2167
    %v2972 = vpack.c.b16 %v2172, %v2168
    %v2973 = vpack.c.b16 %v2177, %v2173
    %v2974 = vpack.c.b16 %v2178, %v2174
    %v2975 = vpack.c.b16 %v2179, %v2175
    %v2976 = vpack.c.b16 %v2180, %v2176
    %v2977 = vpack.c.b16 %v2185, %v2181
    %v2978 = vpack.c.b16 %v2186, %v2182
    %v2979 = vpack.c.b16 %v2187, %v2183
    %v2980 = vpack.c.b16 %v2188, %v2184
    %v2981 = vpack.c.b16 %v2193, %v2189
    %v2982 = vpack.c.b16 %v2194, %v2190
    %v2983 = vpack.c.b16 %v2195, %v2191
    %v2984 = vpack.c.b16 %v2196, %v2192
    %v2985 = vpack.c.b16 %v2201, %v2197
    %v2986 = vpack.c.b16 %v2202, %v2198
    %v2987 = vpack.c.b16 %v2203, %v2199
    %v2988 = vpack.c.b16 %v2204, %v2200
    %v2989 = vpack.c.b16 %v2209, %v2205
    %v2990 = vpack.c.b16 %v2210, %v2206
    %v2991 = vpack.c.b16 %v2211, %v2207
    %v2992 = vpack.c.b16 %v2212, %v2208
    %v2993 = vpack.c.b16 %v2217, %v2213
    %v2994 = vpack.c.b16 %v2218, %v2214
    %v2995 = vpack.c.b16 %v2219, %v2215
    %v2996 = vpack.c.b16 %v2220, %v2216
    %v2997 = vpack.c.b16 %v2225, %v2221
    %v2998 = vpack.c.b16 %v2226, %v2222
    %v2999 = vpack.c.b16 %v2227, %v2223
    %v3000 = vpack.c.b16 %v2228, %v2224
    %v3001 = vpack.c.b16 %v2233, %v2229
    %v3002 = vpack.c.b16 %v2234, %v2230
    %v3003 = vpack.c.b16 %v2235, %v2231
    %v3004 = vpack.c.b16 %v2236, %v2232
    %v3005 = vpack.c.b16 %v2241, %v2237
    %v3006 = vpack.c.b16 %v2242, %v2238
    %v3007 = vpack.c.b16 %v2243, %v2239
    %v3008 = vpack.c.b16 %v2244, %v2240
    %v3009 = vpack.c.b16 %v2249, %v2245
    %v3010 = vpack.c.b16 %v2250, %v2246
    %v3011 = vpack.c.b16 %v2251, %v2247
    %v3012 = vpack.c.b16 %v2252, %v2248
    %v3013 = vpack.c.b16 %v2257, %v2253
    %v3014 = vpack.c.b16 %v2258, %v2254
    %v3015 = vpack.c.b16 %v2259, %v2255
    %v3016 = vpack.c.b16 %v2260, %v2256
    %v3017 = vpack.c.b16 %v2265, %v2261
    %v3018 = vpack.c.b16 %v2266, %v2262
    %v3019 = vpack.c.b16 %v2267, %v2263
    %v3020 = vpack.c.b16 %v2268, %v2264
    %v3021 = vpack.c.b16 %v2273, %v2269
    %v3022 = vpack.c.b16 %v2274, %v2270
    %v3023 = vpack.c.b16 %v2275, %v2271
    %v3024 = vpack.c.b16 %v2276, %v2272
    %v3025 = vpack.c.b16 %v2281, %v2277
    %v3026 = vpack.c.b16 %v2282, %v2278
    %v3027 = vpack.c.b16 %v2283, %v2279
    %v3028 = vpack.c.b16 %v2284, %v2280
    %v3029 = vpack.c.b16 %v2289, %v2285
    %v3030 = vpack.c.b16 %v2290, %v2286
    %v3031 = vpack.c.b16 %v2291, %v2287
    %v3032 = vpack.c.b16 %v2292, %v2288
    %v3033 = vpack.c.b16 %v2297, %v2293
    %v3034 = vpack.c.b16 %v2298, %v2294
    %v3035 = vpack.c.b16 %v2299, %v2295
    %v3036 = vpack.c.b16 %v2300, %v2296
    %v3037 = vpack.c.b16 %v2305, %v2301
    %v3038 = vpack.c.b16 %v2306, %v2302
    %v3039 = vpack.c.b16 %v2307, %v2303
    %v3040 = vpack.c.b16 %v2308, %v2304
    %v3041 = vpack.c.b16 %v2313, %v2309
    %v3042 = vpack.c.b16 %v2314, %v2310
    %v3043 = vpack.c.b16 %v2315, %v2311
    %v3044 = vpack.c.b16 %v2316, %v2312
    %v3045 = vpack.c.b16 %v2321, %v2317
    %v3046 = vpack.c.b16 %v2322, %v2318
    %v3047 = vpack.c.b16 %v2323, %v2319
    %v3048 = vpack.c.b16 %v2324, %v2320
    %v3049 = vpack.c.b16 %v2329, %v2325
    %v3050 = vpack.c.b16 %v2330, %v2326
    %v3051 = vpack.c.b16 %v2331, %v2327
    %v3052 = vpack.c.b16 %v2332, %v2328
    %v3053 = vpack.c.b16 %v2337, %v2333
    %v3054 = vpack.c.b16 %v2338, %v2334
    %v3055 = vpack.c.b16 %v2339, %v2335
    %v3056 = vpack.c.b16 %v2340, %v2336
    %v3057 = vpack.c.b16 %v2345, %v2341
    %v3058 = vpack.c.b16 %v2346, %v2342
    %v3059 = vpack.c.b16 %v2347, %v2343
    %v3060 = vpack.c.b16 %v2348, %v2344
    %v3061 = vpack.c.b16 %v2353, %v2349
    %v3062 = vpack.c.b16 %v2354, %v2350
    %v3063 = vpack.c.b16 %v2355, %v2351
    %v3064 = vpack.c.b16 %v2356, %v2352
    %v3065 = vpack.c.b16 %v2361, %v2357
    %v3066 = vpack.c.b16 %v2362, %v2358
    %v3067 = vpack.c.b16 %v2363, %v2359
    %v3068 = vpack.c.b16 %v2364, %v2360
    %v3069 = vpack.c.b16 %v2369, %v2365
    %v3070 = vpack.c.b16 %v2370, %v2366
    %v3071 = vpack.c.b16 %v2371, %v2367
    %v3072 = vpack.c.b16 %v2372, %v2368
    %v3073 = vpack.c.b16 %v2377, %v2373
    %v3074 = vpack.c.b16 %v2378, %v2374
    %v3075 = vpack.c.b16 %v2379, %v2375
    %v3076 = vpack.c.b16 %v2380, %v2376
    %v3077 = vpack.c.b16 %v2385, %v2381
    %v3078 = vpack.c.b16 %v2386, %v2382
    %v3079 = vpack.c.b16 %v2387, %v2383
    %v3080 = vpack.c.b16 %v2388, %v2384
    %v3081 = vpack.c.b16 %v2393, %v2389
    %v3082 = vpack.c.b16 %v2394, %v2390
    %v3083 = vpack.c.b16 %v2395, %v2391
    %v3084 = vpack.c.b16 %v2396, %v2392
    %v3085 = vpack.c.b16 %v2401, %v2397
    %v3086 = vpack.c.b16 %v2402, %v2398
    %v3087 = vpack.c.b16 %v2403, %v2399
    %v3088 = vpack.c.b16 %v2404, %v2400
    %v3089 = vpack.c.b16 %v2409, %v2405
    %v3090 = vpack.c.b16 %v2410, %v2406
    %v3091 = vpack.c.b16 %v2411, %v2407
    %v3092 = vpack.c.b16 %v2412, %v2408
    %v3093 = vpack.c.b16 %v2417, %v2413
    %v3094 = vpack.c.b16 %v2418, %v2414
    %v3095 = vpack.c.b16 %v2419, %v2415
    %v3096 = vpack.c.b16 %v2420, %v2416
    %v3097 = vpack.c.b16 %v2425, %v2421
    %v3098 = vpack.c.b16 %v2426, %v2422
    %v3099 = vpack.c.b16 %v2427, %v2423
    %v3100 = vpack.c.b16 %v2428, %v2424
    %v3101 = vpack.c.b16 %v2433, %v2429
    %v3102 = vpack.c.b16 %v2434, %v2430
    %v3103 = vpack.c.b16 %v2435, %v2431
    %v3104 = vpack.c.b16 %v2436, %v2432
    %v3105 = vpack.c.b16 %v2441, %v2437
    %v3106 = vpack.c.b16 %v2442, %v2438
    %v3107 = vpack.c.b16 %v2443, %v2439
    %v3108 = vpack.c.b16 %v2444, %v2440
    %v3109 = vpack.c.b16 %v2449, %v2445
    %v3110 = vpack.c.b16 %v2450, %v2446
    %v3111 = vpack.c.b16 %v2451, %v2447
    %v3112 = vpack.c.b16 %v2452, %v2448
    %v3113 = vpack.c.b16 %v2457, %v2453
    %v3114 = vpack.c.b16 %v2458, %v2454
    %v3115 = vpack.c.b16 %v2459, %v2455
    %v3116 = vpack.c.b16 %v2460, %v2456
    %v3117 = vpack.c.b16 %v2465, %v2461
    %v3118 = vpack.c.b16 %v2466, %v2462
    %v3119 = vpack.c.b16 %v2467, %v2463
    %v3120 = vpack.c.b16 %v2468, %v2464
    %v3121 = vpack.c.b16 %v2473, %v2469
    %v3122 = vpack.c.b16 %v2474, %v2470
    %v3123 = vpack.c.b16 %v2475, %v2471
    %v3124 = vpack.c.b16 %v2476, %v2472
    %v3125 = vpack.c.b16 %v2481, %v2477
    %v3126 = vpack.c.b16 %v2482, %v2478
    %v3127 = vpack.c.b16 %v2483, %v2479
    %v3128 = vpack.c.b16 %v2484, %v2480
    %v3129 = vpack.c.b16 %v2489, %v2485
    %v3130 = vpack.c.b16 %v2490, %v2486
    %v3131 = vpack.c.b16 %v2491, %v2487
    %v3132 = vpack.c.b16 %v2492, %v2488
    %v3133 = vpack.c.b16 %v2497, %v2493
    %v3134 = vpack.c.b16 %v2498, %v2494
    %v3135 = vpack.c.b16 %v2499, %v2495
    %v3136 = vpack.c.b16 %v2500, %v2496
    %v3137 = vpack.c.b16 %v2505, %v2501
    %v3138 = vpack.c.b16 %v2506, %v2502
    %v3139 = vpack.c.b16 %v2507, %v2503
    %v3140 = vpack.c.b16 %v2508, %v2504
    %v3141 = vpack.c.b16 %v2513, %v2509
    %v3142 = vpack.c.b16 %v2514, %v2510
    %v3143 = vpack.c.b16 %v2515, %v2511
    %v3144 = vpack.c.b16 %v2516, %v2512
    %v3145 = vpack.c.b16 %v2521, %v2517
    %v3146 = vpack.c.b16 %v2522, %v2518
    %v3147 = vpack.c.b16 %v2523, %v2519
    %v3148 = vpack.c.b16 %v2524, %v2520
    %v3149 = vpack.c.b16 %v2529, %v2525
    %v3150 = vpack.c.b16 %v2530, %v2526
    %v3151 = vpack.c.b16 %v2531, %v2527
    %v3152 = vpack.c.b16 %v2532, %v2528
    %v3153 = vpack.c.b16 %v2537, %v2533
    %v3154 = vpack.c.b16 %v2538, %v2534
    %v3155 = vpack.c.b16 %v2539, %v2535
    %v3156 = vpack.c.b16 %v2540, %v2536
    %v3157 = vpack.c.b16 %v2545, %v2541
    %v3158 = vpack.c.b16 %v2546, %v2542
    %v3159 = vpack.c.b16 %v2547, %v2543
    %v3160 = vpack.c.b16 %v2548, %v2544
    %v3161 = vpack.c.b16 %v2553, %v2549
    %v3162 = vpack.c.b16 %v2554, %v2550
    %v3163 = vpack.c.b16 %v2555, %v2551
    %v3164 = vpack.c.b16 %v2556, %v2552
    %v3165 = vpack.c.b16 %v2561, %v2557
    %v3166 = vpack.c.b16 %v2562, %v2558
    %v3167 = vpack.c.b16 %v2563, %v2559
    %v3168 = vpack.c.b16 %v2564, %v2560
    %v3169 = vpack.c.b16 %v2569, %v2565
    %v3170 = vpack.c.b16 %v2570, %v2566
    %v3171 = vpack.c.b16 %v2571, %v2567
    %v3172 = vpack.c.b16 %v2572, %v2568
    %v3173 = vpack.c.b16 %v2577, %v2573
    %v3174 = vpack.c.b16 %v2578, %v2574
    %v3175 = vpack.c.b16 %v2579, %v2575
    %v3176 = vpack.c.b16 %v2580, %v2576
    %v3177 = vpack.c.b16 %v2585, %v2581
    %v3178 = vpack.c.b16 %v2586, %v2582
    %v3179 = vpack.c.b16 %v2587, %v2583
    %v3180 = vpack.c.b16 %v2588, %v2584
    %v3181 = vpack.c.b16 %v2593, %v2589
    %v3182 = vpack.c.b16 %v2594, %v2590
    %v3183 = vpack.c.b16 %v2595, %v2591
    %v3184 = vpack.c.b16 %v2596, %v2592
    %v3185 = vpack.c.b16 %v2601, %v2597
    %v3186 = vpack.c.b16 %v2602, %v2598
    %v3187 = vpack.c.b16 %v2603, %v2599
    %v3188 = vpack.c.b16 %v2604, %v2600
    %v3189 = vpack.c.b16 %v2609, %v2605
    %v3190 = vpack.c.b16 %v2610, %v2606
    %v3191 = vpack.c.b16 %v2611, %v2607
    %v3192 = vpack.c.b16 %v2612, %v2608
    %v3193 = vpack.c.b16 %v2617, %v2613
    %v3194 = vpack.c.b16 %v2618, %v2614
    %v3195 = vpack.c.b16 %v2619, %v2615
    %v3196 = vpack.c.b16 %v2620, %v2616
    %v3197 = vpack.c.b16 %v2625, %v2621
    %v3198 = vpack.c.b16 %v2626, %v2622
    %v3199 = vpack.c.b16 %v2627, %v2623
    %v3200 = vpack.c.b16 %v2628, %v2624
    %v3201 = vpack.c.b16 %v2633, %v2629
    %v3202 = vpack.c.b16 %v2634, %v2630
    %v3203 = vpack.c.b16 %v2635, %v2631
    %v3204 = vpack.c.b16 %v2636, %v2632
    %v3205 = vpack.c.b16 %v2641, %v2637
    %v3206 = vpack.c.b16 %v2642, %v2638
    %v3207 = vpack.c.b16 %v2643, %v2639
    %v3208 = vpack.c.b16 %v2644, %v2640
    %v3209 = vpack.c.b16 %v2649, %v2645
    %v3210 = vpack.c.b16 %v2650, %v2646
    %v3211 = vpack.c.b16 %v2651, %v2647
    %v3212 = vpack.c.b16 %v2652, %v2648
    %v3213 = vpack.c.b16 %v2657, %v2653
    %v3214 = vpack.c.b16 %v2658, %v2654
    %v3215 = vpack.c.b16 %v2659, %v2655
    %v3216 = vpack.c.b16 %v2660, %v2656
    %v3217 = vpack.c.b16 %v2665, %v2661
    %v3218 = vpack.c.b16 %v2666, %v2662
    %v3219 = vpack.c.b16 %v2667, %v2663
    %v3220 = vpack.c.b16 %v2668, %v2664
    %v3221 = vpack.c.b16 %v2673, %v2669
    %v3222 = vpack.c.b16 %v2674, %v2670
    %v3223 = vpack.c.b16 %v2675, %v2671
    %v3224 = vpack.c.b16 %v2676, %v2672
    %v3225 = vpack.c.b16 %v2681, %v2677
    %v3226 = vpack.c.b16 %v2682, %v2678
    %v3227 = vpack.c.b16 %v2683, %v2679
    %v3228 = vpack.c.b16 %v2684, %v2680
    %v3229 = vpack.c.b16 %v2689, %v2685
    %v3230 = vpack.c.b16 %v2690, %v2686
    %v3231 = vpack.c.b16 %v2691, %v2687
    %v3232 = vpack.c.b16 %v2692, %v2688
    %v3233 = vpack.c.b16 %v2697, %v2693
    %v3234 = vpack.c.b16 %v2698, %v2694
    %v3235 = vpack.c.b16 %v2699, %v2695
    %v3236 = vpack.c.b16 %v2700, %v2696
    %v3237 = vpack.c.b16 %v2705, %v2701
    %v3238 = vpack.c.b16 %v2706, %v2702
    %v3239 = vpack.c.b16 %v2707, %v2703
    %v3240 = vpack.c.b16 %v2708, %v2704
    %v3241 = vpack.c.b16 %v2713, %v2709
    %v3242 = vpack.c.b16 %v2714, %v2710
    %v3243 = vpack.c.b16 %v2715, %v2711
    %v3244 = vpack.c.b16 %v2716, %v2712
    %v3245 = vpack.c.b16 %v2721, %v2717
    %v3246 = vpack.c.b16 %v2722, %v2718
    %v3247 = vpack.c.b16 %v2723, %v2719
    %v3248 = vpack.c.b16 %v2724, %v2720
    %v3249 = vpack.c.b16 %v2729, %v2725
    %v3250 = vpack.c.b16 %v2730, %v2726
    %v3251 = vpack.c.b16 %v2731, %v2727
    %v3252 = vpack.c.b16 %v2732, %v2728
    %v3253 = vpack.c.b16 %v2737, %v2733
    %v3254 = vpack.c.b16 %v2738, %v2734
    %v3255 = vpack.c.b16 %v2739, %v2735
    %v3256 = vpack.c.b16 %v2740, %v2736
    %v3257 = vpack.c.b16 %v2745, %v2741
    %v3258 = vpack.c.b16 %v2746, %v2742
    %v3259 = vpack.c.b16 %v2747, %v2743
    %v3260 = vpack.c.b16 %v2748, %v2744
    %3773 = vmatprep.subr.bf16.mxu0 %v2750
    %3774 = vmatpush1.bf16.msra.mxu0 %v2749
    %3775 = vmatprep.subr.bf16.mxu0 %v2754
    %3776 = vmatpush1.bf16.msra.mxu0 %v2753
    %3777 = vmatprep.subr.bf16.mxu0 %v2758
    %3778 = vmatpush1.bf16.msra.mxu0 %v2757
    %3779 = vmatprep.subr.bf16.mxu0 %v2762
    %3780 = vmatpush1.bf16.msra.mxu0 %v2761
    %3781 = vmatprep.subr.bf16.mxu0 %v2766
    %3782 = vmatpush1.bf16.msra.mxu0 %v2765
    %3783 = vmatprep.subr.bf16.mxu0 %v2770
    %3784 = vmatpush1.bf16.msra.mxu0 %v2769
    %3785 = vmatprep.subr.bf16.mxu0 %v2774
    %3786 = vmatpush1.bf16.msra.mxu0 %v2773
    %3787 = vmatprep.subr.bf16.mxu0 %v2778
    %3788 = vmatpush1.bf16.msra.mxu0 %v2777
    %3789 = vmatprep.subr.bf16.mxu0 %v2782
    %3790 = vmatpush1.bf16.msra.mxu0 %v2781
    %3791 = vmatprep.subr.bf16.mxu0 %v2786
    %3792 = vmatpush1.bf16.msra.mxu0 %v2785
    %3793 = vmatprep.subr.bf16.mxu0 %v2790
    %3794 = vmatpush1.bf16.msra.mxu0 %v2789
    %3795 = vmatprep.subr.bf16.mxu0 %v2794
    %3796 = vmatpush1.bf16.msra.mxu0 %v2793
    %3797 = vmatprep.subr.bf16.mxu0 %v2798
    %3798 = vmatpush1.bf16.msra.mxu0 %v2797
    %3799 = vmatprep.subr.bf16.mxu0 %v2802
    %3800 = vmatpush1.bf16.msra.mxu0 %v2801
    %3801 = vmatprep.subr.bf16.mxu0 %v2806
    %3802 = vmatpush1.bf16.msra.mxu0 %v2805
    %3803 = vmatprep.subr.bf16.mxu0 %v2810
    %3804 = vmatpush1.bf16.msra.mxu0 %v2809
    %3805 = vmatprep.mubr.bf16.mxu0 %v1086
    %3806 = vmatmul.mubr.bf16.gmra.mrb[0].mxu0 %v1085
    %v3807 = vpop.f32.mrb[0].mxu0
    %v3808 = vadd.f32 0.0, %v3807
    %v3809 = vpop.f32.mrb[0].mxu0
    %v3810 = vadd.f32 0.0, %v3809
    %v3811 = vpop.f32.mrb[0].mxu0
    %v3812 = vadd.f32 0.0, %v3811
    %v3813 = vpop.f32.mrb[0].mxu0
    %v3814 = vadd.f32 0.0, %v3813
    %3815 = vmatprep.mubr.bf16.mxu0 %v1102
    %3816 = vmatmul.mubr.bf16.gmra.mrb[0].mxu0 %v1101
    %v3817 = vpop.f32.mrb[0].mxu0
    %v3818 = vadd.f32 0.0, %v3817
    %v3819 = vpop.f32.mrb[0].mxu0
    %v3820 = vadd.f32 0.0, %v3819
    %v3821 = vpop.f32.mrb[0].mxu0
    %v3822 = vadd.f32 0.0, %v3821
    %v3823 = vpop.f32.mrb[0].mxu0
    %v3824 = vadd.f32 0.0, %v3823
    %3825 = vmatprep.mubr.bf16.mxu0 %v1118
    %3826 = vmatmul.mubr.bf16.gmra.mrb[0].mxu0 %v1117
    %v3827 = vpop.f32.mrb[0].mxu0
    %v3828 = vadd.f32 0.0, %v3827
    %v3829 = vpop.f32.mrb[0].mxu0
    %v3830 = vadd.f32 0.0, %v3829
    %v3831 = vpop.f32.mrb[0].mxu0
    %v3832 = vadd.f32 0.0, %v3831
    %v3833 = vpop.f32.mrb[0].mxu0
    %v3834 = vadd.f32 0.0, %v3833
    %3835 = vmatprep.mubr.bf16.mxu0 %v1134
    %3836 = vmatmul.mubr.bf16.gmra.mrb[0].mxu0 %v1133
    %v3837 = vpop.f32.mrb[0].mxu0
    %v3838 = vadd.f32 0.0, %v3837
    %v3839 = vpop.f32.mrb[0].mxu0
    %v3840 = vadd.f32 0.0, %v3839
    %v3841 = vpop.f32.mrb[0].mxu0
    %v3842 = vadd.f32 0.0, %v3841
    %v3843 = vpop.f32.mrb[0].mxu0
    %v3844 = vadd.f32 0.0, %v3843
    %3845 = vdwg.mxu0
    %3846 = vmatprep.subr.bf16.mxu0 %v2814
    %3847 = vmatpush1.bf16.msra.mxu0 %v2813
    %3848 = vmatprep.subr.bf16.mxu0 %v2818
    %3849 = vmatpush1.bf16.msra.mxu0 %v2817
    %3850 = vmatprep.subr.bf16.mxu0 %v2822
    %3851 = vmatpush1.bf16.msra.mxu0 %v2821
    %3852 = vmatprep.subr.bf16.mxu0 %v2826
    %3853 = vmatpush1.bf16.msra.mxu0 %v2825
    %3854 = vmatprep.subr.bf16.mxu0 %v2830
    %3855 = vmatpush1.bf16.msra.mxu0 %v2829
    %3856 = vmatprep.subr.bf16.mxu0 %v2834
    %3857 = vmatpush1.bf16.msra.mxu0 %v2833
    %3858 = vmatprep.subr.bf16.mxu0 %v2838
    %3859 = vmatpush1.bf16.msra.mxu0 %v2837
    %3860 = vmatprep.subr.bf16.mxu0 %v2842
    %3861 = vmatpush1.bf16.msra.mxu0 %v2841
    %3862 = vmatprep.subr.bf16.mxu0 %v2846
    %3863 = vmatpush1.bf16.msra.mxu0 %v2845
    %3864 = vmatprep.subr.bf16.mxu0 %v2850
    %3865 = vmatpush1.bf16.msra.mxu0 %v2849
    %3866 = vmatprep.subr.bf16.mxu0 %v2854
    %3867 = vmatpush1.bf16.msra.mxu0 %v2853
    %3868 = vmatprep.subr.bf16.mxu0 %v2858
    %3869 = vmatpush1.bf16.msra.mxu0 %v2857
    %3870 = vmatprep.subr.bf16.mxu0 %v2862
    %3871 = vmatpush1.bf16.msra.mxu0 %v2861
    %3872 = vmatprep.subr.bf16.mxu0 %v2866
    %3873 = vmatpush1.bf16.msra.mxu0 %v2865
    %3874 = vmatprep.subr.bf16.mxu0 %v2870
    %3875 = vmatpush1.bf16.msra.mxu0 %v2869
    %3876 = vmatprep.subr.bf16.mxu0 %v2874
    %3877 = vmatpush1.bf16.msra.mxu0 %v2873
    %3878 = vmatprep.mubr.bf16.mxu0 %v1088
    %3879 = vmatmul.mubr.bf16.gmra.mrb[0].mxu0 %v1087
    %v3880 = vpop.f32.mrb[0].mxu0
    %v3881 = vadd.f32 %v3808, %v3880
    %v3882 = vpop.f32.mrb[0].mxu0
    %v3883 = vadd.f32 %v3810, %v3882
    %v3884 = vpop.f32.mrb[0].mxu0
    %v3885 = vadd.f32 %v3812, %v3884
    %v3886 = vpop.f32.mrb[0].mxu0
    %v3887 = vadd.f32 %v3814, %v3886
    %3888 = vmatprep.mubr.bf16.mxu0 %v1104
    %3889 = vmatmul.mubr.bf16.gmra.mrb[0].mxu0 %v1103
    %v3890 = vpop.f32.mrb[0].mxu0
    %v3891 = vadd.f32 %v3818, %v3890
    %v3892 = vpop.f32.mrb[0].mxu0
    %v3893 = vadd.f32 %v3820, %v3892
    %v3894 = vpop.f32.mrb[0].mxu0
    %v3895 = vadd.f32 %v3822, %v3894
    %v3896 = vpop.f32.mrb[0].mxu0
    %v3897 = vadd.f32 %v3824, %v3896
    %3898 = vmatprep.mubr.bf16.mxu0 %v1120
    %3899 = vmatmul.mubr.bf16.gmra.mrb[0].mxu0 %v1119
    %v3900 = vpop.f32.mrb[0].mxu0
    %v3901 = vadd.f32 %v3828, %v3900
    %v3902 = vpop.f32.mrb[0].mxu0
    %v3903 = vadd.f32 %v3830, %v3902
    %v3904 = vpop.f32.mrb[0].mxu0
    %v3905 = vadd.f32 %v3832, %v3904
    %v3906 = vpop.f32.mrb[0].mxu0
    %v3907 = vadd.f32 %v3834, %v3906
    %3908 = vmatprep.mubr.bf16.mxu0 %v1136
    %3909 = vmatmul.mubr.bf16.gmra.mrb[0].mxu0 %v1135
    %v3910 = vpop.f32.mrb[0].mxu0
    %v3911 = vadd.f32 %v3838, %v3910
    %v3912 = vpop.f32.mrb[0].mxu0
    %v3913 = vadd.f32 %v3840, %v3912
    %v3914 = vpop.f32.mrb[0].mxu0
    %v3915 = vadd.f32 %v3842, %v3914
    %v3916 = vpop.f32.mrb[0].mxu0
    %v3917 = vadd.f32 %v3844, %v3916
    %3918 = vdwg.mxu0
    %3919 = vmatprep.subr.bf16.mxu0 %v2878
    %3920 = vmatpush1.bf16.msra.mxu0 %v2877
    %3921 = vmatprep.subr.bf16.mxu0 %v2882
    %3922 = vmatpush1.bf16.msra.mxu0 %v2881
    %3923 = vmatprep.subr.bf16.mxu0 %v2886
    %3924 = vmatpush1.bf16.msra.mxu0 %v2885
    %3925 = vmatprep.subr.bf16.mxu0 %v2890
    %3926 = vmatpush1.bf16.msra.mxu0 %v2889
    %3927 = vmatprep.subr.bf16.mxu0 %v2894
    %3928 = vmatpush1.bf16.msra.mxu0 %v2893
    %3929 = vmatprep.subr.bf16.mxu0 %v2898
    %3930 = vmatpush1.bf16.msra.mxu0 %v2897
    %3931 = vmatprep.subr.bf16.mxu0 %v2902
    %3932 = vmatpush1.bf16.msra.mxu0 %v2901
    %3933 = vmatprep.subr.bf16.mxu0 %v2906
    %3934 = vmatpush1.bf16.msra.mxu0 %v2905
    %3935 = vmatprep.subr.bf16.mxu0 %v2910
    %3936 = vmatpush1.bf16.msra.mxu0 %v2909
    %3937 = vmatprep.subr.bf16.mxu0 %v2914
    %3938 = vmatpush1.bf16.msra.mxu0 %v2913
    %3939 = vmatprep.subr.bf16.mxu0 %v2918
    %3940 = vmatpush1.bf16.msra.mxu0 %v2917
    %3941 = vmatprep.subr.bf16.mxu0 %v2922
    %3942 = vmatpush1.bf16.msra.mxu0 %v2921
    %3943 = vmatprep.subr.bf16.mxu0 %v2926
    %3944 = vmatpush1.bf16.msra.mxu0 %v2925
    %3945 = vmatprep.subr.bf16.mxu0 %v2930
    %3946 = vmatpush1.bf16.msra.mxu0 %v2929
    %3947 = vmatprep.subr.bf16.mxu0 %v2934
    %3948 = vmatpush1.bf16.msra.mxu0 %v2933
    %3949 = vmatprep.subr.bf16.mxu0 %v2938
    %3950 = vmatpush1.bf16.msra.mxu0 %v2937
    %3951 = vmatprep.mubr.bf16.mxu0 %v1090
    %3952 = vmatmul.mubr.bf16.gmra.mrb[0].mxu0 %v1089
    %v3953 = vpop.f32.mrb[0].mxu0
    %v3954 = vadd.f32 %v3881, %v3953
    %v3955 = vpop.f32.mrb[0].mxu0
    %v3956 = vadd.f32 %v3883, %v3955
    %v3957 = vpop.f32.mrb[0].mxu0
    %v3958 = vadd.f32 %v3885, %v3957
    %v3959 = vpop.f32.mrb[0].mxu0
    %v3960 = vadd.f32 %v3887, %v3959
    %3961 = vmatprep.mubr.bf16.mxu0 %v1106
    %3962 = vmatmul.mubr.bf16.gmra.mrb[0].mxu0 %v1105
    %v3963 = vpop.f32.mrb[0].mxu0
    %v3964 = vadd.f32 %v3891, %v3963
    %v3965 = vpop.f32.mrb[0].mxu0
    %v3966 = vadd.f32 %v3893, %v3965
    %v3967 = vpop.f32.mrb[0].mxu0
    %v3968 = vadd.f32 %v3895, %v3967
    %v3969 = vpop.f32.mrb[0].mxu0
    %v3970 = vadd.f32 %v3897, %v3969
    %3971 = vmatprep.mubr.bf16.mxu0 %v1122
    %3972 = vmatmul.mubr.bf16.gmra.mrb[0].mxu0 %v1121
    %v3973 = vpop.f32.mrb[0].mxu0
    %v3974 = vadd.f32 %v3901, %v3973
    %v3975 = vpop.f32.mrb[0].mxu0
    %v3976 = vadd.f32 %v3903, %v3975
    %v3977 = vpop.f32.mrb[0].mxu0
    %v3978 = vadd.f32 %v3905, %v3977
    %v3979 = vpop.f32.mrb[0].mxu0
    %v3980 = vadd.f32 %v3907, %v3979
    %3981 = vmatprep.mubr.bf16.mxu0 %v1138
    %3982 = vmatmul.mubr.bf16.gmra.mrb[0].mxu0 %v1137
    %v3983 = vpop.f32.mrb[0].mxu0
    %v3984 = vadd.f32 %v3911, %v3983
    %v3985 = vpop.f32.mrb[0].mxu0
    %v3986 = vadd.f32 %v3913, %v3985
    %v3987 = vpop.f32.mrb[0].mxu0
    %v3988 = vadd.f32 %v3915, %v3987
    %v3989 = vpop.f32.mrb[0].mxu0
    %v3990 = vadd.f32 %v3917, %v3989
    %3991 = vdwg.mxu0
    %3992 = vmatprep.subr.bf16.mxu0 %v2942
    %3993 = vmatpush1.bf16.msra.mxu0 %v2941
    %3994 = vmatprep.subr.bf16.mxu0 %v2946
    %3995 = vmatpush1.bf16.msra.mxu0 %v2945
    %3996 = vmatprep.subr.bf16.mxu0 %v2950
    %3997 = vmatpush1.bf16.msra.mxu0 %v2949
    %3998 = vmatprep.subr.bf16.mxu0 %v2954
    %3999 = vmatpush1.bf16.msra.mxu0 %v2953
    %4000 = vmatprep.subr.bf16.mxu0 %v2958
    %4001 = vmatpush1.bf16.msra.mxu0 %v2957
    %4002 = vmatprep.subr.bf16.mxu0 %v2962
    %4003 = vmatpush1.bf16.msra.mxu0 %v2961
    %4004 = vmatprep.subr.bf16.mxu0 %v2966
    %4005 = vmatpush1.bf16.msra.mxu0 %v2965
    %4006 = vmatprep.subr.bf16.mxu0 %v2970
    %4007 = vmatpush1.bf16.msra.mxu0 %v2969
    %4008 = vmatprep.subr.bf16.mxu0 %v2974
    %4009 = vmatpush1.bf16.msra.mxu0 %v2973
    %4010 = vmatprep.subr.bf16.mxu0 %v2978
    %4011 = vmatpush1.bf16.msra.mxu0 %v2977
    %4012 = vmatprep.subr.bf16.mxu0 %v2982
    %4013 = vmatpush1.bf16.msra.mxu0 %v2981
    %4014 = vmatprep.subr.bf16.mxu0 %v2986
    %4015 = vmatpush1.bf16.msra.mxu0 %v2985
    %4016 = vmatprep.subr.bf16.mxu0 %v2990
    %4017 = vmatpush1.bf16.msra.mxu0 %v2989
    %4018 = vmatprep.subr.bf16.mxu0 %v2994
    %4019 = vmatpush1.bf16.msra.mxu0 %v2993
    %4020 = vmatprep.subr.bf16.mxu0 %v2998
    %4021 = vmatpush1.bf16.msra.mxu0 %v2997
    %4022 = vmatprep.subr.bf16.mxu0 %v3002
    %4023 = vmatpush1.bf16.msra.mxu0 %v3001
    %4024 = vmatprep.mubr.bf16.mxu0 %v1092
    %4025 = vmatmul.mubr.bf16.gmra.mrb[0].mxu0 %v1091
    %v4026 = vpop.f32.mrb[0].mxu0
    %v4027 = vadd.f32 %v3954, %v4026
    %v4028 = vpop.f32.mrb[0].mxu0
    %v4029 = vadd.f32 %v3956, %v4028
    %v4030 = vpop.f32.mrb[0].mxu0
    %v4031 = vadd.f32 %v3958, %v4030
    %v4032 = vpop.f32.mrb[0].mxu0
    %v4033 = vadd.f32 %v3960, %v4032
    %4034 = vmatprep.mubr.bf16.mxu0 %v1108
    %4035 = vmatmul.mubr.bf16.gmra.mrb[0].mxu0 %v1107
    %v4036 = vpop.f32.mrb[0].mxu0
    %v4037 = vadd.f32 %v3964, %v4036
    %v4038 = vpop.f32.mrb[0].mxu0
    %v4039 = vadd.f32 %v3966, %v4038
    %v4040 = vpop.f32.mrb[0].mxu0
    %v4041 = vadd.f32 %v3968, %v4040
    %v4042 = vpop.f32.mrb[0].mxu0
    %v4043 = vadd.f32 %v3970, %v4042
    %4044 = vmatprep.mubr.bf16.mxu0 %v1124
    %4045 = vmatmul.mubr.bf16.gmra.mrb[0].mxu0 %v1123
    %v4046 = vpop.f32.mrb[0].mxu0
    %v4047 = vadd.f32 %v3974, %v4046
    %v4048 = vpop.f32.mrb[0].mxu0
    %v4049 = vadd.f32 %v3976, %v4048
    %v4050 = vpop.f32.mrb[0].mxu0
    %v4051 = vadd.f32 %v3978, %v4050
    %v4052 = vpop.f32.mrb[0].mxu0
    %v4053 = vadd.f32 %v3980, %v4052
    %4054 = vmatprep.mubr.bf16.mxu0 %v1140
    %4055 = vmatmul.mubr.bf16.gmra.mrb[0].mxu0 %v1139
    %v4056 = vpop.f32.mrb[0].mxu0
    %v4057 = vadd.f32 %v3984, %v4056
    %v4058 = vpop.f32.mrb[0].mxu0
    %v4059 = vadd.f32 %v3986, %v4058
    %v4060 = vpop.f32.mrb[0].mxu0
    %v4061 = vadd.f32 %v3988, %v4060
    %v4062 = vpop.f32.mrb[0].mxu0
    %v4063 = vadd.f32 %v3990, %v4062
    %4064 = vdwg.mxu0
    %4065 = vmatprep.subr.bf16.mxu0 %v3006
    %4066 = vmatpush1.bf16.msra.mxu0 %v3005
    %4067 = vmatprep.subr.bf16.mxu0 %v3010
    %4068 = vmatpush1.bf16.msra.mxu0 %v3009
    %4069 = vmatprep.subr.bf16.mxu0 %v3014
    %4070 = vmatpush1.bf16.msra.mxu0 %v3013
    %4071 = vmatprep.subr.bf16.mxu0 %v3018
    %4072 = vmatpush1.bf16.msra.mxu0 %v3017
    %4073 = vmatprep.subr.bf16.mxu0 %v3022
    %4074 = vmatpush1.bf16.msra.mxu0 %v3021
    %4075 = vmatprep.subr.bf16.mxu0 %v3026
    %4076 = vmatpush1.bf16.msra.mxu0 %v3025
    %4077 = vmatprep.subr.bf16.mxu0 %v3030
    %4078 = vmatpush1.bf16.msra.mxu0 %v3029
    %4079 = vmatprep.subr.bf16.mxu0 %v3034
    %4080 = vmatpush1.bf16.msra.mxu0 %v3033
    %4081 = vmatprep.subr.bf16.mxu0 %v3038
    %4082 = vmatpush1.bf16.msra.mxu0 %v3037
    %4083 = vmatprep.subr.bf16.mxu0 %v3042
    %4084 = vmatpush1.bf16.msra.mxu0 %v3041
    %4085 = vmatprep.subr.bf16.mxu0 %v3046
    %4086 = vmatpush1.bf16.msra.mxu0 %v3045
    %4087 = vmatprep.subr.bf16.mxu0 %v3050
    %4088 = vmatpush1.bf16.msra.mxu0 %v3049
    %4089 = vmatprep.subr.bf16.mxu0 %v3054
    %4090 = vmatpush1.bf16.msra.mxu0 %v3053
    %4091 = vmatprep.subr.bf16.mxu0 %v3058
    %4092 = vmatpush1.bf16.msra.mxu0 %v3057
    %4093 = vmatprep.subr.bf16.mxu0 %v3062
    %4094 = vmatpush1.bf16.msra.mxu0 %v3061
    %4095 = vmatprep.subr.bf16.mxu0 %v3066
    %4096 = vmatpush1.bf16.msra.mxu0 %v3065
    %4097 = vmatprep.mubr.bf16.mxu0 %v1094
    %4098 = vmatmul.mubr.bf16.gmra.mrb[0].mxu0 %v1093
    %v4099 = vpop.f32.mrb[0].mxu0
    %v4100 = vadd.f32 %v4027, %v4099
    %v4101 = vpop.f32.mrb[0].mxu0
    %v4102 = vadd.f32 %v4029, %v4101
    %v4103 = vpop.f32.mrb[0].mxu0
    %v4104 = vadd.f32 %v4031, %v4103
    %v4105 = vpop.f32.mrb[0].mxu0
    %v4106 = vadd.f32 %v4033, %v4105
    %4107 = vmatprep.mubr.bf16.mxu0 %v1110
    %4108 = vmatmul.mubr.bf16.gmra.mrb[0].mxu0 %v1109
    %v4109 = vpop.f32.mrb[0].mxu0
    %v4110 = vadd.f32 %v4037, %v4109
    %v4111 = vpop.f32.mrb[0].mxu0
    %v4112 = vadd.f32 %v4039, %v4111
    %v4113 = vpop.f32.mrb[0].mxu0
    %v4114 = vadd.f32 %v4041, %v4113
    %v4115 = vpop.f32.mrb[0].mxu0
    %v4116 = vadd.f32 %v4043, %v4115
    %4117 = vmatprep.mubr.bf16.mxu0 %v1126
    %4118 = vmatmul.mubr.bf16.gmra.mrb[0].mxu0 %v1125
    %v4119 = vpop.f32.mrb[0].mxu0
    %v4120 = vadd.f32 %v4047, %v4119
    %v4121 = vpop.f32.mrb[0].mxu0
    %v4122 = vadd.f32 %v4049, %v4121
    %v4123 = vpop.f32.mrb[0].mxu0
    %v4124 = vadd.f32 %v4051, %v4123
    %v4125 = vpop.f32.mrb[0].mxu0
    %v4126 = vadd.f32 %v4053, %v4125
    %4127 = vmatprep.mubr.bf16.mxu0 %v1142
    %4128 = vmatmul.mubr.bf16.gmra.mrb[0].mxu0 %v1141
    %v4129 = vpop.f32.mrb[0].mxu0
    %v4130 = vadd.f32 %v4057, %v4129
    %v4131 = vpop.f32.mrb[0].mxu0
    %v4132 = vadd.f32 %v4059, %v4131
    %v4133 = vpop.f32.mrb[0].mxu0
    %v4134 = vadd.f32 %v4061, %v4133
    %v4135 = vpop.f32.mrb[0].mxu0
    %v4136 = vadd.f32 %v4063, %v4135
    %4137 = vdwg.mxu0
    %4138 = vmatprep.subr.bf16.mxu0 %v3070
    %4139 = vmatpush1.bf16.msra.mxu0 %v3069
    %4140 = vmatprep.subr.bf16.mxu0 %v3074
    %4141 = vmatpush1.bf16.msra.mxu0 %v3073
    %4142 = vmatprep.subr.bf16.mxu0 %v3078
    %4143 = vmatpush1.bf16.msra.mxu0 %v3077
    %4144 = vmatprep.subr.bf16.mxu0 %v3082
    %4145 = vmatpush1.bf16.msra.mxu0 %v3081
    %4146 = vmatprep.subr.bf16.mxu0 %v3086
    %4147 = vmatpush1.bf16.msra.mxu0 %v3085
    %4148 = vmatprep.subr.bf16.mxu0 %v3090
    %4149 = vmatpush1.bf16.msra.mxu0 %v3089
    %4150 = vmatprep.subr.bf16.mxu0 %v3094
    %4151 = vmatpush1.bf16.msra.mxu0 %v3093
    %4152 = vmatprep.subr.bf16.mxu0 %v3098
    %4153 = vmatpush1.bf16.msra.mxu0 %v3097
    %4154 = vmatprep.subr.bf16.mxu0 %v3102
    %4155 = vmatpush1.bf16.msra.mxu0 %v3101
    %4156 = vmatprep.subr.bf16.mxu0 %v3106
    %4157 = vmatpush1.bf16.msra.mxu0 %v3105
    %4158 = vmatprep.subr.bf16.mxu0 %v3110
    %4159 = vmatpush1.bf16.msra.mxu0 %v3109
    %4160 = vmatprep.subr.bf16.mxu0 %v3114
    %4161 = vmatpush1.bf16.msra.mxu0 %v3113
    %4162 = vmatprep.subr.bf16.mxu0 %v3118
    %4163 = vmatpush1.bf16.msra.mxu0 %v3117
    %4164 = vmatprep.subr.bf16.mxu0 %v3122
    %4165 = vmatpush1.bf16.msra.mxu0 %v3121
    %4166 = vmatprep.subr.bf16.mxu0 %v3126
    %4167 = vmatpush1.bf16.msra.mxu0 %v3125
    %4168 = vmatprep.subr.bf16.mxu0 %v3130
    %4169 = vmatpush1.bf16.msra.mxu0 %v3129
    %4170 = vmatprep.mubr.bf16.mxu0 %v1096
    %4171 = vmatmul.mubr.bf16.gmra.mrb[0].mxu0 %v1095
    %v4172 = vpop.f32.mrb[0].mxu0
    %v4173 = vadd.f32 %v4100, %v4172
    %v4174 = vpop.f32.mrb[0].mxu0
    %v4175 = vadd.f32 %v4102, %v4174
    %v4176 = vpop.f32.mrb[0].mxu0
    %v4177 = vadd.f32 %v4104, %v4176
    %v4178 = vpop.f32.mrb[0].mxu0
    %v4179 = vadd.f32 %v4106, %v4178
    %4180 = vmatprep.mubr.bf16.mxu0 %v1112
    %4181 = vmatmul.mubr.bf16.gmra.mrb[0].mxu0 %v1111
    %v4182 = vpop.f32.mrb[0].mxu0
    %v4183 = vadd.f32 %v4110, %v4182
    %v4184 = vpop.f32.mrb[0].mxu0
    %v4185 = vadd.f32 %v4112, %v4184
    %v4186 = vpop.f32.mrb[0].mxu0
    %v4187 = vadd.f32 %v4114, %v4186
    %v4188 = vpop.f32.mrb[0].mxu0
    %v4189 = vadd.f32 %v4116, %v4188
    %4190 = vmatprep.mubr.bf16.mxu0 %v1128
    %4191 = vmatmul.mubr.bf16.gmra.mrb[0].mxu0 %v1127
    %v4192 = vpop.f32.mrb[0].mxu0
    %v4193 = vadd.f32 %v4120, %v4192
    %v4194 = vpop.f32.mrb[0].mxu0
    %v4195 = vadd.f32 %v4122, %v4194
    %v4196 = vpop.f32.mrb[0].mxu0
    %v4197 = vadd.f32 %v4124, %v4196
    %v4198 = vpop.f32.mrb[0].mxu0
    %v4199 = vadd.f32 %v4126, %v4198
    %4200 = vmatprep.mubr.bf16.mxu0 %v1144
    %4201 = vmatmul.mubr.bf16.gmra.mrb[0].mxu0 %v1143
    %v4202 = vpop.f32.mrb[0].mxu0
    %v4203 = vadd.f32 %v4130, %v4202
    %v4204 = vpop.f32.mrb[0].mxu0
    %v4205 = vadd.f32 %v4132, %v4204
    %v4206 = vpop.f32.mrb[0].mxu0
    %v4207 = vadd.f32 %v4134, %v4206
    %v4208 = vpop.f32.mrb[0].mxu0
    %v4209 = vadd.f32 %v4136, %v4208
    %4210 = vdwg.mxu0
    %4211 = vmatprep.subr.bf16.mxu0 %v3134
    %4212 = vmatpush1.bf16.msra.mxu0 %v3133
    %4213 = vmatprep.subr.bf16.mxu0 %v3138
    %4214 = vmatpush1.bf16.msra.mxu0 %v3137
    %4215 = vmatprep.subr.bf16.mxu0 %v3142
    %4216 = vmatpush1.bf16.msra.mxu0 %v3141
    %4217 = vmatprep.subr.bf16.mxu0 %v3146
    %4218 = vmatpush1.bf16.msra.mxu0 %v3145
    %4219 = vmatprep.subr.bf16.mxu0 %v3150
    %4220 = vmatpush1.bf16.msra.mxu0 %v3149
    %4221 = vmatprep.subr.bf16.mxu0 %v3154
    %4222 = vmatpush1.bf16.msra.mxu0 %v3153
    %4223 = vmatprep.subr.bf16.mxu0 %v3158
    %4224 = vmatpush1.bf16.msra.mxu0 %v3157
    %4225 = vmatprep.subr.bf16.mxu0 %v3162
    %4226 = vmatpush1.bf16.msra.mxu0 %v3161
    %4227 = vmatprep.subr.bf16.mxu0 %v3166
    %4228 = vmatpush1.bf16.msra.mxu0 %v3165
    %4229 = vmatprep.subr.bf16.mxu0 %v3170
    %4230 = vmatpush1.bf16.msra.mxu0 %v3169
    %4231 = vmatprep.subr.bf16.mxu0 %v3174
    %4232 = vmatpush1.bf16.msra.mxu0 %v3173
    %4233 = vmatprep.subr.bf16.mxu0 %v3178
    %4234 = vmatpush1.bf16.msra.mxu0 %v3177
    %4235 = vmatprep.subr.bf16.mxu0 %v3182
    %4236 = vmatpush1.bf16.msra.mxu0 %v3181
    %4237 = vmatprep.subr.bf16.mxu0 %v3186
    %4238 = vmatpush1.bf16.msra.mxu0 %v3185
    %4239 = vmatprep.subr.bf16.mxu0 %v3190
    %4240 = vmatpush1.bf16.msra.mxu0 %v3189
    %4241 = vmatprep.subr.bf16.mxu0 %v3194
    %4242 = vmatpush1.bf16.msra.mxu0 %v3193
    %4243 = vmatprep.mubr.bf16.mxu0 %v1098
    %4244 = vmatmul.mubr.bf16.gmra.mrb[0].mxu0 %v1097
    %v4245 = vpop.f32.mrb[0].mxu0
    %v4246 = vadd.f32 %v4173, %v4245
    %v4247 = vpop.f32.mrb[0].mxu0
    %v4248 = vadd.f32 %v4175, %v4247
    %v4249 = vpop.f32.mrb[0].mxu0
    %v4250 = vadd.f32 %v4177, %v4249
    %v4251 = vpop.f32.mrb[0].mxu0
    %v4252 = vadd.f32 %v4179, %v4251
    %4253 = vmatprep.mubr.bf16.mxu0 %v1114
    %4254 = vmatmul.mubr.bf16.gmra.mrb[0].mxu0 %v1113
    %v4255 = vpop.f32.mrb[0].mxu0
    %v4256 = vadd.f32 %v4183, %v4255
    %v4257 = vpop.f32.mrb[0].mxu0
    %v4258 = vadd.f32 %v4185, %v4257
    %v4259 = vpop.f32.mrb[0].mxu0
    %v4260 = vadd.f32 %v4187, %v4259
    %v4261 = vpop.f32.mrb[0].mxu0
    %v4262 = vadd.f32 %v4189, %v4261
    %4263 = vmatprep.mubr.bf16.mxu0 %v1130
    %4264 = vmatmul.mubr.bf16.gmra.mrb[0].mxu0 %v1129
    %v4265 = vpop.f32.mrb[0].mxu0
    %v4266 = vadd.f32 %v4193, %v4265
    %v4267 = vpop.f32.mrb[0].mxu0
    %v4268 = vadd.f32 %v4195, %v4267
    %v4269 = vpop.f32.mrb[0].mxu0
    %v4270 = vadd.f32 %v4197, %v4269
    %v4271 = vpop.f32.mrb[0].mxu0
    %v4272 = vadd.f32 %v4199, %v4271
    %4273 = vmatprep.mubr.bf16.mxu0 %v1146
    %4274 = vmatmul.mubr.bf16.gmra.mrb[0].mxu0 %v1145
    %v4275 = vpop.f32.mrb[0].mxu0
    %v4276 = vadd.f32 %v4203, %v4275
    %v4277 = vpop.f32.mrb[0].mxu0
    %v4278 = vadd.f32 %v4205, %v4277
    %v4279 = vpop.f32.mrb[0].mxu0
    %v4280 = vadd.f32 %v4207, %v4279
    %v4281 = vpop.f32.mrb[0].mxu0
    %v4282 = vadd.f32 %v4209, %v4281
    %4283 = vdwg.mxu0
    %4284 = vmatprep.subr.bf16.mxu0 %v3198
    %4285 = vmatpush1.bf16.msra.mxu0 %v3197
    %4286 = vmatprep.subr.bf16.mxu0 %v3202
    %4287 = vmatpush1.bf16.msra.mxu0 %v3201
    %4288 = vmatprep.subr.bf16.mxu0 %v3206
    %4289 = vmatpush1.bf16.msra.mxu0 %v3205
    %4290 = vmatprep.subr.bf16.mxu0 %v3210
    %4291 = vmatpush1.bf16.msra.mxu0 %v3209
    %4292 = vmatprep.subr.bf16.mxu0 %v3214
    %4293 = vmatpush1.bf16.msra.mxu0 %v3213
    %4294 = vmatprep.subr.bf16.mxu0 %v3218
    %4295 = vmatpush1.bf16.msra.mxu0 %v3217
    %4296 = vmatprep.subr.bf16.mxu0 %v3222
    %4297 = vmatpush1.bf16.msra.mxu0 %v3221
    %4298 = vmatprep.subr.bf16.mxu0 %v3226
    %4299 = vmatpush1.bf16.msra.mxu0 %v3225
    %4300 = vmatprep.subr.bf16.mxu0 %v3230
    %4301 = vmatpush1.bf16.msra.mxu0 %v3229
    %4302 = vmatprep.subr.bf16.mxu0 %v3234
    %4303 = vmatpush1.bf16.msra.mxu0 %v3233
    %4304 = vmatprep.subr.bf16.mxu0 %v3238
    %4305 = vmatpush1.bf16.msra.mxu0 %v3237
    %4306 = vmatprep.subr.bf16.mxu0 %v3242
    %4307 = vmatpush1.bf16.msra.mxu0 %v3241
    %4308 = vmatprep.subr.bf16.mxu0 %v3246
    %4309 = vmatpush1.bf16.msra.mxu0 %v3245
    %4310 = vmatprep.subr.bf16.mxu0 %v3250
    %4311 = vmatpush1.bf16.msra.mxu0 %v3249
    %4312 = vmatprep.subr.bf16.mxu0 %v3254
    %4313 = vmatpush1.bf16.msra.mxu0 %v3253
    %4314 = vmatprep.subr.bf16.mxu0 %v3258
    %4315 = vmatpush1.bf16.msra.mxu0 %v3257
    %4316 = vmatprep.mubr.bf16.mxu0 %v1100
    %4317 = vmatmul.mubr.bf16.gmra.mrb[0].mxu0 %v1099
    %v4318 = vpop.f32.mrb[0].mxu0
    %v4319 = vadd.f32 %v4246, %v4318
    %v4320 = vpop.f32.mrb[0].mxu0
    %v4321 = vadd.f32 %v4248, %v4320
    %v4322 = vpop.f32.mrb[0].mxu0
    %v4323 = vadd.f32 %v4250, %v4322
    %v4324 = vpop.f32.mrb[0].mxu0
    %v4325 = vadd.f32 %v4252, %v4324
    %4326 = vmatprep.mubr.bf16.mxu0 %v1116
    %4327 = vmatmul.mubr.bf16.gmra.mrb[0].mxu0 %v1115
    %v4328 = vpop.f32.mrb[0].mxu0
    %v4329 = vadd.f32 %v4256, %v4328
    %v4330 = vpop.f32.mrb[0].mxu0
    %v4331 = vadd.f32 %v4258, %v4330
    %v4332 = vpop.f32.mrb[0].mxu0
    %v4333 = vadd.f32 %v4260, %v4332
    %v4334 = vpop.f32.mrb[0].mxu0
    %v4335 = vadd.f32 %v4262, %v4334
    %4336 = vmatprep.mubr.bf16.mxu0 %v1132
    %4337 = vmatmul.mubr.bf16.gmra.mrb[0].mxu0 %v1131
    %v4338 = vpop.f32.mrb[0].mxu0
    %v4339 = vadd.f32 %v4266, %v4338
    %v4340 = vpop.f32.mrb[0].mxu0
    %v4341 = vadd.f32 %v4268, %v4340
    %v4342 = vpop.f32.mrb[0].mxu0
    %v4343 = vadd.f32 %v4270, %v4342
    %v4344 = vpop.f32.mrb[0].mxu0
    %v4345 = vadd.f32 %v4272, %v4344
    %4346 = vmatprep.mubr.bf16.mxu0 %v1148
    %4347 = vmatmul.mubr.bf16.gmra.mrb[0].mxu0 %v1147
    %v4348 = vpop.f32.mrb[0].mxu0
    %v4349 = vadd.f32 %v4276, %v4348
    %v4350 = vpop.f32.mrb[0].mxu0
    %v4351 = vadd.f32 %v4278, %v4350
    %v4352 = vpop.f32.mrb[0].mxu0
    %v4353 = vadd.f32 %v4280, %v4352
    %v4354 = vpop.f32.mrb[0].mxu0
    %v4355 = vadd.f32 %v4282, %v4354
    %4356 = vdwg.mxu0
    %4357 = vmatprep.subr.bf16.mxu0 %v2752
    %4358 = vmatpush1.bf16.msra.mxu0 %v2751
    %4359 = vmatprep.subr.bf16.mxu0 %v2756
    %4360 = vmatpush1.bf16.msra.mxu0 %v2755
    %4361 = vmatprep.subr.bf16.mxu0 %v2760
    %4362 = vmatpush1.bf16.msra.mxu0 %v2759
    %4363 = vmatprep.subr.bf16.mxu0 %v2764
    %4364 = vmatpush1.bf16.msra.mxu0 %v2763
    %4365 = vmatprep.subr.bf16.mxu0 %v2768
    %4366 = vmatpush1.bf16.msra.mxu0 %v2767
    %4367 = vmatprep.subr.bf16.mxu0 %v2772
    %4368 = vmatpush1.bf16.msra.mxu0 %v2771
    %4369 = vmatprep.subr.bf16.mxu0 %v2776
    %4370 = vmatpush1.bf16.msra.mxu0 %v2775
    %4371 = vmatprep.subr.bf16.mxu0 %v2780
    %4372 = vmatpush1.bf16.msra.mxu0 %v2779
    %4373 = vmatprep.subr.bf16.mxu0 %v2784
    %4374 = vmatpush1.bf16.msra.mxu0 %v2783
    %4375 = vmatprep.subr.bf16.mxu0 %v2788
    %4376 = vmatpush1.bf16.msra.mxu0 %v2787
    %4377 = vmatprep.subr.bf16.mxu0 %v2792
    %4378 = vmatpush1.bf16.msra.mxu0 %v2791
    %4379 = vmatprep.subr.bf16.mxu0 %v2796
    %4380 = vmatpush1.bf16.msra.mxu0 %v2795
    %4381 = vmatprep.subr.bf16.mxu0 %v2800
    %4382 = vmatpush1.bf16.msra.mxu0 %v2799
    %4383 = vmatprep.subr.bf16.mxu0 %v2804
    %4384 = vmatpush1.bf16.msra.mxu0 %v2803
    %4385 = vmatprep.subr.bf16.mxu0 %v2808
    %4386 = vmatpush1.bf16.msra.mxu0 %v2807
    %4387 = vmatprep.subr.bf16.mxu0 %v2812
    %4388 = vmatpush1.bf16.msra.mxu0 %v2811
    %4389 = vmatprep.mubr.bf16.mxu0 %v1086
    %4390 = vmatmul.mubr.bf16.gmra.mrb[0].mxu0 %v1085
    %v4391 = vpop.f32.mrb[0].mxu0
    %v4392 = vadd.f32 0.0, %v4391
    %v4393 = vpop.f32.mrb[0].mxu0
    %v4394 = vadd.f32 0.0, %v4393
    %v4395 = vpop.f32.mrb[0].mxu0
    %v4396 = vadd.f32 0.0, %v4395
    %v4397 = vpop.f32.mrb[0].mxu0
    %v4398 = vadd.f32 0.0, %v4397
    %4399 = vmatprep.mubr.bf16.mxu0 %v1102
    %4400 = vmatmul.mubr.bf16.gmra.mrb[0].mxu0 %v1101
    %v4401 = vpop.f32.mrb[0].mxu0
    %v4402 = vadd.f32 0.0, %v4401
    %v4403 = vpop.f32.mrb[0].mxu0
    %v4404 = vadd.f32 0.0, %v4403
    %v4405 = vpop.f32.mrb[0].mxu0
    %v4406 = vadd.f32 0.0, %v4405
    %v4407 = vpop.f32.mrb[0].mxu0
    %v4408 = vadd.f32 0.0, %v4407
    %4409 = vmatprep.mubr.bf16.mxu0 %v1118
    %4410 = vmatmul.mubr.bf16.gmra.mrb[0].mxu0 %v1117
    %v4411 = vpop.f32.mrb[0].mxu0
    %v4412 = vadd.f32 0.0, %v4411
    %v4413 = vpop.f32.mrb[0].mxu0
    %v4414 = vadd.f32 0.0, %v4413
    %v4415 = vpop.f32.mrb[0].mxu0
    %v4416 = vadd.f32 0.0, %v4415
    %v4417 = vpop.f32.mrb[0].mxu0
    %v4418 = vadd.f32 0.0, %v4417
    %4419 = vmatprep.mubr.bf16.mxu0 %v1134
    %4420 = vmatmul.mubr.bf16.gmra.mrb[0].mxu0 %v1133
    %v4421 = vpop.f32.mrb[0].mxu0
    %v4422 = vadd.f32 0.0, %v4421
    %v4423 = vpop.f32.mrb[0].mxu0
    %v4424 = vadd.f32 0.0, %v4423
    %v4425 = vpop.f32.mrb[0].mxu0
    %v4426 = vadd.f32 0.0, %v4425
    %v4427 = vpop.f32.mrb[0].mxu0
    %v4428 = vadd.f32 0.0, %v4427
    %4429 = vdwg.mxu0
    %4430 = vmatprep.subr.bf16.mxu0 %v2816
    %4431 = vmatpush1.bf16.msra.mxu0 %v2815
    %4432 = vmatprep.subr.bf16.mxu0 %v2820
    %4433 = vmatpush1.bf16.msra.mxu0 %v2819
    %4434 = vmatprep.subr.bf16.mxu0 %v2824
    %4435 = vmatpush1.bf16.msra.mxu0 %v2823
    %4436 = vmatprep.subr.bf16.mxu0 %v2828
    %4437 = vmatpush1.bf16.msra.mxu0 %v2827
    %4438 = vmatprep.subr.bf16.mxu0 %v2832
    %4439 = vmatpush1.bf16.msra.mxu0 %v2831
    %4440 = vmatprep.subr.bf16.mxu0 %v2836
    %4441 = vmatpush1.bf16.msra.mxu0 %v2835
    %4442 = vmatprep.subr.bf16.mxu0 %v2840
    %4443 = vmatpush1.bf16.msra.mxu0 %v2839
    %4444 = vmatprep.subr.bf16.mxu0 %v2844
    %4445 = vmatpush1.bf16.msra.mxu0 %v2843
    %4446 = vmatprep.subr.bf16.mxu0 %v2848
    %4447 = vmatpush1.bf16.msra.mxu0 %v2847
    %4448 = vmatprep.subr.bf16.mxu0 %v2852
    %4449 = vmatpush1.bf16.msra.mxu0 %v2851
    %4450 = vmatprep.subr.bf16.mxu0 %v2856
    %4451 = vmatpush1.bf16.msra.mxu0 %v2855
    %4452 = vmatprep.subr.bf16.mxu0 %v2860
    %4453 = vmatpush1.bf16.msra.mxu0 %v2859
    %4454 = vmatprep.subr.bf16.mxu0 %v2864
    %4455 = vmatpush1.bf16.msra.mxu0 %v2863
    %4456 = vmatprep.subr.bf16.mxu0 %v2868
    %4457 = vmatpush1.bf16.msra.mxu0 %v2867
    %4458 = vmatprep.subr.bf16.mxu0 %v2872
    %4459 = vmatpush1.bf16.msra.mxu0 %v2871
    %4460 = vmatprep.subr.bf16.mxu0 %v2876
    %4461 = vmatpush1.bf16.msra.mxu0 %v2875
    %4462 = vmatprep.mubr.bf16.mxu0 %v1088
    %4463 = vmatmul.mubr.bf16.gmra.mrb[0].mxu0 %v1087
    %v4464 = vpop.f32.mrb[0].mxu0
    %v4465 = vadd.f32 %v4392, %v4464
    %v4466 = vpop.f32.mrb[0].mxu0
    %v4467 = vadd.f32 %v4394, %v4466
    %v4468 = vpop.f32.mrb[0].mxu0
    %v4469 = vadd.f32 %v4396, %v4468
    %v4470 = vpop.f32.mrb[0].mxu0
    %v4471 = vadd.f32 %v4398, %v4470
    %4472 = vmatprep.mubr.bf16.mxu0 %v1104
    %4473 = vmatmul.mubr.bf16.gmra.mrb[0].mxu0 %v1103
    %v4474 = vpop.f32.mrb[0].mxu0
    %v4475 = vadd.f32 %v4402, %v4474
    %v4476 = vpop.f32.mrb[0].mxu0
    %v4477 = vadd.f32 %v4404, %v4476
    %v4478 = vpop.f32.mrb[0].mxu0
    %v4479 = vadd.f32 %v4406, %v4478
    %v4480 = vpop.f32.mrb[0].mxu0
    %v4481 = vadd.f32 %v4408, %v4480
    %4482 = vmatprep.mubr.bf16.mxu0 %v1120
    %4483 = vmatmul.mubr.bf16.gmra.mrb[0].mxu0 %v1119
    %v4484 = vpop.f32.mrb[0].mxu0
    %v4485 = vadd.f32 %v4412, %v4484
    %v4486 = vpop.f32.mrb[0].mxu0
    %v4487 = vadd.f32 %v4414, %v4486
    %v4488 = vpop.f32.mrb[0].mxu0
    %v4489 = vadd.f32 %v4416, %v4488
    %v4490 = vpop.f32.mrb[0].mxu0
    %v4491 = vadd.f32 %v4418, %v4490
    %4492 = vmatprep.mubr.bf16.mxu0 %v1136
    %4493 = vmatmul.mubr.bf16.gmra.mrb[0].mxu0 %v1135
    %v4494 = vpop.f32.mrb[0].mxu0
    %v4495 = vadd.f32 %v4422, %v4494
    %v4496 = vpop.f32.mrb[0].mxu0
    %v4497 = vadd.f32 %v4424, %v4496
    %v4498 = vpop.f32.mrb[0].mxu0
    %v4499 = vadd.f32 %v4426, %v4498
    %v4500 = vpop.f32.mrb[0].mxu0
    %v4501 = vadd.f32 %v4428, %v4500
    %4502 = vdwg.mxu0
    %4503 = vmatprep.subr.bf16.mxu0 %v2880
    %4504 = vmatpush1.bf16.msra.mxu0 %v2879
    %4505 = vmatprep.subr.bf16.mxu0 %v2884
    %4506 = vmatpush1.bf16.msra.mxu0 %v2883
    %4507 = vmatprep.subr.bf16.mxu0 %v2888
    %4508 = vmatpush1.bf16.msra.mxu0 %v2887
    %4509 = vmatprep.subr.bf16.mxu0 %v2892
    %4510 = vmatpush1.bf16.msra.mxu0 %v2891
    %4511 = vmatprep.subr.bf16.mxu0 %v2896
    %4512 = vmatpush1.bf16.msra.mxu0 %v2895
    %4513 = vmatprep.subr.bf16.mxu0 %v2900
    %4514 = vmatpush1.bf16.msra.mxu0 %v2899
    %4515 = vmatprep.subr.bf16.mxu0 %v2904
    %4516 = vmatpush1.bf16.msra.mxu0 %v2903
    %4517 = vmatprep.subr.bf16.mxu0 %v2908
    %4518 = vmatpush1.bf16.msra.mxu0 %v2907
    %4519 = vmatprep.subr.bf16.mxu0 %v2912
    %4520 = vmatpush1.bf16.msra.mxu0 %v2911
    %4521 = vmatprep.subr.bf16.mxu0 %v2916
    %4522 = vmatpush1.bf16.msra.mxu0 %v2915
    %4523 = vmatprep.subr.bf16.mxu0 %v2920
    %4524 = vmatpush1.bf16.msra.mxu0 %v2919
    %4525 = vmatprep.subr.bf16.mxu0 %v2924
    %4526 = vmatpush1.bf16.msra.mxu0 %v2923
    %4527 = vmatprep.subr.bf16.mxu0 %v2928
    %4528 = vmatpush1.bf16.msra.mxu0 %v2927
    %4529 = vmatprep.subr.bf16.mxu0 %v2932
    %4530 = vmatpush1.bf16.msra.mxu0 %v2931
    %4531 = vmatprep.subr.bf16.mxu0 %v2936
    %4532 = vmatpush1.bf16.msra.mxu0 %v2935
    %4533 = vmatprep.subr.bf16.mxu0 %v2940
    %4534 = vmatpush1.bf16.msra.mxu0 %v2939
    %4535 = vmatprep.mubr.bf16.mxu0 %v1090
    %4536 = vmatmul.mubr.bf16.gmra.mrb[0].mxu0 %v1089
    %v4537 = vpop.f32.mrb[0].mxu0
    %v4538 = vadd.f32 %v4465, %v4537
    %v4539 = vpop.f32.mrb[0].mxu0
    %v4540 = vadd.f32 %v4467, %v4539
    %v4541 = vpop.f32.mrb[0].mxu0
    %v4542 = vadd.f32 %v4469, %v4541
    %v4543 = vpop.f32.mrb[0].mxu0
    %v4544 = vadd.f32 %v4471, %v4543
    %4545 = vmatprep.mubr.bf16.mxu0 %v1106
    %4546 = vmatmul.mubr.bf16.gmra.mrb[0].mxu0 %v1105
    %v4547 = vpop.f32.mrb[0].mxu0
    %v4548 = vadd.f32 %v4475, %v4547
    %v4549 = vpop.f32.mrb[0].mxu0
    %v4550 = vadd.f32 %v4477, %v4549
    %v4551 = vpop.f32.mrb[0].mxu0
    %v4552 = vadd.f32 %v4479, %v4551
    %v4553 = vpop.f32.mrb[0].mxu0
    %v4554 = vadd.f32 %v4481, %v4553
    %4555 = vmatprep.mubr.bf16.mxu0 %v1122
    %4556 = vmatmul.mubr.bf16.gmra.mrb[0].mxu0 %v1121
    %v4557 = vpop.f32.mrb[0].mxu0
    %v4558 = vadd.f32 %v4485, %v4557
    %v4559 = vpop.f32.mrb[0].mxu0
    %v4560 = vadd.f32 %v4487, %v4559
    %v4561 = vpop.f32.mrb[0].mxu0
    %v4562 = vadd.f32 %v4489, %v4561
    %v4563 = vpop.f32.mrb[0].mxu0
    %v4564 = vadd.f32 %v4491, %v4563
    %4565 = vmatprep.mubr.bf16.mxu0 %v1138
    %4566 = vmatmul.mubr.bf16.gmra.mrb[0].mxu0 %v1137
    %v4567 = vpop.f32.mrb[0].mxu0
    %v4568 = vadd.f32 %v4495, %v4567
    %v4569 = vpop.f32.mrb[0].mxu0
    %v4570 = vadd.f32 %v4497, %v4569
    %v4571 = vpop.f32.mrb[0].mxu0
    %v4572 = vadd.f32 %v4499, %v4571
    %v4573 = vpop.f32.mrb[0].mxu0
    %v4574 = vadd.f32 %v4501, %v4573
    %4575 = vdwg.mxu0
    %4576 = vmatprep.subr.bf16.mxu0 %v2944
    %4577 = vmatpush1.bf16.msra.mxu0 %v2943
    %4578 = vmatprep.subr.bf16.mxu0 %v2948
    %4579 = vmatpush1.bf16.msra.mxu0 %v2947
    %4580 = vmatprep.subr.bf16.mxu0 %v2952
    %4581 = vmatpush1.bf16.msra.mxu0 %v2951
    %4582 = vmatprep.subr.bf16.mxu0 %v2956
    %4583 = vmatpush1.bf16.msra.mxu0 %v2955
    %4584 = vmatprep.subr.bf16.mxu0 %v2960
    %4585 = vmatpush1.bf16.msra.mxu0 %v2959
    %4586 = vmatprep.subr.bf16.mxu0 %v2964
    %4587 = vmatpush1.bf16.msra.mxu0 %v2963
    %4588 = vmatprep.subr.bf16.mxu0 %v2968
    %4589 = vmatpush1.bf16.msra.mxu0 %v2967
    %4590 = vmatprep.subr.bf16.mxu0 %v2972
    %4591 = vmatpush1.bf16.msra.mxu0 %v2971
    %4592 = vmatprep.subr.bf16.mxu0 %v2976
    %4593 = vmatpush1.bf16.msra.mxu0 %v2975
    %4594 = vmatprep.subr.bf16.mxu0 %v2980
    %4595 = vmatpush1.bf16.msra.mxu0 %v2979
    %4596 = vmatprep.subr.bf16.mxu0 %v2984
    %4597 = vmatpush1.bf16.msra.mxu0 %v2983
    %4598 = vmatprep.subr.bf16.mxu0 %v2988
    %4599 = vmatpush1.bf16.msra.mxu0 %v2987
    %4600 = vmatprep.subr.bf16.mxu0 %v2992
    %4601 = vmatpush1.bf16.msra.mxu0 %v2991
    %4602 = vmatprep.subr.bf16.mxu0 %v2996
    %4603 = vmatpush1.bf16.msra.mxu0 %v2995
    %4604 = vmatprep.subr.bf16.mxu0 %v3000
    %4605 = vmatpush1.bf16.msra.mxu0 %v2999
    %4606 = vmatprep.subr.bf16.mxu0 %v3004
    %4607 = vmatpush1.bf16.msra.mxu0 %v3003
    %4608 = vmatprep.mubr.bf16.mxu0 %v1092
    %4609 = vmatmul.mubr.bf16.gmra.mrb[0].mxu0 %v1091
    %v4610 = vpop.f32.mrb[0].mxu0
    %v4611 = vadd.f32 %v4538, %v4610
    %v4612 = vpop.f32.mrb[0].mxu0
    %v4613 = vadd.f32 %v4540, %v4612
    %v4614 = vpop.f32.mrb[0].mxu0
    %v4615 = vadd.f32 %v4542, %v4614
    %v4616 = vpop.f32.mrb[0].mxu0
    %v4617 = vadd.f32 %v4544, %v4616
    %4618 = vmatprep.mubr.bf16.mxu0 %v1108
    %4619 = vmatmul.mubr.bf16.gmra.mrb[0].mxu0 %v1107
    %v4620 = vpop.f32.mrb[0].mxu0
    %v4621 = vadd.f32 %v4548, %v4620
    %v4622 = vpop.f32.mrb[0].mxu0
    %v4623 = vadd.f32 %v4550, %v4622
    %v4624 = vpop.f32.mrb[0].mxu0
    %v4625 = vadd.f32 %v4552, %v4624
    %v4626 = vpop.f32.mrb[0].mxu0
    %v4627 = vadd.f32 %v4554, %v4626
    %4628 = vmatprep.mubr.bf16.mxu0 %v1124
    %4629 = vmatmul.mubr.bf16.gmra.mrb[0].mxu0 %v1123
    %v4630 = vpop.f32.mrb[0].mxu0
    %v4631 = vadd.f32 %v4558, %v4630
    %v4632 = vpop.f32.mrb[0].mxu0
    %v4633 = vadd.f32 %v4560, %v4632
    %v4634 = vpop.f32.mrb[0].mxu0
    %v4635 = vadd.f32 %v4562, %v4634
    %v4636 = vpop.f32.mrb[0].mxu0
    %v4637 = vadd.f32 %v4564, %v4636
    %4638 = vmatprep.mubr.bf16.mxu0 %v1140
    %4639 = vmatmul.mubr.bf16.gmra.mrb[0].mxu0 %v1139
    %v4640 = vpop.f32.mrb[0].mxu0
    %v4641 = vadd.f32 %v4568, %v4640
    %v4642 = vpop.f32.mrb[0].mxu0
    %v4643 = vadd.f32 %v4570, %v4642
    %v4644 = vpop.f32.mrb[0].mxu0
    %v4645 = vadd.f32 %v4572, %v4644
    %v4646 = vpop.f32.mrb[0].mxu0
    %v4647 = vadd.f32 %v4574, %v4646
    %4648 = vdwg.mxu0
    %4649 = vmatprep.subr.bf16.mxu0 %v3008
    %4650 = vmatpush1.bf16.msra.mxu0 %v3007
    %4651 = vmatprep.subr.bf16.mxu0 %v3012
    %4652 = vmatpush1.bf16.msra.mxu0 %v3011
    %4653 = vmatprep.subr.bf16.mxu0 %v3016
    %4654 = vmatpush1.bf16.msra.mxu0 %v3015
    %4655 = vmatprep.subr.bf16.mxu0 %v3020
    %4656 = vmatpush1.bf16.msra.mxu0 %v3019
    %4657 = vmatprep.subr.bf16.mxu0 %v3024
    %4658 = vmatpush1.bf16.msra.mxu0 %v3023
    %4659 = vmatprep.subr.bf16.mxu0 %v3028
    %4660 = vmatpush1.bf16.msra.mxu0 %v3027
    %4661 = vmatprep.subr.bf16.mxu0 %v3032
    %4662 = vmatpush1.bf16.msra.mxu0 %v3031
    %4663 = vmatprep.subr.bf16.mxu0 %v3036
    %4664 = vmatpush1.bf16.msra.mxu0 %v3035
    %4665 = vmatprep.subr.bf16.mxu0 %v3040
    %4666 = vmatpush1.bf16.msra.mxu0 %v3039
    %4667 = vmatprep.subr.bf16.mxu0 %v3044
    %4668 = vmatpush1.bf16.msra.mxu0 %v3043
    %4669 = vmatprep.subr.bf16.mxu0 %v3048
    %4670 = vmatpush1.bf16.msra.mxu0 %v3047
    %4671 = vmatprep.subr.bf16.mxu0 %v3052
    %4672 = vmatpush1.bf16.msra.mxu0 %v3051
    %4673 = vmatprep.subr.bf16.mxu0 %v3056
    %4674 = vmatpush1.bf16.msra.mxu0 %v3055
    %4675 = vmatprep.subr.bf16.mxu0 %v3060
    %4676 = vmatpush1.bf16.msra.mxu0 %v3059
    %4677 = vmatprep.subr.bf16.mxu0 %v3064
    %4678 = vmatpush1.bf16.msra.mxu0 %v3063
    %4679 = vmatprep.subr.bf16.mxu0 %v3068
    %4680 = vmatpush1.bf16.msra.mxu0 %v3067
    %4681 = vmatprep.mubr.bf16.mxu0 %v1094
    %4682 = vmatmul.mubr.bf16.gmra.mrb[0].mxu0 %v1093
    %v4683 = vpop.f32.mrb[0].mxu0
    %v4684 = vadd.f32 %v4611, %v4683
    %v4685 = vpop.f32.mrb[0].mxu0
    %v4686 = vadd.f32 %v4613, %v4685
    %v4687 = vpop.f32.mrb[0].mxu0
    %v4688 = vadd.f32 %v4615, %v4687
    %v4689 = vpop.f32.mrb[0].mxu0
    %v4690 = vadd.f32 %v4617, %v4689
    %4691 = vmatprep.mubr.bf16.mxu0 %v1110
    %4692 = vmatmul.mubr.bf16.gmra.mrb[0].mxu0 %v1109
    %v4693 = vpop.f32.mrb[0].mxu0
    %v4694 = vadd.f32 %v4621, %v4693
    %v4695 = vpop.f32.mrb[0].mxu0
    %v4696 = vadd.f32 %v4623, %v4695
    %v4697 = vpop.f32.mrb[0].mxu0
    %v4698 = vadd.f32 %v4625, %v4697
    %v4699 = vpop.f32.mrb[0].mxu0
    %v4700 = vadd.f32 %v4627, %v4699
    %4701 = vmatprep.mubr.bf16.mxu0 %v1126
    %4702 = vmatmul.mubr.bf16.gmra.mrb[0].mxu0 %v1125
    %v4703 = vpop.f32.mrb[0].mxu0
    %v4704 = vadd.f32 %v4631, %v4703
    %v4705 = vpop.f32.mrb[0].mxu0
    %v4706 = vadd.f32 %v4633, %v4705
    %v4707 = vpop.f32.mrb[0].mxu0
    %v4708 = vadd.f32 %v4635, %v4707
    %v4709 = vpop.f32.mrb[0].mxu0
    %v4710 = vadd.f32 %v4637, %v4709
    %4711 = vmatprep.mubr.bf16.mxu0 %v1142
    %4712 = vmatmul.mubr.bf16.gmra.mrb[0].mxu0 %v1141
    %v4713 = vpop.f32.mrb[0].mxu0
    %v4714 = vadd.f32 %v4641, %v4713
    %v4715 = vpop.f32.mrb[0].mxu0
    %v4716 = vadd.f32 %v4643, %v4715
    %v4717 = vpop.f32.mrb[0].mxu0
    %v4718 = vadd.f32 %v4645, %v4717
    %v4719 = vpop.f32.mrb[0].mxu0
    %v4720 = vadd.f32 %v4647, %v4719
    %4721 = vdwg.mxu0
    %4722 = vmatprep.subr.bf16.mxu0 %v3072
    %4723 = vmatpush1.bf16.msra.mxu0 %v3071
    %4724 = vmatprep.subr.bf16.mxu0 %v3076
    %4725 = vmatpush1.bf16.msra.mxu0 %v3075
    %4726 = vmatprep.subr.bf16.mxu0 %v3080
    %4727 = vmatpush1.bf16.msra.mxu0 %v3079
    %4728 = vmatprep.subr.bf16.mxu0 %v3084
    %4729 = vmatpush1.bf16.msra.mxu0 %v3083
    %4730 = vmatprep.subr.bf16.mxu0 %v3088
    %4731 = vmatpush1.bf16.msra.mxu0 %v3087
    %4732 = vmatprep.subr.bf16.mxu0 %v3092
    %4733 = vmatpush1.bf16.msra.mxu0 %v3091
    %4734 = vmatprep.subr.bf16.mxu0 %v3096
    %4735 = vmatpush1.bf16.msra.mxu0 %v3095
    %4736 = vmatprep.subr.bf16.mxu0 %v3100
    %4737 = vmatpush1.bf16.msra.mxu0 %v3099
    %4738 = vmatprep.subr.bf16.mxu0 %v3104
    %4739 = vmatpush1.bf16.msra.mxu0 %v3103
    %4740 = vmatprep.subr.bf16.mxu0 %v3108
    %4741 = vmatpush1.bf16.msra.mxu0 %v3107
    %4742 = vmatprep.subr.bf16.mxu0 %v3112
    %4743 = vmatpush1.bf16.msra.mxu0 %v3111
    %4744 = vmatprep.subr.bf16.mxu0 %v3116
    %4745 = vmatpush1.bf16.msra.mxu0 %v3115
    %4746 = vmatprep.subr.bf16.mxu0 %v3120
    %4747 = vmatpush1.bf16.msra.mxu0 %v3119
    %4748 = vmatprep.subr.bf16.mxu0 %v3124
    %4749 = vmatpush1.bf16.msra.mxu0 %v3123
    %4750 = vmatprep.subr.bf16.mxu0 %v3128
    %4751 = vmatpush1.bf16.msra.mxu0 %v3127
    %4752 = vmatprep.subr.bf16.mxu0 %v3132
    %4753 = vmatpush1.bf16.msra.mxu0 %v3131
    %4754 = vmatprep.mubr.bf16.mxu0 %v1096
    %4755 = vmatmul.mubr.bf16.gmra.mrb[0].mxu0 %v1095
    %v4756 = vpop.f32.mrb[0].mxu0
    %v4757 = vadd.f32 %v4684, %v4756
    %v4758 = vpop.f32.mrb[0].mxu0
    %v4759 = vadd.f32 %v4686, %v4758
    %v4760 = vpop.f32.mrb[0].mxu0
    %v4761 = vadd.f32 %v4688, %v4760
    %v4762 = vpop.f32.mrb[0].mxu0
    %v4763 = vadd.f32 %v4690, %v4762
    %4764 = vmatprep.mubr.bf16.mxu0 %v1112
    %4765 = vmatmul.mubr.bf16.gmra.mrb[0].mxu0 %v1111
    %v4766 = vpop.f32.mrb[0].mxu0
    %v4767 = vadd.f32 %v4694, %v4766
    %v4768 = vpop.f32.mrb[0].mxu0
    %v4769 = vadd.f32 %v4696, %v4768
    %v4770 = vpop.f32.mrb[0].mxu0
    %v4771 = vadd.f32 %v4698, %v4770
    %v4772 = vpop.f32.mrb[0].mxu0
    %v4773 = vadd.f32 %v4700, %v4772
    %4774 = vmatprep.mubr.bf16.mxu0 %v1128
    %4775 = vmatmul.mubr.bf16.gmra.mrb[0].mxu0 %v1127
    %v4776 = vpop.f32.mrb[0].mxu0
    %v4777 = vadd.f32 %v4704, %v4776
    %v4778 = vpop.f32.mrb[0].mxu0
    %v4779 = vadd.f32 %v4706, %v4778
    %v4780 = vpop.f32.mrb[0].mxu0
    %v4781 = vadd.f32 %v4708, %v4780
    %v4782 = vpop.f32.mrb[0].mxu0
    %v4783 = vadd.f32 %v4710, %v4782
    %4784 = vmatprep.mubr.bf16.mxu0 %v1144
    %4785 = vmatmul.mubr.bf16.gmra.mrb[0].mxu0 %v1143
    %v4786 = vpop.f32.mrb[0].mxu0
    %v4787 = vadd.f32 %v4714, %v4786
    %v4788 = vpop.f32.mrb[0].mxu0
    %v4789 = vadd.f32 %v4716, %v4788
    %v4790 = vpop.f32.mrb[0].mxu0
    %v4791 = vadd.f32 %v4718, %v4790
    %v4792 = vpop.f32.mrb[0].mxu0
    %v4793 = vadd.f32 %v4720, %v4792
    %4794 = vdwg.mxu0
    %4795 = vmatprep.subr.bf16.mxu0 %v3136
    %4796 = vmatpush1.bf16.msra.mxu0 %v3135
    %4797 = vmatprep.subr.bf16.mxu0 %v3140
    %4798 = vmatpush1.bf16.msra.mxu0 %v3139
    %4799 = vmatprep.subr.bf16.mxu0 %v3144
    %4800 = vmatpush1.bf16.msra.mxu0 %v3143
    %4801 = vmatprep.subr.bf16.mxu0 %v3148
    %4802 = vmatpush1.bf16.msra.mxu0 %v3147
    %4803 = vmatprep.subr.bf16.mxu0 %v3152
    %4804 = vmatpush1.bf16.msra.mxu0 %v3151
    %4805 = vmatprep.subr.bf16.mxu0 %v3156
    %4806 = vmatpush1.bf16.msra.mxu0 %v3155
    %4807 = vmatprep.subr.bf16.mxu0 %v3160
    %4808 = vmatpush1.bf16.msra.mxu0 %v3159
    %4809 = vmatprep.subr.bf16.mxu0 %v3164
    %4810 = vmatpush1.bf16.msra.mxu0 %v3163
    %4811 = vmatprep.subr.bf16.mxu0 %v3168
    %4812 = vmatpush1.bf16.msra.mxu0 %v3167
    %4813 = vmatprep.subr.bf16.mxu0 %v3172
    %4814 = vmatpush1.bf16.msra.mxu0 %v3171
    %4815 = vmatprep.subr.bf16.mxu0 %v3176
    %4816 = vmatpush1.bf16.msra.mxu0 %v3175
    %4817 = vmatprep.subr.bf16.mxu0 %v3180
    %4818 = vmatpush1.bf16.msra.mxu0 %v3179
    %4819 = vmatprep.subr.bf16.mxu0 %v3184
    %4820 = vmatpush1.bf16.msra.mxu0 %v3183
    %4821 = vmatprep.subr.bf16.mxu0 %v3188
    %4822 = vmatpush1.bf16.msra.mxu0 %v3187
    %4823 = vmatprep.subr.bf16.mxu0 %v3192
    %4824 = vmatpush1.bf16.msra.mxu0 %v3191
    %4825 = vmatprep.subr.bf16.mxu0 %v3196
    %4826 = vmatpush1.bf16.msra.mxu0 %v3195
    %4827 = vmatprep.mubr.bf16.mxu0 %v1098
    %4828 = vmatmul.mubr.bf16.gmra.mrb[0].mxu0 %v1097
    %v4829 = vpop.f32.mrb[0].mxu0
    %v4830 = vadd.f32 %v4757, %v4829
    %v4831 = vpop.f32.mrb[0].mxu0
    %v4832 = vadd.f32 %v4759, %v4831
    %v4833 = vpop.f32.mrb[0].mxu0
    %v4834 = vadd.f32 %v4761, %v4833
    %v4835 = vpop.f32.mrb[0].mxu0
    %v4836 = vadd.f32 %v4763, %v4835
    %4837 = vmatprep.mubr.bf16.mxu0 %v1114
    %4838 = vmatmul.mubr.bf16.gmra.mrb[0].mxu0 %v1113
    %v4839 = vpop.f32.mrb[0].mxu0
    %v4840 = vadd.f32 %v4767, %v4839
    %v4841 = vpop.f32.mrb[0].mxu0
    %v4842 = vadd.f32 %v4769, %v4841
    %v4843 = vpop.f32.mrb[0].mxu0
    %v4844 = vadd.f32 %v4771, %v4843
    %v4845 = vpop.f32.mrb[0].mxu0
    %v4846 = vadd.f32 %v4773, %v4845
    %4847 = vmatprep.mubr.bf16.mxu0 %v1130
    %4848 = vmatmul.mubr.bf16.gmra.mrb[0].mxu0 %v1129
    %v4849 = vpop.f32.mrb[0].mxu0
    %v4850 = vadd.f32 %v4777, %v4849
    %v4851 = vpop.f32.mrb[0].mxu0
    %v4852 = vadd.f32 %v4779, %v4851
    %v4853 = vpop.f32.mrb[0].mxu0
    %v4854 = vadd.f32 %v4781, %v4853
    %v4855 = vpop.f32.mrb[0].mxu0
    %v4856 = vadd.f32 %v4783, %v4855
    %4857 = vmatprep.mubr.bf16.mxu0 %v1146
    %4858 = vmatmul.mubr.bf16.gmra.mrb[0].mxu0 %v1145
    %v4859 = vpop.f32.mrb[0].mxu0
    %v4860 = vadd.f32 %v4787, %v4859
    %v4861 = vpop.f32.mrb[0].mxu0
    %v4862 = vadd.f32 %v4789, %v4861
    %v4863 = vpop.f32.mrb[0].mxu0
    %v4864 = vadd.f32 %v4791, %v4863
    %v4865 = vpop.f32.mrb[0].mxu0
    %v4866 = vadd.f32 %v4793, %v4865
    %4867 = vdwg.mxu0
    %4868 = vmatprep.subr.bf16.mxu0 %v3200
    %4869 = vmatpush1.bf16.msra.mxu0 %v3199
    %4870 = vmatprep.subr.bf16.mxu0 %v3204
    %4871 = vmatpush1.bf16.msra.mxu0 %v3203
    %4872 = vmatprep.subr.bf16.mxu0 %v3208
    %4873 = vmatpush1.bf16.msra.mxu0 %v3207
    %4874 = vmatprep.subr.bf16.mxu0 %v3212
    %4875 = vmatpush1.bf16.msra.mxu0 %v3211
    %4876 = vmatprep.subr.bf16.mxu0 %v3216
    %4877 = vmatpush1.bf16.msra.mxu0 %v3215
    %4878 = vmatprep.subr.bf16.mxu0 %v3220
    %4879 = vmatpush1.bf16.msra.mxu0 %v3219
    %4880 = vmatprep.subr.bf16.mxu0 %v3224
    %4881 = vmatpush1.bf16.msra.mxu0 %v3223
    %4882 = vmatprep.subr.bf16.mxu0 %v3228
    %4883 = vmatpush1.bf16.msra.mxu0 %v3227
    %4884 = vmatprep.subr.bf16.mxu0 %v3232
    %4885 = vmatpush1.bf16.msra.mxu0 %v3231
    %4886 = vmatprep.subr.bf16.mxu0 %v3236
    %4887 = vmatpush1.bf16.msra.mxu0 %v3235
    %4888 = vmatprep.subr.bf16.mxu0 %v3240
    %4889 = vmatpush1.bf16.msra.mxu0 %v3239
    %4890 = vmatprep.subr.bf16.mxu0 %v3244
    %4891 = vmatpush1.bf16.msra.mxu0 %v3243
    %4892 = vmatprep.subr.bf16.mxu0 %v3248
    %4893 = vmatpush1.bf16.msra.mxu0 %v3247
    %4894 = vmatprep.subr.bf16.mxu0 %v3252
    %4895 = vmatpush1.bf16.msra.mxu0 %v3251
    %4896 = vmatprep.subr.bf16.mxu0 %v3256
    %4897 = vmatpush1.bf16.msra.mxu0 %v3255
    %4898 = vmatprep.subr.bf16.mxu0 %v3260
    %4899 = vmatpush1.bf16.msra.mxu0 %v3259
    %4900 = vmatprep.mubr.bf16.mxu0 %v1100
    %4901 = vmatmul.mubr.bf16.gmra.mrb[0].mxu0 %v1099
    %v4902 = vpop.f32.mrb[0].mxu0
    %v4903 = vadd.f32 %v4830, %v4902
    %v4904 = vpop.f32.mrb[0].mxu0
    %v4905 = vadd.f32 %v4832, %v4904
    %v4906 = vpop.f32.mrb[0].mxu0
    %v4907 = vadd.f32 %v4834, %v4906
    %v4908 = vpop.f32.mrb[0].mxu0
    %v4909 = vadd.f32 %v4836, %v4908
    %4910 = vmatprep.mubr.bf16.mxu0 %v1116
    %4911 = vmatmul.mubr.bf16.gmra.mrb[0].mxu0 %v1115
    %v4912 = vpop.f32.mrb[0].mxu0
    %v4913 = vadd.f32 %v4840, %v4912
    %v4914 = vpop.f32.mrb[0].mxu0
    %v4915 = vadd.f32 %v4842, %v4914
    %v4916 = vpop.f32.mrb[0].mxu0
    %v4917 = vadd.f32 %v4844, %v4916
    %v4918 = vpop.f32.mrb[0].mxu0
    %v4919 = vadd.f32 %v4846, %v4918
    %4920 = vmatprep.mubr.bf16.mxu0 %v1132
    %4921 = vmatmul.mubr.bf16.gmra.mrb[0].mxu0 %v1131
    %v4922 = vpop.f32.mrb[0].mxu0
    %v4923 = vadd.f32 %v4850, %v4922
    %v4924 = vpop.f32.mrb[0].mxu0
    %v4925 = vadd.f32 %v4852, %v4924
    %v4926 = vpop.f32.mrb[0].mxu0
    %v4927 = vadd.f32 %v4854, %v4926
    %v4928 = vpop.f32.mrb[0].mxu0
    %v4929 = vadd.f32 %v4856, %v4928
    %4930 = vmatprep.mubr.bf16.mxu0 %v1148
    %4931 = vmatmul.mubr.bf16.gmra.mrb[0].mxu0 %v1147
    %v4932 = vpop.f32.mrb[0].mxu0
    %v4933 = vadd.f32 %v4860, %v4932
    %v4934 = vpop.f32.mrb[0].mxu0
    %v4935 = vadd.f32 %v4862, %v4934
    %v4936 = vpop.f32.mrb[0].mxu0
    %v4937 = vadd.f32 %v4864, %v4936
    %v4938 = vpop.f32.mrb[0].mxu0
    %v4939 = vadd.f32 %v4866, %v4938
    %4940 = vdwg.mxu0
    %v4941 = vadd.f32 %v349, %v4319
    %v4942 = vadd.f32 %v350, %v4321
    %v4943 = vadd.f32 %v351, %v4903
    %v4944 = vadd.f32 %v352, %v4905
    %v4945 = vadd.f32 %v353, %v4323
    %v4946 = vadd.f32 %v354, %v4325
    %v4947 = vadd.f32 %v355, %v4907
    %v4948 = vadd.f32 %v356, %v4909
    %v4949 = vadd.f32 %v357, %v4329
    %v4950 = vadd.f32 %v358, %v4331
    %v4951 = vadd.f32 %v359, %v4913
    %v4952 = vadd.f32 %v360, %v4915
    %v4953 = vadd.f32 %v361, %v4333
    %v4954 = vadd.f32 %v362, %v4335
    %v4955 = vadd.f32 %v363, %v4917
    %v4956 = vadd.f32 %v364, %v4919
    %v4957 = vadd.f32 %v365, %v4339
    %v4958 = vadd.f32 %v366, %v4341
    %v4959 = vadd.f32 %v367, %v4923
    %v4960 = vadd.f32 %v368, %v4925
    %v4961 = vadd.f32 %v369, %v4343
    %v4962 = vadd.f32 %v370, %v4345
    %v4963 = vadd.f32 %v371, %v4927
    %v4964 = vadd.f32 %v372, %v4929
    %v4965 = vadd.f32 %v373, %v4349
    %v4966 = vadd.f32 %v374, %v4351
    %v4967 = vadd.f32 %v375, %v4933
    %v4968 = vadd.f32 %v376, %v4935
    %v4969 = vadd.f32 %v377, %v4353
    %v4970 = vadd.f32 %v378, %v4355
    %v4971 = vadd.f32 %v379, %v4937
    %v4972 = vadd.f32 %v380, %v4939
    %4973 = vst [vmem:[#allocation2] sm:$0xff] %v4941
    %4974 = vst [vmem:[#allocation2 + $0x8] sm:$0xff] %v4942
    %4975 = vst [vmem:[#allocation2 + $0x10] sm:$0xff] %v4943
    %4976 = vst [vmem:[#allocation2 + $0x18] sm:$0xff] %v4944
    %4977 = vst [vmem:[#allocation2 + $0x20] sm:$0xff] %v4945
    %4978 = vst [vmem:[#allocation2 + $0x28] sm:$0xff] %v4946
    %4979 = vst [vmem:[#allocation2 + $0x30] sm:$0xff] %v4947
    %4980 = vst [vmem:[#allocation2 + $0x38] sm:$0xff] %v4948
    %4981 = vst [vmem:[#allocation2 + $0x40] sm:$0xff] %v4949
    %4982 = vst [vmem:[#allocation2 + $0x48] sm:$0xff] %v4950
    %4983 = vst [vmem:[#allocation2 + $0x50] sm:$0xff] %v4951
    %4984 = vst [vmem:[#allocation2 + $0x58] sm:$0xff] %v4952
    %4985 = vst [vmem:[#allocation2 + $0x60] sm:$0xff] %v4953
    %4986 = vst [vmem:[#allocation2 + $0x68] sm:$0xff] %v4954
    %4987 = vst [vmem:[#allocation2 + $0x70] sm:$0xff] %v4955
    %4988 = vst [vmem:[#allocation2 + $0x78] sm:$0xff] %v4956
    %4989 = vst [vmem:[#allocation2 + $0x80] sm:$0xff] %v4957
    %4990 = vst [vmem:[#allocation2 + $0x88] sm:$0xff] %v4958
    %4991 = vst [vmem:[#allocation2 + $0x90] sm:$0xff] %v4959
    %4992 = vst [vmem:[#allocation2 + $0x98] sm:$0xff] %v4960
    %4993 = vst [vmem:[#allocation2 + $0xa0] sm:$0xff] %v4961
    %4994 = vst [vmem:[#allocation2 + $0xa8] sm:$0xff] %v4962
    %4995 = vst [vmem:[#allocation2 + $0xb0] sm:$0xff] %v4963
    %4996 = vst [vmem:[#allocation2 + $0xb8] sm:$0xff] %v4964
    %4997 = vst [vmem:[#allocation2 + $0xc0] sm:$0xff] %v4965
    %4998 = vst [vmem:[#allocation2 + $0xc8] sm:$0xff] %v4966
    %4999 = vst [vmem:[#allocation2 + $0xd0] sm:$0xff] %v4967
    %5000 = vst [vmem:[#allocation2 + $0xd8] sm:$0xff] %v4968
    %5001 = vst [vmem:[#allocation2 + $0xe0] sm:$0xff] %v4969
    %5002 = vst [vmem:[#allocation2 + $0xe8] sm:$0xff] %v4970
    %5003 = vst [vmem:[#allocation2 + $0xf0] sm:$0xff] %v4971
    %5004 = vst [vmem:[#allocation2 + $0xf8] sm:$0xff] %v4972
    // Predicated region
    $region122: #{_mlp_forward.1} parent=1 // pred_check
      %p5005 = pneg %p227
    $region123: #{_mlp_forward.1} parent=1 // pred_check_branch
      %5007 = sbr.rel (%p5005) target = $region125
    $region124: #{_mlp_forward.1} parent=1 // pred_region
      %v5008 = vld [vmem:[#allocation2] sm:$0xff]
      %v5009 = vld [vmem:[#allocation2 + $0x8] sm:$0xff]
      %v5010 = vld [vmem:[#allocation2 + $0x10] sm:$0xff]
      %v5011 = vld [vmem:[#allocation2 + $0x18] sm:$0xff]
      %v5012 = vld [vmem:[#allocation2 + $0x20] sm:$0xff]
      %v5013 = vld [vmem:[#allocation2 + $0x28] sm:$0xff]
      %v5014 = vld [vmem:[#allocation2 + $0x30] sm:$0xff]
      %v5015 = vld [vmem:[#allocation2 + $0x38] sm:$0xff]
      %v5016 = vld [vmem:[#allocation2 + $0x40] sm:$0xff]
      %v5017 = vld [vmem:[#allocation2 + $0x48] sm:$0xff]
      %v5018 = vld [vmem:[#allocation2 + $0x50] sm:$0xff]
      %v5019 = vld [vmem:[#allocation2 + $0x58] sm:$0xff]
      %v5020 = vld [vmem:[#allocation2 + $0x60] sm:$0xff]
      %v5021 = vld [vmem:[#allocation2 + $0x68] sm:$0xff]
      %v5022 = vld [vmem:[#allocation2 + $0x70] sm:$0xff]
      %v5023 = vld [vmem:[#allocation2 + $0x78] sm:$0xff]
      %v5024 = vld [vmem:[#allocation2 + $0x80] sm:$0xff]
      %v5025 = vld [vmem:[#allocation2 + $0x88] sm:$0xff]
      %v5026 = vld [vmem:[#allocation2 + $0x90] sm:$0xff]
      %v5027 = vld [vmem:[#allocation2 + $0x98] sm:$0xff]
      %v5028 = vld [vmem:[#allocation2 + $0xa0] sm:$0xff]
      %v5029 = vld [vmem:[#allocation2 + $0xa8] sm:$0xff]
      %v5030 = vld [vmem:[#allocation2 + $0xb0] sm:$0xff]
      %v5031 = vld [vmem:[#allocation2 + $0xb8] sm:$0xff]
      %v5032 = vld [vmem:[#allocation2 + $0xc0] sm:$0xff]
      %v5033 = vld [vmem:[#allocation2 + $0xc8] sm:$0xff]
      %v5034 = vld [vmem:[#allocation2 + $0xd0] sm:$0xff]
      %v5035 = vld [vmem:[#allocation2 + $0xd8] sm:$0xff]
      %v5036 = vld [vmem:[#allocation2 + $0xe0] sm:$0xff]
      %v5037 = vld [vmem:[#allocation2 + $0xe8] sm:$0xff]
      %v5038 = vld [vmem:[#allocation2 + $0xf0] sm:$0xff]
      %v5039 = vld [vmem:[#allocation2 + $0xf8] sm:$0xff]
      %v5040 = vmax.f32 %v5008, 0.0
      %v5041 = vmax.f32 %v5009, 0.0
      %v5042 = vmax.f32 %v5010, 0.0
      %v5043 = vmax.f32 %v5011, 0.0
      %v5044 = vmax.f32 %v5012, 0.0
      %v5045 = vmax.f32 %v5013, 0.0
      %v5046 = vmax.f32 %v5014, 0.0
      %v5047 = vmax.f32 %v5015, 0.0
      %v5048 = vmax.f32 %v5016, 0.0
      %v5049 = vmax.f32 %v5017, 0.0
      %v5050 = vmax.f32 %v5018, 0.0
      %v5051 = vmax.f32 %v5019, 0.0
      %v5052 = vmax.f32 %v5020, 0.0
      %v5053 = vmax.f32 %v5021, 0.0
      %v5054 = vmax.f32 %v5022, 0.0
      %v5055 = vmax.f32 %v5023, 0.0
      %v5056 = vmax.f32 %v5024, 0.0
      %v5057 = vmax.f32 %v5025, 0.0
      %v5058 = vmax.f32 %v5026, 0.0
      %v5059 = vmax.f32 %v5027, 0.0
      %v5060 = vmax.f32 %v5028, 0.0
      %v5061 = vmax.f32 %v5029, 0.0
      %v5062 = vmax.f32 %v5030, 0.0
      %v5063 = vmax.f32 %v5031, 0.0
      %v5064 = vmax.f32 %v5032, 0.0
      %v5065 = vmax.f32 %v5033, 0.0
      %v5066 = vmax.f32 %v5034, 0.0
      %v5067 = vmax.f32 %v5035, 0.0
      %v5068 = vmax.f32 %v5036, 0.0
      %v5069 = vmax.f32 %v5037, 0.0
      %v5070 = vmax.f32 %v5038, 0.0
      %v5071 = vmax.f32 %v5039, 0.0
      %v5072 = vpack.c.bf16 %v5044, %v5040
      %v5073 = vpack.c.bf16 %v5045, %v5041
      %v5074 = vpack.c.bf16 %v5046, %v5042
      %v5075 = vpack.c.bf16 %v5047, %v5043
      %v5076 = vpack.c.bf16 %v5052, %v5048
      %v5077 = vpack.c.bf16 %v5053, %v5049
      %v5078 = vpack.c.bf16 %v5054, %v5050
      %v5079 = vpack.c.bf16 %v5055, %v5051
      %v5080 = vpack.c.bf16 %v5060, %v5056
      %v5081 = vpack.c.bf16 %v5061, %v5057
      %v5082 = vpack.c.bf16 %v5062, %v5058
      %v5083 = vpack.c.bf16 %v5063, %v5059
      %v5084 = vpack.c.bf16 %v5068, %v5064
      %v5085 = vpack.c.bf16 %v5069, %v5065
      %v5086 = vpack.c.bf16 %v5070, %v5066
      %v5087 = vpack.c.bf16 %v5071, %v5067
      %v5088 = vld [vmem:[#allocation7] sm:$0xf]
      %v5089 = vld [vmem:[#allocation7 + $0x4] sm:$0xf]
      %v5090 = vld [vmem:[#allocation7 + $0x8] sm:$0xf]
      %v5091 = vld [vmem:[#allocation7 + $0xc] sm:$0xf]
      %v5092 = vld [vmem:[#allocation7 + $0x10] sm:$0xf]
      %v5093 = vld [vmem:[#allocation7 + $0x14] sm:$0xf]
      %v5094 = vld [vmem:[#allocation7 + $0x18] sm:$0xf]
      %v5095 = vld [vmem:[#allocation7 + $0x1c] sm:$0xf]
      %v5096 = vld [vmem:[#allocation7 + $0x20] sm:$0xf]
      %v5097 = vld [vmem:[#allocation7 + $0x24] sm:$0xf]
      %v5098 = vld [vmem:[#allocation7 + $0x28] sm:$0xf]
      %v5099 = vld [vmem:[#allocation7 + $0x2c] sm:$0xf]
      %v5100 = vld [vmem:[#allocation7 + $0x30] sm:$0xf]
      %v5101 = vld [vmem:[#allocation7 + $0x34] sm:$0xf]
      %v5102 = vld [vmem:[#allocation7 + $0x38] sm:$0xf]
      %v5103 = vld [vmem:[#allocation7 + $0x3c] sm:$0xf]
      %v5104 = vld [vmem:[#allocation7 + $0x40] sm:$0xf]
      %v5105 = vld [vmem:[#allocation7 + $0x44] sm:$0xf]
      %v5106 = vld [vmem:[#allocation7 + $0x48] sm:$0xf]
      %v5107 = vld [vmem:[#allocation7 + $0x4c] sm:$0xf]
      %v5108 = vld [vmem:[#allocation7 + $0x50] sm:$0xf]
      %v5109 = vld [vmem:[#allocation7 + $0x54] sm:$0xf]
      %v5110 = vld [vmem:[#allocation7 + $0x58] sm:$0xf]
      %v5111 = vld [vmem:[#allocation7 + $0x5c] sm:$0xf]
      %v5112 = vld [vmem:[#allocation7 + $0x60] sm:$0xf]
      %v5113 = vld [vmem:[#allocation7 + $0x64] sm:$0xf]
      %v5114 = vld [vmem:[#allocation7 + $0x68] sm:$0xf]
      %v5115 = vld [vmem:[#allocation7 + $0x6c] sm:$0xf]
      %v5116 = vld [vmem:[#allocation7 + $0x70] sm:$0xf]
      %v5117 = vld [vmem:[#allocation7 + $0x74] sm:$0xf]
      %v5118 = vld [vmem:[#allocation7 + $0x78] sm:$0xf]
      %v5119 = vld [vmem:[#allocation7 + $0x7c] sm:$0xf]
      %v5120 = vld [vmem:[#allocation7 + $0x80] sm:$0xf]
      %v5121 = vld [vmem:[#allocation7 + $0x84] sm:$0xf]
      %v5122 = vld [vmem:[#allocation7 + $0x88] sm:$0xf]
      %v5123 = vld [vmem:[#allocation7 + $0x8c] sm:$0xf]
      %v5124 = vld [vmem:[#allocation7 + $0x90] sm:$0xf]
      %v5125 = vld [vmem:[#allocation7 + $0x94] sm:$0xf]
      %v5126 = vld [vmem:[#allocation7 + $0x98] sm:$0xf]
      %v5127 = vld [vmem:[#allocation7 + $0x9c] sm:$0xf]
      %v5128 = vld [vmem:[#allocation7 + $0xa0] sm:$0xf]
      %v5129 = vld [vmem:[#allocation7 + $0xa4] sm:$0xf]
      %v5130 = vld [vmem:[#allocation7 + $0xa8] sm:$0xf]
      %v5131 = vld [vmem:[#allocation7 + $0xac] sm:$0xf]
      %v5132 = vld [vmem:[#allocation7 + $0xb0] sm:$0xf]
      %v5133 = vld [vmem:[#allocation7 + $0xb4] sm:$0xf]
      %v5134 = vld [vmem:[#allocation7 + $0xb8] sm:$0xf]
      %v5135 = vld [vmem:[#allocation7 + $0xbc] sm:$0xf]
      %v5136 = vld [vmem:[#allocation7 + $0xc0] sm:$0xf]
      %v5137 = vld [vmem:[#allocation7 + $0xc4] sm:$0xf]
      %v5138 = vld [vmem:[#allocation7 + $0xc8] sm:$0xf]
      %v5139 = vld [vmem:[#allocation7 + $0xcc] sm:$0xf]
      %v5140 = vld [vmem:[#allocation7 + $0xd0] sm:$0xf]
      %v5141 = vld [vmem:[#allocation7 + $0xd4] sm:$0xf]
      %v5142 = vld [vmem:[#allocation7 + $0xd8] sm:$0xf]
      %v5143 = vld [vmem:[#allocation7 + $0xdc] sm:$0xf]
      %v5144 = vld [vmem:[#allocation7 + $0xe0] sm:$0xf]
      %v5145 = vld [vmem:[#allocation7 + $0xe4] sm:$0xf]
      %v5146 = vld [vmem:[#allocation7 + $0xe8] sm:$0xf]
      %v5147 = vld [vmem:[#allocation7 + $0xec] sm:$0xf]
      %v5148 = vld [vmem:[#allocation7 + $0xf0] sm:$0xf]
      %v5149 = vld [vmem:[#allocation7 + $0xf4] sm:$0xf]
      %v5150 = vld [vmem:[#allocation7 + $0xf8] sm:$0xf]
      %v5151 = vld [vmem:[#allocation7 + $0xfc] sm:$0xf]
      %v5152 = vld [vmem:[#allocation8] sm:$0x1]
      %v5154 = vlaneseq
      %v5155 = vshrl.u32 %v5154, 7
      %v5156 = vsub.s32 0, %v5155
      %v5157 = vrot.slane %v5152, %v5156
      %v5223 = vunpack.c.l.b16 %v5088
      %v5224 = vunpack.c.l.b16 %v5089
      %v5225 = vunpack.c.l.b16 %v5090
      %v5226 = vunpack.c.l.b16 %v5091
      %v5227 = vunpack.c.l.b16 %v5092
      %v5228 = vunpack.c.l.b16 %v5093
      %v5229 = vunpack.c.l.b16 %v5094
      %v5230 = vunpack.c.l.b16 %v5095
      %v5231 = vunpack.c.l.b16 %v5096
      %v5232 = vunpack.c.l.b16 %v5097
      %v5233 = vunpack.c.l.b16 %v5098
      %v5234 = vunpack.c.l.b16 %v5099
      %v5235 = vunpack.c.l.b16 %v5100
      %v5236 = vunpack.c.l.b16 %v5101
      %v5237 = vunpack.c.l.b16 %v5102
      %v5238 = vunpack.c.l.b16 %v5103
      %v5239 = vunpack.c.l.b16 %v5104
      %v5240 = vunpack.c.l.b16 %v5105
      %v5241 = vunpack.c.l.b16 %v5106
      %v5242 = vunpack.c.l.b16 %v5107
      %v5243 = vunpack.c.l.b16 %v5108
      %v5244 = vunpack.c.l.b16 %v5109
      %v5245 = vunpack.c.l.b16 %v5110
      %v5246 = vunpack.c.l.b16 %v5111
      %v5247 = vunpack.c.l.b16 %v5112
      %v5248 = vunpack.c.l.b16 %v5113
      %v5249 = vunpack.c.l.b16 %v5114
      %v5250 = vunpack.c.l.b16 %v5115
      %v5251 = vunpack.c.l.b16 %v5116
      %v5252 = vunpack.c.l.b16 %v5117
      %v5253 = vunpack.c.l.b16 %v5118
      %v5254 = vunpack.c.l.b16 %v5119
      %v5255 = vunpack.c.l.b16 %v5120
      %v5256 = vunpack.c.l.b16 %v5121
      %v5257 = vunpack.c.l.b16 %v5122
      %v5258 = vunpack.c.l.b16 %v5123
      %v5259 = vunpack.c.l.b16 %v5124
      %v5260 = vunpack.c.l.b16 %v5125
      %v5261 = vunpack.c.l.b16 %v5126
      %v5262 = vunpack.c.l.b16 %v5127
      %v5263 = vunpack.c.l.b16 %v5128
      %v5264 = vunpack.c.l.b16 %v5129
      %v5265 = vunpack.c.l.b16 %v5130
      %v5266 = vunpack.c.l.b16 %v5131
      %v5267 = vunpack.c.l.b16 %v5132
      %v5268 = vunpack.c.l.b16 %v5133
      %v5269 = vunpack.c.l.b16 %v5134
      %v5270 = vunpack.c.l.b16 %v5135
      %v5271 = vunpack.c.l.b16 %v5136
      %v5272 = vunpack.c.l.b16 %v5137
      %v5273 = vunpack.c.l.b16 %v5138
      %v5274 = vunpack.c.l.b16 %v5139
      %v5275 = vunpack.c.l.b16 %v5140
      %v5276 = vunpack.c.l.b16 %v5141
      %v5277 = vunpack.c.l.b16 %v5142
      %v5278 = vunpack.c.l.b16 %v5143
      %v5279 = vunpack.c.l.b16 %v5144
      %v5280 = vunpack.c.l.b16 %v5145
      %v5281 = vunpack.c.l.b16 %v5146
      %v5282 = vunpack.c.l.b16 %v5147
      %v5283 = vunpack.c.l.b16 %v5148
      %v5284 = vunpack.c.l.b16 %v5149
      %v5285 = vunpack.c.l.b16 %v5150
      %v5286 = vunpack.c.l.b16 %v5151
      %v5287 = vpack.c.b16 %v5224, %v5223
      %v5288 = vpack.c.b16 %v5226, %v5225
      %v5289 = vpack.c.b16 %v5228, %v5227
      %v5290 = vpack.c.b16 %v5230, %v5229
      %v5291 = vpack.c.b16 %v5232, %v5231
      %v5292 = vpack.c.b16 %v5234, %v5233
      %v5293 = vpack.c.b16 %v5236, %v5235
      %v5294 = vpack.c.b16 %v5238, %v5237
      %v5295 = vpack.c.b16 %v5240, %v5239
      %v5296 = vpack.c.b16 %v5242, %v5241
      %v5297 = vpack.c.b16 %v5244, %v5243
      %v5298 = vpack.c.b16 %v5246, %v5245
      %v5299 = vpack.c.b16 %v5248, %v5247
      %v5300 = vpack.c.b16 %v5250, %v5249
      %v5301 = vpack.c.b16 %v5252, %v5251
      %v5302 = vpack.c.b16 %v5254, %v5253
      %v5303 = vpack.c.b16 %v5256, %v5255
      %v5304 = vpack.c.b16 %v5258, %v5257
      %v5305 = vpack.c.b16 %v5260, %v5259
      %v5306 = vpack.c.b16 %v5262, %v5261
      %v5307 = vpack.c.b16 %v5264, %v5263
      %v5308 = vpack.c.b16 %v5266, %v5265
      %v5309 = vpack.c.b16 %v5268, %v5267
      %v5310 = vpack.c.b16 %v5270, %v5269
      %v5311 = vpack.c.b16 %v5272, %v5271
      %v5312 = vpack.c.b16 %v5274, %v5273
      %v5313 = vpack.c.b16 %v5276, %v5275
      %v5314 = vpack.c.b16 %v5278, %v5277
      %v5315 = vpack.c.b16 %v5280, %v5279
      %v5316 = vpack.c.b16 %v5282, %v5281
      %v5317 = vpack.c.b16 %v5284, %v5283
      %v5318 = vpack.c.b16 %v5286, %v5285
      %5351 = vmatprep.subr.bf16.mxu0 0
      %5352 = vmatpush1.bf16.msra.mxu0 %v5287
      %5353 = vmatprep.subr.bf16.mxu0 0
      %5354 = vmatpush1.bf16.msra.mxu0 %v5288
      %5355 = vmatprep.subr.bf16.mxu0 0
      %5356 = vmatpush1.bf16.msra.mxu0 %v5289
      %5357 = vmatprep.subr.bf16.mxu0 0
      %5358 = vmatpush1.bf16.msra.mxu0 %v5290
      %5359 = vmatprep.subr.bf16.mxu0 0
      %5360 = vmatpush1.bf16.msra.mxu0 %v5291
      %5361 = vmatprep.subr.bf16.mxu0 0
      %5362 = vmatpush1.bf16.msra.mxu0 %v5292
      %5363 = vmatprep.subr.bf16.mxu0 0
      %5364 = vmatpush1.bf16.msra.mxu0 %v5293
      %5365 = vmatprep.subr.bf16.mxu0 0
      %5366 = vmatpush1.bf16.msra.mxu0 %v5294
      %5367 = vmatprep.subr.bf16.mxu0 0
      %5368 = vmatpush1.bf16.msra.mxu0 %v5295
      %5369 = vmatprep.subr.bf16.mxu0 0
      %5370 = vmatpush1.bf16.msra.mxu0 %v5296
      %5371 = vmatprep.subr.bf16.mxu0 0
      %5372 = vmatpush1.bf16.msra.mxu0 %v5297
      %5373 = vmatprep.subr.bf16.mxu0 0
      %5374 = vmatpush1.bf16.msra.mxu0 %v5298
      %5375 = vmatprep.subr.bf16.mxu0 0
      %5376 = vmatpush1.bf16.msra.mxu0 %v5299
      %5377 = vmatprep.subr.bf16.mxu0 0
      %5378 = vmatpush1.bf16.msra.mxu0 %v5300
      %5379 = vmatprep.subr.bf16.mxu0 0
      %5380 = vmatpush1.bf16.msra.mxu0 %v5301
      %5381 = vmatprep.subr.bf16.mxu0 0
      %5382 = vmatpush1.bf16.msra.mxu0 %v5302
      %5383 = vmatprep.mubr.bf16.mxu0 %v5073
      %5384 = vmatmul.mubr.bf16.gmra.mrb[0].mxu0 %v5072
      %v5385 = vpop.f32.mrb[0].mxu0
      %v5386 = vadd.f32 %v5157, %v5385
      %v5387 = vpop.f32.mrb[0].mxu0
      %v5388 = vpop.f32.mrb[0].mxu0
      %v5389 = vadd.f32 %v5157, %v5388
      %v5390 = vpop.f32.mrb[0].mxu0
      %5391 = vmatprep.mubr.bf16.mxu0 %v5077
      %5392 = vmatmul.mubr.bf16.gmra.mrb[0].mxu0 %v5076
      %v5393 = vpop.f32.mrb[0].mxu0
      %v5394 = vadd.f32 %v5157, %v5393
      %v5395 = vpop.f32.mrb[0].mxu0
      %v5396 = vpop.f32.mrb[0].mxu0
      %v5397 = vadd.f32 %v5157, %v5396
      %v5398 = vpop.f32.mrb[0].mxu0
      %5399 = vmatprep.mubr.bf16.mxu0 %v5081
      %5400 = vmatmul.mubr.bf16.gmra.mrb[0].mxu0 %v5080
      %v5401 = vpop.f32.mrb[0].mxu0
      %v5402 = vadd.f32 %v5157, %v5401
      %v5403 = vpop.f32.mrb[0].mxu0
      %v5404 = vpop.f32.mrb[0].mxu0
      %v5405 = vadd.f32 %v5157, %v5404
      %v5406 = vpop.f32.mrb[0].mxu0
      %5407 = vmatprep.mubr.bf16.mxu0 %v5085
      %5408 = vmatmul.mubr.bf16.gmra.mrb[0].mxu0 %v5084
      %v5409 = vpop.f32.mrb[0].mxu0
      %v5410 = vadd.f32 %v5157, %v5409
      %v5411 = vpop.f32.mrb[0].mxu0
      %v5412 = vpop.f32.mrb[0].mxu0
      %v5413 = vadd.f32 %v5157, %v5412
      %v5414 = vpop.f32.mrb[0].mxu0
      %5415 = vdwg.mxu0
      %5416 = vmatprep.subr.bf16.mxu0 0
      %5417 = vmatpush1.bf16.msra.mxu0 %v5303
      %5418 = vmatprep.subr.bf16.mxu0 0
      %5419 = vmatpush1.bf16.msra.mxu0 %v5304
      %5420 = vmatprep.subr.bf16.mxu0 0
      %5421 = vmatpush1.bf16.msra.mxu0 %v5305
      %5422 = vmatprep.subr.bf16.mxu0 0
      %5423 = vmatpush1.bf16.msra.mxu0 %v5306
      %5424 = vmatprep.subr.bf16.mxu0 0
      %5425 = vmatpush1.bf16.msra.mxu0 %v5307
      %5426 = vmatprep.subr.bf16.mxu0 0
      %5427 = vmatpush1.bf16.msra.mxu0 %v5308
      %5428 = vmatprep.subr.bf16.mxu0 0
      %5429 = vmatpush1.bf16.msra.mxu0 %v5309
      %5430 = vmatprep.subr.bf16.mxu0 0
      %5431 = vmatpush1.bf16.msra.mxu0 %v5310
      %5432 = vmatprep.subr.bf16.mxu0 0
      %5433 = vmatpush1.bf16.msra.mxu0 %v5311
      %5434 = vmatprep.subr.bf16.mxu0 0
      %5435 = vmatpush1.bf16.msra.mxu0 %v5312
      %5436 = vmatprep.subr.bf16.mxu0 0
      %5437 = vmatpush1.bf16.msra.mxu0 %v5313
      %5438 = vmatprep.subr.bf16.mxu0 0
      %5439 = vmatpush1.bf16.msra.mxu0 %v5314
      %5440 = vmatprep.subr.bf16.mxu0 0
      %5441 = vmatpush1.bf16.msra.mxu0 %v5315
      %5442 = vmatprep.subr.bf16.mxu0 0
      %5443 = vmatpush1.bf16.msra.mxu0 %v5316
      %5444 = vmatprep.subr.bf16.mxu0 0
      %5445 = vmatpush1.bf16.msra.mxu0 %v5317
      %5446 = vmatprep.subr.bf16.mxu0 0
      %5447 = vmatpush1.bf16.msra.mxu0 %v5318
      %5448 = vmatprep.mubr.bf16.mxu0 %v5075
      %5449 = vmatmul.mubr.bf16.gmra.mrb[0].mxu0 %v5074
      %v5450 = vpop.f32.mrb[0].mxu0
      %v5451 = vadd.f32 %v5386, %v5450
      %v5452 = vpop.f32.mrb[0].mxu0
      %v5453 = vpop.f32.mrb[0].mxu0
      %v5454 = vadd.f32 %v5389, %v5453
      %v5455 = vpop.f32.mrb[0].mxu0
      %5456 = vmatprep.mubr.bf16.mxu0 %v5079
      %5457 = vmatmul.mubr.bf16.gmra.mrb[0].mxu0 %v5078
      %v5458 = vpop.f32.mrb[0].mxu0
      %v5459 = vadd.f32 %v5394, %v5458
      %v5460 = vpop.f32.mrb[0].mxu0
      %v5461 = vpop.f32.mrb[0].mxu0
      %v5462 = vadd.f32 %v5397, %v5461
      %v5463 = vpop.f32.mrb[0].mxu0
      %5464 = vmatprep.mubr.bf16.mxu0 %v5083
      %5465 = vmatmul.mubr.bf16.gmra.mrb[0].mxu0 %v5082
      %v5466 = vpop.f32.mrb[0].mxu0
      %v5467 = vadd.f32 %v5402, %v5466
      %v5468 = vpop.f32.mrb[0].mxu0
      %v5469 = vpop.f32.mrb[0].mxu0
      %v5470 = vadd.f32 %v5405, %v5469
      %v5471 = vpop.f32.mrb[0].mxu0
      %5472 = vmatprep.mubr.bf16.mxu0 %v5087
      %5473 = vmatmul.mubr.bf16.gmra.mrb[0].mxu0 %v5086
      %v5474 = vpop.f32.mrb[0].mxu0
      %v5475 = vadd.f32 %v5410, %v5474
      %v5476 = vpop.f32.mrb[0].mxu0
      %v5477 = vpop.f32.mrb[0].mxu0
      %v5478 = vadd.f32 %v5413, %v5477
      %v5479 = vpop.f32.mrb[0].mxu0
      %5480 = vdwg.mxu0
      %v5481 = vmax.f32 %v5451, 0.0
      %v5482 = vmax.f32 %v5454, 0.0
      %v5483 = vmax.f32 %v5459, 0.0
      %v5484 = vmax.f32 %v5462, 0.0
      %v5485 = vmax.f32 %v5467, 0.0
      %v5486 = vmax.f32 %v5470, 0.0
      %v5487 = vmax.f32 %v5475, 0.0
      %v5488 = vmax.f32 %v5478, 0.0
      %v5489 = vpack.c.bf16 %v5482, %v5481
      %v5490 = vpack.c.bf16 %v5484, %v5483
      %v5491 = vpack.c.bf16 %v5486, %v5485
      %v5492 = vpack.c.bf16 %v5488, %v5487
      %v5493 = vld [vmem:[#allocation10] sm:$0xf]
      %v5494 = vld [vmem:[#allocation10 + $0x4] sm:$0xf]
      %v5495 = vld [vmem:[#allocation10 + $0x8] sm:$0xf]
      %v5496 = vld [vmem:[#allocation10 + $0xc] sm:$0xf]
      %v5497 = vld [vmem:[#allocation10 + $0x10] sm:$0xf]
      %v5498 = vld [vmem:[#allocation10 + $0x14] sm:$0xf]
      %v5499 = vld [vmem:[#allocation10 + $0x18] sm:$0xf]
      %v5500 = vld [vmem:[#allocation10 + $0x1c] sm:$0xf]
      %v5501 = vld [vmem:[#allocation10 + $0x20] sm:$0xf]
      %v5502 = vld [vmem:[#allocation10 + $0x24] sm:$0xf]
      %v5503 = vld [vmem:[#allocation10 + $0x28] sm:$0xf]
      %v5504 = vld [vmem:[#allocation10 + $0x2c] sm:$0xf]
      %v5505 = vld [vmem:[#allocation10 + $0x30] sm:$0xf]
      %v5506 = vld [vmem:[#allocation10 + $0x34] sm:$0xf]
      %v5507 = vld [vmem:[#allocation10 + $0x38] sm:$0xf]
      %v5508 = vld [vmem:[#allocation10 + $0x3c] sm:$0xf]
      %v5509 = vld [vmem:[#allocation11] sm:$0x1]
      %v5511 = vlaneseq
      %v5512 = vshrl.u32 %v5511, 7
      %v5513 = vsub.s32 0, %v5512
      %v5514 = vrot.slane %v5509, %v5513
      %v5532 = vunpack.c.l.b16 %v5493
      %v5533 = vunpack.c.l.b16 %v5494
      %v5534 = vunpack.c.l.b16 %v5495
      %v5535 = vunpack.c.l.b16 %v5496
      %v5536 = vunpack.c.l.b16 %v5497
      %v5537 = vunpack.c.l.b16 %v5498
      %v5538 = vunpack.c.l.b16 %v5499
      %v5539 = vunpack.c.l.b16 %v5500
      %v5540 = vunpack.c.l.b16 %v5501
      %v5541 = vunpack.c.l.b16 %v5502
      %v5542 = vunpack.c.l.b16 %v5503
      %v5543 = vunpack.c.l.b16 %v5504
      %v5544 = vunpack.c.l.b16 %v5505
      %v5545 = vunpack.c.l.b16 %v5506
      %v5546 = vunpack.c.l.b16 %v5507
      %v5547 = vunpack.c.l.b16 %v5508
      %v5548 = vpack.c.b16 %v5533, %v5532
      %v5549 = vpack.c.b16 %v5535, %v5534
      %v5550 = vpack.c.b16 %v5537, %v5536
      %v5551 = vpack.c.b16 %v5539, %v5538
      %v5552 = vpack.c.b16 %v5541, %v5540
      %v5553 = vpack.c.b16 %v5543, %v5542
      %v5554 = vpack.c.b16 %v5545, %v5544
      %v5555 = vpack.c.b16 %v5547, %v5546
      %5564 = vmatprep.subr.bf16.mxu0 0
      %5565 = vmatpush1.bf16.msra.mxu0 %v5548
      %5566 = vmatprep.subr.bf16.mxu0 0
      %5567 = vmatpush1.bf16.msra.mxu0 %v5549
      %5568 = vmatprep.subr.bf16.mxu0 0
      %5569 = vmatpush1.bf16.msra.mxu0 %v5550
      %5570 = vmatprep.subr.bf16.mxu0 0
      %5571 = vmatpush1.bf16.msra.mxu0 %v5551
      %5572 = vmatprep.subr.bf16.mxu0 0
      %5573 = vmatpush1.bf16.msra.mxu0 %v5552
      %5574 = vmatprep.subr.bf16.mxu0 0
      %5575 = vmatpush1.bf16.msra.mxu0 %v5553
      %5576 = vmatprep.subr.bf16.mxu0 0
      %5577 = vmatpush1.bf16.msra.mxu0 %v5554
      %5578 = vmatprep.subr.bf16.mxu0 0
      %5579 = vmatpush1.bf16.msra.mxu0 %v5555
      %5580 = vmatprep.subr.bf16.mxu0 0
      %5581 = vmatpush1.bf16.msra.mxu0 0
      %5582 = vmatprep.subr.bf16.mxu0 0
      %5583 = vmatpush1.bf16.msra.mxu0 0
      %5584 = vmatprep.subr.bf16.mxu0 0
      %5585 = vmatpush1.bf16.msra.mxu0 0
      %5586 = vmatprep.subr.bf16.mxu0 0
      %5587 = vmatpush1.bf16.msra.mxu0 0
      %5588 = vmatprep.subr.bf16.mxu0 0
      %5589 = vmatpush1.bf16.msra.mxu0 0
      %5590 = vmatprep.subr.bf16.mxu0 0
      %5591 = vmatpush1.bf16.msra.mxu0 0
      %5592 = vmatprep.subr.bf16.mxu0 0
      %5593 = vmatpush1.bf16.msra.mxu0 0
      %5594 = vmatprep.subr.bf16.mxu0 0
      %5595 = vmatpush1.bf16.msra.mxu0 0
      %5596 = vmatprep.mubr.bf16.mxu0 0
      %5597 = vmatmul.mubr.bf16.gmra.mrb[0].mxu0 %v5489
      %v5598 = vpop.f32.mrb[0].mxu0
      %v5599 = vadd.f32 %v5514, %v5598
      %v5600 = vpop.f32.mrb[0].mxu0
      %v5601 = vpop.f32.mrb[0].mxu0
      %v5602 = vadd.f32 %v5514, %v5601
      %v5603 = vpop.f32.mrb[0].mxu0
      %5604 = vmatprep.mubr.bf16.mxu0 0
      %5605 = vmatmul.mubr.bf16.gmra.mrb[0].mxu0 %v5490
      %v5606 = vpop.f32.mrb[0].mxu0
      %v5607 = vadd.f32 %v5514, %v5606
      %v5608 = vpop.f32.mrb[0].mxu0
      %v5609 = vpop.f32.mrb[0].mxu0
      %v5610 = vadd.f32 %v5514, %v5609
      %v5611 = vpop.f32.mrb[0].mxu0
      %5612 = vmatprep.mubr.bf16.mxu0 0
      %5613 = vmatmul.mubr.bf16.gmra.mrb[0].mxu0 %v5491
      %v5614 = vpop.f32.mrb[0].mxu0
      %v5615 = vadd.f32 %v5514, %v5614
      %v5616 = vpop.f32.mrb[0].mxu0
      %v5617 = vpop.f32.mrb[0].mxu0
      %v5618 = vadd.f32 %v5514, %v5617
      %v5619 = vpop.f32.mrb[0].mxu0
      %5620 = vmatprep.mubr.bf16.mxu0 0
      %5621 = vmatmul.mubr.bf16.gmra.mrb[0].mxu0 %v5492
      %v5622 = vpop.f32.mrb[0].mxu0
      %v5623 = vadd.f32 %v5514, %v5622
      %v5624 = vpop.f32.mrb[0].mxu0
      %v5625 = vpop.f32.mrb[0].mxu0
      %v5626 = vadd.f32 %v5514, %v5625
      %v5627 = vpop.f32.mrb[0].mxu0
      %5628 = vdwg.mxu0
      %v5629 = vmax.f32 %v5599, 0.0
      %v5630 = vmax.f32 %v5602, 0.0
      %v5631 = vmax.f32 %v5607, 0.0
      %v5632 = vmax.f32 %v5610, 0.0
      %v5633 = vmax.f32 %v5615, 0.0
      %v5634 = vmax.f32 %v5618, 0.0
      %v5635 = vmax.f32 %v5623, 0.0
      %v5636 = vmax.f32 %v5626, 0.0
      %v5637 = vpack.c.bf16 %v5630, %v5629
      %v5638 = vpack.c.bf16 %v5632, %v5631
      %v5639 = vpack.c.bf16 %v5634, %v5633
      %v5640 = vpack.c.bf16 %v5636, %v5635
      %v5641 = vld [vmem:[#allocation13] sm:$0xf]
      %v5642 = vld [vmem:[#allocation13 + $0x4] sm:$0xf]
      %v5643 = vld [vmem:[#allocation13 + $0x8] sm:$0xf]
      %v5644 = vld [vmem:[#allocation13 + $0xc] sm:$0xf]
      %v5645 = vld [vmem:[#allocation13 + $0x10] sm:$0xf]
      %v5646 = vld [vmem:[#allocation13 + $0x14] sm:$0xf]
      %v5647 = vld [vmem:[#allocation13 + $0x18] sm:$0xf]
      %v5648 = vld [vmem:[#allocation13 + $0x1c] sm:$0xf]
      %v5649 = vld [vmem:[#allocation13 + $0x20] sm:$0xf]
      %v5650 = vld [vmem:[#allocation13 + $0x24] sm:$0xf]
      %v5651 = vld [vmem:[#allocation13 + $0x28] sm:$0xf]
      %v5652 = vld [vmem:[#allocation13 + $0x2c] sm:$0xf]
      %v5653 = vld [vmem:[#allocation13 + $0x30] sm:$0xf]
      %v5654 = vld [vmem:[#allocation13 + $0x34] sm:$0xf]
      %v5655 = vld [vmem:[#allocation13 + $0x38] sm:$0xf]
      %v5656 = vld [vmem:[#allocation13 + $0x3c] sm:$0xf]
      %v5657 = vld [vmem:[#allocation14] sm:$0x1]
      %v5659 = vlaneseq
      %v5660 = vshrl.u32 %v5659, 7
      %v5661 = vsub.s32 0, %v5660
      %v5662 = vrot.slane %v5657, %v5661
      %v5680 = vunpack.c.l.b16 %v5641
      %v5681 = vunpack.c.l.b16 %v5642
      %v5682 = vunpack.c.l.b16 %v5643
      %v5683 = vunpack.c.l.b16 %v5644
      %v5684 = vunpack.c.l.b16 %v5645
      %v5685 = vunpack.c.l.b16 %v5646
      %v5686 = vunpack.c.l.b16 %v5647
      %v5687 = vunpack.c.l.b16 %v5648
      %v5688 = vunpack.c.l.b16 %v5649
      %v5689 = vunpack.c.l.b16 %v5650
      %v5690 = vunpack.c.l.b16 %v5651
      %v5691 = vunpack.c.l.b16 %v5652
      %v5692 = vunpack.c.l.b16 %v5653
      %v5693 = vunpack.c.l.b16 %v5654
      %v5694 = vunpack.c.l.b16 %v5655
      %v5695 = vunpack.c.l.b16 %v5656
      %v5696 = vpack.c.b16 %v5681, %v5680
      %v5697 = vpack.c.b16 %v5683, %v5682
      %v5698 = vpack.c.b16 %v5685, %v5684
      %v5699 = vpack.c.b16 %v5687, %v5686
      %v5700 = vpack.c.b16 %v5689, %v5688
      %v5701 = vpack.c.b16 %v5691, %v5690
      %v5702 = vpack.c.b16 %v5693, %v5692
      %v5703 = vpack.c.b16 %v5695, %v5694
      %5712 = vmatprep.subr.bf16.mxu0 0
      %5713 = vmatpush1.bf16.msra.mxu0 %v5696
      %5714 = vmatprep.subr.bf16.mxu0 0
      %5715 = vmatpush1.bf16.msra.mxu0 %v5697
      %5716 = vmatprep.subr.bf16.mxu0 0
      %5717 = vmatpush1.bf16.msra.mxu0 %v5698
      %5718 = vmatprep.subr.bf16.mxu0 0
      %5719 = vmatpush1.bf16.msra.mxu0 %v5699
      %5720 = vmatprep.subr.bf16.mxu0 0
      %5721 = vmatpush1.bf16.msra.mxu0 %v5700
      %5722 = vmatprep.subr.bf16.mxu0 0
      %5723 = vmatpush1.bf16.msra.mxu0 %v5701
      %5724 = vmatprep.subr.bf16.mxu0 0
      %5725 = vmatpush1.bf16.msra.mxu0 %v5702
      %5726 = vmatprep.subr.bf16.mxu0 0
      %5727 = vmatpush1.bf16.msra.mxu0 %v5703
      %5728 = vmatprep.subr.bf16.mxu0 0
      %5729 = vmatpush1.bf16.msra.mxu0 0
      %5730 = vmatprep.subr.bf16.mxu0 0
      %5731 = vmatpush1.bf16.msra.mxu0 0
      %5732 = vmatprep.subr.bf16.mxu0 0
      %5733 = vmatpush1.bf16.msra.mxu0 0
      %5734 = vmatprep.subr.bf16.mxu0 0
      %5735 = vmatpush1.bf16.msra.mxu0 0
      %5736 = vmatprep.subr.bf16.mxu0 0
      %5737 = vmatpush1.bf16.msra.mxu0 0
      %5738 = vmatprep.subr.bf16.mxu0 0
      %5739 = vmatpush1.bf16.msra.mxu0 0
      %5740 = vmatprep.subr.bf16.mxu0 0
      %5741 = vmatpush1.bf16.msra.mxu0 0
      %5742 = vmatprep.subr.bf16.mxu0 0
      %5743 = vmatpush1.bf16.msra.mxu0 0
      %5744 = vmatprep.mubr.bf16.mxu0 0
      %5745 = vmatmul.mubr.bf16.gmra.mrb[0].mxu0 %v5637
      %v5746 = vpop.f32.mrb[0].mxu0
      %v5747 = vadd.f32 %v5662, %v5746
      %v5748 = vpop.f32.mrb[0].mxu0
      %v5749 = vpop.f32.mrb[0].mxu0
      %v5750 = vadd.f32 %v5662, %v5749
      %v5751 = vpop.f32.mrb[0].mxu0
      %5752 = vmatprep.mubr.bf16.mxu0 0
      %5753 = vmatmul.mubr.bf16.gmra.mrb[0].mxu0 %v5638
      %v5754 = vpop.f32.mrb[0].mxu0
      %v5755 = vadd.f32 %v5662, %v5754
      %v5756 = vpop.f32.mrb[0].mxu0
      %v5757 = vpop.f32.mrb[0].mxu0
      %v5758 = vadd.f32 %v5662, %v5757
      %v5759 = vpop.f32.mrb[0].mxu0
      %5760 = vmatprep.mubr.bf16.mxu0 0
      %5761 = vmatmul.mubr.bf16.gmra.mrb[0].mxu0 %v5639
      %v5762 = vpop.f32.mrb[0].mxu0
      %v5763 = vadd.f32 %v5662, %v5762
      %v5764 = vpop.f32.mrb[0].mxu0
      %v5765 = vpop.f32.mrb[0].mxu0
      %v5766 = vadd.f32 %v5662, %v5765
      %v5767 = vpop.f32.mrb[0].mxu0
      %5768 = vmatprep.mubr.bf16.mxu0 0
      %5769 = vmatmul.mubr.bf16.gmra.mrb[0].mxu0 %v5640
      %v5770 = vpop.f32.mrb[0].mxu0
      %v5771 = vadd.f32 %v5662, %v5770
      %v5772 = vpop.f32.mrb[0].mxu0
      %v5773 = vpop.f32.mrb[0].mxu0
      %v5774 = vadd.f32 %v5662, %v5773
      %v5775 = vpop.f32.mrb[0].mxu0
      %5776 = vdwg.mxu0
      %v5777 = vmax.f32 %v5747, 0.0
      %v5778 = vmax.f32 %v5750, 0.0
      %v5779 = vmax.f32 %v5755, 0.0
      %v5780 = vmax.f32 %v5758, 0.0
      %v5781 = vmax.f32 %v5763, 0.0
      %v5782 = vmax.f32 %v5766, 0.0
      %v5783 = vmax.f32 %v5771, 0.0
      %v5784 = vmax.f32 %v5774, 0.0
      %v5785 = vpack.c.bf16 %v5778, %v5777
      %v5786 = vpack.c.bf16 %v5780, %v5779
      %v5787 = vpack.c.bf16 %v5782, %v5781
      %v5788 = vpack.c.bf16 %v5784, %v5783
      %v5789 = vld [vmem:[#allocation16] sm:$0xf]
      %v5790 = vld [vmem:[#allocation16 + $0x4] sm:$0xf]
      %v5791 = vld [vmem:[#allocation16 + $0x8] sm:$0xf]
      %v5792 = vld [vmem:[#allocation16 + $0xc] sm:$0xf]
      %v5793 = vld [vmem:[#allocation16 + $0x10] sm:$0xf]
      %v5794 = vld [vmem:[#allocation16 + $0x14] sm:$0xf]
      %v5795 = vld [vmem:[#allocation16 + $0x18] sm:$0xf]
      %v5796 = vld [vmem:[#allocation16 + $0x1c] sm:$0xf]
      %v5797 = vld [vmem:[#allocation16 + $0x20] sm:$0xf]
      %v5798 = vld [vmem:[#allocation16 + $0x24] sm:$0xf]
      %v5799 = vld [vmem:[#allocation16 + $0x28] sm:$0xf]
      %v5800 = vld [vmem:[#allocation16 + $0x2c] sm:$0xf]
      %v5801 = vld [vmem:[#allocation16 + $0x30] sm:$0xf]
      %v5802 = vld [vmem:[#allocation16 + $0x34] sm:$0xf]
      %v5803 = vld [vmem:[#allocation16 + $0x38] sm:$0xf]
      %v5804 = vld [vmem:[#allocation16 + $0x3c] sm:$0xf]
      %v5805 = vld [vmem:[#allocation17] sm:$0x1]
      %v5807 = vlaneseq
      %v5808 = vshrl.u32 %v5807, 7
      %v5809 = vsub.s32 0, %v5808
      %v5810 = vrot.slane %v5805, %v5809
      %v5828 = vunpack.c.l.b16 %v5789
      %v5829 = vunpack.c.l.b16 %v5790
      %v5830 = vunpack.c.l.b16 %v5791
      %v5831 = vunpack.c.l.b16 %v5792
      %v5832 = vunpack.c.l.b16 %v5793
      %v5833 = vunpack.c.l.b16 %v5794
      %v5834 = vunpack.c.l.b16 %v5795
      %v5835 = vunpack.c.l.b16 %v5796
      %v5836 = vunpack.c.l.b16 %v5797
      %v5837 = vunpack.c.l.b16 %v5798
      %v5838 = vunpack.c.l.b16 %v5799
      %v5839 = vunpack.c.l.b16 %v5800
      %v5840 = vunpack.c.l.b16 %v5801
      %v5841 = vunpack.c.l.b16 %v5802
      %v5842 = vunpack.c.l.b16 %v5803
      %v5843 = vunpack.c.l.b16 %v5804
      %v5844 = vpack.c.b16 %v5829, %v5828
      %v5845 = vpack.c.b16 %v5831, %v5830
      %v5846 = vpack.c.b16 %v5833, %v5832
      %v5847 = vpack.c.b16 %v5835, %v5834
      %v5848 = vpack.c.b16 %v5837, %v5836
      %v5849 = vpack.c.b16 %v5839, %v5838
      %v5850 = vpack.c.b16 %v5841, %v5840
      %v5851 = vpack.c.b16 %v5843, %v5842
      %5860 = vmatprep.subr.bf16.mxu0 0
      %5861 = vmatpush1.bf16.msra.mxu0 %v5844
      %5862 = vmatprep.subr.bf16.mxu0 0
      %5863 = vmatpush1.bf16.msra.mxu0 %v5845
      %5864 = vmatprep.subr.bf16.mxu0 0
      %5865 = vmatpush1.bf16.msra.mxu0 %v5846
      %5866 = vmatprep.subr.bf16.mxu0 0
      %5867 = vmatpush1.bf16.msra.mxu0 %v5847
      %5868 = vmatprep.subr.bf16.mxu0 0
      %5869 = vmatpush1.bf16.msra.mxu0 %v5848
      %5870 = vmatprep.subr.bf16.mxu0 0
      %5871 = vmatpush1.bf16.msra.mxu0 %v5849
      %5872 = vmatprep.subr.bf16.mxu0 0
      %5873 = vmatpush1.bf16.msra.mxu0 %v5850
      %5874 = vmatprep.subr.bf16.mxu0 0
      %5875 = vmatpush1.bf16.msra.mxu0 %v5851
      %5876 = vmatprep.subr.bf16.mxu0 0
      %5877 = vmatpush1.bf16.msra.mxu0 0
      %5878 = vmatprep.subr.bf16.mxu0 0
      %5879 = vmatpush1.bf16.msra.mxu0 0
      %5880 = vmatprep.subr.bf16.mxu0 0
      %5881 = vmatpush1.bf16.msra.mxu0 0
      %5882 = vmatprep.subr.bf16.mxu0 0
      %5883 = vmatpush1.bf16.msra.mxu0 0
      %5884 = vmatprep.subr.bf16.mxu0 0
      %5885 = vmatpush1.bf16.msra.mxu0 0
      %5886 = vmatprep.subr.bf16.mxu0 0
      %5887 = vmatpush1.bf16.msra.mxu0 0
      %5888 = vmatprep.subr.bf16.mxu0 0
      %5889 = vmatpush1.bf16.msra.mxu0 0
      %5890 = vmatprep.subr.bf16.mxu0 0
      %5891 = vmatpush1.bf16.msra.mxu0 0
      %5892 = vmatprep.mubr.bf16.mxu0 0
      %5893 = vmatmul.mubr.bf16.gmra.mrb[0].mxu0 %v5785
      %v5894 = vpop.f32.mrb[0].mxu0
      %v5895 = vadd.f32 %v5810, %v5894
      %v5896 = vpop.f32.mrb[0].mxu0
      %v5897 = vpop.f32.mrb[0].mxu0
      %v5898 = vadd.f32 %v5810, %v5897
      %v5899 = vpop.f32.mrb[0].mxu0
      %5900 = vmatprep.mubr.bf16.mxu0 0
      %5901 = vmatmul.mubr.bf16.gmra.mrb[0].mxu0 %v5786
      %v5902 = vpop.f32.mrb[0].mxu0
      %v5903 = vadd.f32 %v5810, %v5902
      %v5904 = vpop.f32.mrb[0].mxu0
      %v5905 = vpop.f32.mrb[0].mxu0
      %v5906 = vadd.f32 %v5810, %v5905
      %v5907 = vpop.f32.mrb[0].mxu0
      %5908 = vmatprep.mubr.bf16.mxu0 0
      %5909 = vmatmul.mubr.bf16.gmra.mrb[0].mxu0 %v5787
      %v5910 = vpop.f32.mrb[0].mxu0
      %v5911 = vadd.f32 %v5810, %v5910
      %v5912 = vpop.f32.mrb[0].mxu0
      %v5913 = vpop.f32.mrb[0].mxu0
      %v5914 = vadd.f32 %v5810, %v5913
      %v5915 = vpop.f32.mrb[0].mxu0
      %5916 = vmatprep.mubr.bf16.mxu0 0
      %5917 = vmatmul.mubr.bf16.gmra.mrb[0].mxu0 %v5788
      %v5918 = vpop.f32.mrb[0].mxu0
      %v5919 = vadd.f32 %v5810, %v5918
      %v5920 = vpop.f32.mrb[0].mxu0
      %v5921 = vpop.f32.mrb[0].mxu0
      %v5922 = vadd.f32 %v5810, %v5921
      %v5923 = vpop.f32.mrb[0].mxu0
      %5924 = vdwg.mxu0
      %v5925 = vmax.f32 %v5895, 0.0
      %v5926 = vmax.f32 %v5898, 0.0
      %v5927 = vmax.f32 %v5903, 0.0
      %v5928 = vmax.f32 %v5906, 0.0
      %v5929 = vmax.f32 %v5911, 0.0
      %v5930 = vmax.f32 %v5914, 0.0
      %v5931 = vmax.f32 %v5919, 0.0
      %v5932 = vmax.f32 %v5922, 0.0
      %v5933 = vpack.c.bf16 %v5926, %v5925
      %v5934 = vpack.c.bf16 %v5928, %v5927
      %v5935 = vpack.c.bf16 %v5930, %v5929
      %v5936 = vpack.c.bf16 %v5932, %v5931
      %v5937 = vld [vmem:[#allocation19] sm:$0xf]
      %v5938 = vld [vmem:[#allocation19 + $0x4] sm:$0xf]
      %v5939 = vld [vmem:[#allocation19 + $0x8] sm:$0xf]
      %v5940 = vld [vmem:[#allocation19 + $0xc] sm:$0xf]
      %v5941 = vld [vmem:[#allocation19 + $0x10] sm:$0xf]
      %v5942 = vld [vmem:[#allocation19 + $0x14] sm:$0xf]
      %v5943 = vld [vmem:[#allocation19 + $0x18] sm:$0xf]
      %v5944 = vld [vmem:[#allocation19 + $0x1c] sm:$0xf]
      %v5945 = vld [vmem:[#allocation19 + $0x20] sm:$0xf]
      %v5946 = vld [vmem:[#allocation19 + $0x24] sm:$0xf]
      %v5947 = vld [vmem:[#allocation19 + $0x28] sm:$0xf]
      %v5948 = vld [vmem:[#allocation19 + $0x2c] sm:$0xf]
      %v5949 = vld [vmem:[#allocation19 + $0x30] sm:$0xf]
      %v5950 = vld [vmem:[#allocation19 + $0x34] sm:$0xf]
      %v5951 = vld [vmem:[#allocation19 + $0x38] sm:$0xf]
      %v5952 = vld [vmem:[#allocation19 + $0x3c] sm:$0xf]
      %v5953 = vld [vmem:[#allocation20] sm:$0x1]
      %v5955 = vlaneseq
      %v5956 = vshrl.u32 %v5955, 7
      %v5957 = vsub.s32 0, %v5956
      %v5958 = vrot.slane %v5953, %v5957
      %v5976 = vunpack.c.l.b16 %v5937
      %v5977 = vunpack.c.l.b16 %v5938
      %v5978 = vunpack.c.l.b16 %v5939
      %v5979 = vunpack.c.l.b16 %v5940
      %v5980 = vunpack.c.l.b16 %v5941
      %v5981 = vunpack.c.l.b16 %v5942
      %v5982 = vunpack.c.l.b16 %v5943
      %v5983 = vunpack.c.l.b16 %v5944
      %v5984 = vunpack.c.l.b16 %v5945
      %v5985 = vunpack.c.l.b16 %v5946
      %v5986 = vunpack.c.l.b16 %v5947
      %v5987 = vunpack.c.l.b16 %v5948
      %v5988 = vunpack.c.l.b16 %v5949
      %v5989 = vunpack.c.l.b16 %v5950
      %v5990 = vunpack.c.l.b16 %v5951
      %v5991 = vunpack.c.l.b16 %v5952
      %v5992 = vpack.c.b16 %v5977, %v5976
      %v5993 = vpack.c.b16 %v5979, %v5978
      %v5994 = vpack.c.b16 %v5981, %v5980
      %v5995 = vpack.c.b16 %v5983, %v5982
      %v5996 = vpack.c.b16 %v5985, %v5984
      %v5997 = vpack.c.b16 %v5987, %v5986
      %v5998 = vpack.c.b16 %v5989, %v5988
      %v5999 = vpack.c.b16 %v5991, %v5990
      %6008 = vmatprep.subr.bf16.mxu0 0
      %6009 = vmatpush1.bf16.msra.mxu0 %v5992
      %6010 = vmatprep.subr.bf16.mxu0 0
      %6011 = vmatpush1.bf16.msra.mxu0 %v5993
      %6012 = vmatprep.subr.bf16.mxu0 0
      %6013 = vmatpush1.bf16.msra.mxu0 %v5994
      %6014 = vmatprep.subr.bf16.mxu0 0
      %6015 = vmatpush1.bf16.msra.mxu0 %v5995
      %6016 = vmatprep.subr.bf16.mxu0 0
      %6017 = vmatpush1.bf16.msra.mxu0 %v5996
      %6018 = vmatprep.subr.bf16.mxu0 0
      %6019 = vmatpush1.bf16.msra.mxu0 %v5997
      %6020 = vmatprep.subr.bf16.mxu0 0
      %6021 = vmatpush1.bf16.msra.mxu0 %v5998
      %6022 = vmatprep.subr.bf16.mxu0 0
      %6023 = vmatpush1.bf16.msra.mxu0 %v5999
      %6024 = vmatprep.subr.bf16.mxu0 0
      %6025 = vmatpush1.bf16.msra.mxu0 0
      %6026 = vmatprep.subr.bf16.mxu0 0
      %6027 = vmatpush1.bf16.msra.mxu0 0
      %6028 = vmatprep.subr.bf16.mxu0 0
      %6029 = vmatpush1.bf16.msra.mxu0 0
      %6030 = vmatprep.subr.bf16.mxu0 0
      %6031 = vmatpush1.bf16.msra.mxu0 0
      %6032 = vmatprep.subr.bf16.mxu0 0
      %6033 = vmatpush1.bf16.msra.mxu0 0
      %6034 = vmatprep.subr.bf16.mxu0 0
      %6035 = vmatpush1.bf16.msra.mxu0 0
      %6036 = vmatprep.subr.bf16.mxu0 0
      %6037 = vmatpush1.bf16.msra.mxu0 0
      %6038 = vmatprep.subr.bf16.mxu0 0
      %6039 = vmatpush1.bf16.msra.mxu0 0
      %6040 = vmatprep.mubr.bf16.mxu0 0
      %6041 = vmatmul.mubr.bf16.gmra.mrb[0].mxu0 %v5933
      %v6042 = vpop.f32.mrb[0].mxu0
      %v6043 = vadd.f32 %v5958, %v6042
      %v6044 = vpop.f32.mrb[0].mxu0
      %v6045 = vpop.f32.mrb[0].mxu0
      %v6046 = vadd.f32 %v5958, %v6045
      %v6047 = vpop.f32.mrb[0].mxu0
      %6048 = vmatprep.mubr.bf16.mxu0 0
      %6049 = vmatmul.mubr.bf16.gmra.mrb[0].mxu0 %v5934
      %v6050 = vpop.f32.mrb[0].mxu0
      %v6051 = vadd.f32 %v5958, %v6050
      %v6052 = vpop.f32.mrb[0].mxu0
      %v6053 = vpop.f32.mrb[0].mxu0
      %v6054 = vadd.f32 %v5958, %v6053
      %v6055 = vpop.f32.mrb[0].mxu0
      %6056 = vmatprep.mubr.bf16.mxu0 0
      %6057 = vmatmul.mubr.bf16.gmra.mrb[0].mxu0 %v5935
      %v6058 = vpop.f32.mrb[0].mxu0
      %v6059 = vadd.f32 %v5958, %v6058
      %v6060 = vpop.f32.mrb[0].mxu0
      %v6061 = vpop.f32.mrb[0].mxu0
      %v6062 = vadd.f32 %v5958, %v6061
      %v6063 = vpop.f32.mrb[0].mxu0
      %6064 = vmatprep.mubr.bf16.mxu0 0
      %6065 = vmatmul.mubr.bf16.gmra.mrb[0].mxu0 %v5936
      %v6066 = vpop.f32.mrb[0].mxu0
      %v6067 = vadd.f32 %v5958, %v6066
      %v6068 = vpop.f32.mrb[0].mxu0
      %v6069 = vpop.f32.mrb[0].mxu0
      %v6070 = vadd.f32 %v5958, %v6069
      %v6071 = vpop.f32.mrb[0].mxu0
      %6072 = vdwg.mxu0
      %v6073 = vmax.f32 %v6043, 0.0
      %v6074 = vmax.f32 %v6046, 0.0
      %v6075 = vmax.f32 %v6051, 0.0
      %v6076 = vmax.f32 %v6054, 0.0
      %v6077 = vmax.f32 %v6059, 0.0
      %v6078 = vmax.f32 %v6062, 0.0
      %v6079 = vmax.f32 %v6067, 0.0
      %v6080 = vmax.f32 %v6070, 0.0
      %v6081 = vpack.c.bf16 %v6074, %v6073
      %v6082 = vpack.c.bf16 %v6076, %v6075
      %v6083 = vpack.c.bf16 %v6078, %v6077
      %v6084 = vpack.c.bf16 %v6080, %v6079
      %v6085 = vld [vmem:[#allocation22] sm:$0xf]
      %v6086 = vld [vmem:[#allocation22 + $0x4] sm:$0xf]
      %v6087 = vld [vmem:[#allocation22 + $0x8] sm:$0xf]
      %v6088 = vld [vmem:[#allocation22 + $0xc] sm:$0xf]
      %v6089 = vld [vmem:[#allocation22 + $0x10] sm:$0xf]
      %v6090 = vld [vmem:[#allocation22 + $0x14] sm:$0xf]
      %v6091 = vld [vmem:[#allocation22 + $0x18] sm:$0xf]
      %v6092 = vld [vmem:[#allocation22 + $0x1c] sm:$0xf]
      %v6093 = vld [vmem:[#allocation22 + $0x20] sm:$0xf]
      %v6094 = vld [vmem:[#allocation22 + $0x24] sm:$0xf]
      %v6095 = vld [vmem:[#allocation22 + $0x28] sm:$0xf]
      %v6096 = vld [vmem:[#allocation22 + $0x2c] sm:$0xf]
      %v6097 = vld [vmem:[#allocation22 + $0x30] sm:$0xf]
      %v6098 = vld [vmem:[#allocation22 + $0x34] sm:$0xf]
      %v6099 = vld [vmem:[#allocation22 + $0x38] sm:$0xf]
      %v6100 = vld [vmem:[#allocation22 + $0x3c] sm:$0xf]
      %v6101 = vld [vmem:[#allocation23] sm:$0x1]
      %v6103 = vlaneseq
      %v6104 = vshrl.u32 %v6103, 7
      %v6105 = vsub.s32 0, %v6104
      %v6106 = vrot.slane %v6101, %v6105
      %v6124 = vunpack.c.l.b16 %v6085
      %v6125 = vunpack.c.l.b16 %v6086
      %v6126 = vunpack.c.l.b16 %v6087
      %v6127 = vunpack.c.l.b16 %v6088
      %v6128 = vunpack.c.l.b16 %v6089
      %v6129 = vunpack.c.l.b16 %v6090
      %v6130 = vunpack.c.l.b16 %v6091
      %v6131 = vunpack.c.l.b16 %v6092
      %v6132 = vunpack.c.l.b16 %v6093
      %v6133 = vunpack.c.l.b16 %v6094
      %v6134 = vunpack.c.l.b16 %v6095
      %v6135 = vunpack.c.l.b16 %v6096
      %v6136 = vunpack.c.l.b16 %v6097
      %v6137 = vunpack.c.l.b16 %v6098
      %v6138 = vunpack.c.l.b16 %v6099
      %v6139 = vunpack.c.l.b16 %v6100
      %v6140 = vpack.c.b16 %v6125, %v6124
      %v6141 = vpack.c.b16 %v6127, %v6126
      %v6142 = vpack.c.b16 %v6129, %v6128
      %v6143 = vpack.c.b16 %v6131, %v6130
      %v6144 = vpack.c.b16 %v6133, %v6132
      %v6145 = vpack.c.b16 %v6135, %v6134
      %v6146 = vpack.c.b16 %v6137, %v6136
      %v6147 = vpack.c.b16 %v6139, %v6138
      %6156 = vmatprep.subr.bf16.mxu0 0
      %6157 = vmatpush1.bf16.msra.mxu0 %v6140
      %6158 = vmatprep.subr.bf16.mxu0 0
      %6159 = vmatpush1.bf16.msra.mxu0 %v6141
      %6160 = vmatprep.subr.bf16.mxu0 0
      %6161 = vmatpush1.bf16.msra.mxu0 %v6142
      %6162 = vmatprep.subr.bf16.mxu0 0
      %6163 = vmatpush1.bf16.msra.mxu0 %v6143
      %6164 = vmatprep.subr.bf16.mxu0 0
      %6165 = vmatpush1.bf16.msra.mxu0 %v6144
      %6166 = vmatprep.subr.bf16.mxu0 0
      %6167 = vmatpush1.bf16.msra.mxu0 %v6145
      %6168 = vmatprep.subr.bf16.mxu0 0
      %6169 = vmatpush1.bf16.msra.mxu0 %v6146
      %6170 = vmatprep.subr.bf16.mxu0 0
      %6171 = vmatpush1.bf16.msra.mxu0 %v6147
      %6172 = vmatprep.subr.bf16.mxu0 0
      %6173 = vmatpush1.bf16.msra.mxu0 0
      %6174 = vmatprep.subr.bf16.mxu0 0
      %6175 = vmatpush1.bf16.msra.mxu0 0
      %6176 = vmatprep.subr.bf16.mxu0 0
      %6177 = vmatpush1.bf16.msra.mxu0 0
      %6178 = vmatprep.subr.bf16.mxu0 0
      %6179 = vmatpush1.bf16.msra.mxu0 0
      %6180 = vmatprep.subr.bf16.mxu0 0
      %6181 = vmatpush1.bf16.msra.mxu0 0
      %6182 = vmatprep.subr.bf16.mxu0 0
      %6183 = vmatpush1.bf16.msra.mxu0 0
      %6184 = vmatprep.subr.bf16.mxu0 0
      %6185 = vmatpush1.bf16.msra.mxu0 0
      %6186 = vmatprep.subr.bf16.mxu0 0
      %6187 = vmatpush1.bf16.msra.mxu0 0
      %6188 = vmatprep.mubr.bf16.mxu0 0
      %6189 = vmatmul.mubr.bf16.gmra.mrb[0].mxu0 %v6081
      %v6190 = vpop.f32.mrb[0].mxu0
      %v6191 = vadd.f32 %v6106, %v6190
      %v6192 = vpop.f32.mrb[0].mxu0
      %v6193 = vpop.f32.mrb[0].mxu0
      %v6194 = vadd.f32 %v6106, %v6193
      %v6195 = vpop.f32.mrb[0].mxu0
      %6196 = vmatprep.mubr.bf16.mxu0 0
      %6197 = vmatmul.mubr.bf16.gmra.mrb[0].mxu0 %v6082
      %v6198 = vpop.f32.mrb[0].mxu0
      %v6199 = vadd.f32 %v6106, %v6198
      %v6200 = vpop.f32.mrb[0].mxu0
      %v6201 = vpop.f32.mrb[0].mxu0
      %v6202 = vadd.f32 %v6106, %v6201
      %v6203 = vpop.f32.mrb[0].mxu0
      %6204 = vmatprep.mubr.bf16.mxu0 0
      %6205 = vmatmul.mubr.bf16.gmra.mrb[0].mxu0 %v6083
      %v6206 = vpop.f32.mrb[0].mxu0
      %v6207 = vadd.f32 %v6106, %v6206
      %v6208 = vpop.f32.mrb[0].mxu0
      %v6209 = vpop.f32.mrb[0].mxu0
      %v6210 = vadd.f32 %v6106, %v6209
      %v6211 = vpop.f32.mrb[0].mxu0
      %6212 = vmatprep.mubr.bf16.mxu0 0
      %6213 = vmatmul.mubr.bf16.gmra.mrb[0].mxu0 %v6084
      %v6214 = vpop.f32.mrb[0].mxu0
      %v6215 = vadd.f32 %v6106, %v6214
      %v6216 = vpop.f32.mrb[0].mxu0
      %v6217 = vpop.f32.mrb[0].mxu0
      %v6218 = vadd.f32 %v6106, %v6217
      %v6219 = vpop.f32.mrb[0].mxu0
      %6220 = vdwg.mxu0
      %6221 = vst [vmem:[%s15] sm:$0xff] %v6191
      %6222 = vst [vmem:[%s15 + $0x8] sm:$0xff] %v6194
      %6223 = vst [vmem:[%s15 + $0x10] sm:$0xff] %v6199
      %6224 = vst [vmem:[%s15 + $0x18] sm:$0xff] %v6202
      %6225 = vst [vmem:[%s15 + $0x20] sm:$0xff] %v6207
      %6226 = vst [vmem:[%s15 + $0x28] sm:$0xff] %v6210
      %6227 = vst [vmem:[%s15 + $0x30] sm:$0xff] %v6215
      %6228 = vst [vmem:[%s15 + $0x38] sm:$0xff] %v6218
    $region125: #{_mlp_forward.1} parent=1 // pred_fallthru
      _
    // Predicated region
    $region126: #{_mlp_forward.1} parent=1 // pred_check
      _
    $region127: #{_mlp_forward.1} parent=1 // pred_check_branch
      %6230 = sbr.rel (0) target = $region129
    $region128: #{_mlp_forward.1} parent=1 // pred_region
      _
    $region129: #{_mlp_forward.1} parent=1 // pred_fallthru
      _
    // Predicated region
    $region130: #{_mlp_forward.1} parent=1 // pred_check
      _
    $region131: #{_mlp_forward.1} parent=1 // pred_check_branch
      %6232 = sbr.rel (0) target = $region133
    $region132: #{_mlp_forward.1} parent=1 // pred_region
      _
    $region133: #{_mlp_forward.1} parent=1 // pred_fallthru
      _
    %6233 = vsyncpa [#allocation4], 1
    %6234 = vsyncpa [#allocation6], 1
    %6235 = vsyncpa [#allocation9], 1
    %6236 = vsyncpa [#allocation12], 1
    %6237 = vsyncpa [#allocation15], 1
    %6238 = vsyncpa [#allocation18], 1
    %6239 = vsyncpa [#allocation21], 1
    %6240 = vsyncpa [#allocation24], 1

</llo_original>
